<compile_context>
chip_gen: v6e
topology: v6e:2x2x1
jax: 0.10.0
libtpu: 0.0.40
codegen_flags: <defaults>
</compile_context>

<pallas_src>
import functools

import jax
import jax.numpy as jnp
from jax.experimental import pallas as pl
from jax.experimental.pallas import tpu as pltpu


def _uniform_u32(seed_u32, row_offset, shape):
    """Stateless hash PRNG: one uniform uint32 per (global_row, col) element.

    murmur3 fmix32 finalizer over a per-element counter; pure jnp integer ops so
    it lowers on TPU Mosaic and on the CPU interpreter alike."""
    r = jax.lax.broadcasted_iota(jnp.int32, shape, 0) + row_offset  # global row
    c = jax.lax.broadcasted_iota(jnp.int32, shape, 1)
    x = (seed_u32
         ^ (r.astype(jnp.uint32) * jnp.uint32(0x9E3779B1))
         ^ (c.astype(jnp.uint32) * jnp.uint32(0x85EBCA77)))
    x = x ^ (x >> 16)
    x = x * jnp.uint32(0x85EBCA6B)
    x = x ^ (x >> 13)
    x = x * jnp.uint32(0xC2B2AE35)
    x = x ^ (x >> 16)
    return x


def _featgen_kernel(seed_ref, x_ref, noise_ref,
                    w1_ref, b1_ref, w2_ref, b2_ref, w3_ref, b3_ref,
                    out_ref, *, keep_prob, tile_m):
    """One (TM, latent) row tile -> one (TM, out_dim) output tile."""
    # Sampling: add standard-normal noise (f32 VPU math; safe on all chips).
    x = x_ref[...] + noise_ref[...]

    # fc1 + relu : bf16 operands on the MXU, f32 accumulation, bf16 activation.
    a1 = jnp.dot(x.astype(jnp.bfloat16), w1_ref[...],
                 preferred_element_type=jnp.float32) + b1_ref[...]
    h1 = jnp.maximum(a1.astype(jnp.bfloat16), 0.0)

    # fc2 + relu : activation carried in bf16 (packed 2/lane on v6e/v7x VPUs).
    a2 = jnp.dot(h1, w2_ref[...],
                 preferred_element_type=jnp.float32) + b2_ref[...]
    h2 = jnp.maximum(a2.astype(jnp.bfloat16), 0.0)

    # Inverted dropout; mask generated on-chip, keep_prob is trace-time static.
    if keep_prob < 1.0:
        seed_u32 = seed_ref[0].astype(jnp.uint32)
        row_off = pl.program_id(0) * tile_m
        bits = _uniform_u32(seed_u32, row_off, h2.shape)
        # Unsigned compare of raw 32-bit words against keep_prob * 2^32.
        thresh = jnp.asarray(min(int(keep_prob * 4294967296.0), 4294967295),
                             dtype=jnp.uint32)
        keep = bits < thresh
        # Un-scaled masking; the 1/keep_prob factor is applied to the (TM, 128)
        # fc3 output below (exact: the scale commutes through the linear layer).
        h2 = jnp.where(keep, h2, 0.0)

    # fc_flat + tanh (output last dim is lane-dense: num_pred * feat_shape = 128)
    h3 = jnp.dot(h2, w3_ref[...], preferred_element_type=jnp.float32)
    if keep_prob < 1.0:
        h3 = h3 * (1.0 / keep_prob)
    out_ref[...] = jnp.tanh(h3 + b3_ref[...]).astype(out_ref.dtype)


def feat_generator_forward(x, noise, params, *, dropout_p=0.5, training=True,
                           seed=0, tile_m=512):
    """FeatGenerator forward as one row-tiled Pallas call.

    x, noise: (N, latent_dim) f32.  The row-tile size is chosen adaptively
    (<= tile_m, 8-aligned, aiming for a grid of >= 2 steps) and rows are padded
    to a multiple of it; the pad is sliced off the result.  Weights use constant
    index_maps so they stay VMEM-resident across all row tiles."""
    w1, b1, w2, b2, w3, b3 = params
    n, latent = x.shape
    out_dim = w3.shape[1]
    keep_prob = 1.0 if not training else float(1.0 - dropout_p)

    def r8(v):
        return -(-v // 8) * 8

    # Adaptive tile: never pad tiny N to a full 512-row tile, and keep >= 2 grid
    # steps when possible so both v7x TensorCores receive work.
    tm = max(8, min(int(tile_m), r8(-(-n // 2))))
    assert tm % 8 == 0

    n_pad = -(-n // tm) * tm
    if n_pad != n:
        x = jnp.pad(x, ((0, n_pad - n), (0, 0)))
        noise = jnp.pad(noise, ((0, n_pad - n), (0, 0)))

    def row_spec(cols):
        return pl.BlockSpec((tm, cols), lambda i, seed_ref: (i, 0))

    def resident_spec(shape):
        # Constant block index -> DMA'd once, stays in VMEM for all row tiles.
        return pl.BlockSpec(shape, lambda i, seed_ref: (0,) * len(shape))

    kernel = functools.partial(_featgen_kernel, keep_prob=keep_prob, tile_m=tm)
    seed_arr = jnp.asarray([seed], dtype=jnp.int32)

    out = pl.pallas_call(
        kernel,
        out_shape=jax.ShapeDtypeStruct((n_pad, out_dim), jnp.float32),
        grid_spec=pltpu.PrefetchScalarGridSpec(
            num_scalar_prefetch=1,
            grid=(n_pad // tm,),
            in_specs=[
                row_spec(latent),           # x rows
                row_spec(latent),           # noise rows
                resident_spec(w1.shape),    # fc1 weight (bf16)
                resident_spec(b1.shape),    # fc1 bias   (f32)
                resident_spec(w2.shape),    # fc2 weight (bf16)
                resident_spec(b2.shape),    # fc2 bias   (f32)
                resident_spec(w3.shape),    # fc_flat weight (bf16)
                resident_spec(b3.shape),    # fc_flat bias   (f32)
            ],
            out_specs=row_spec(out_dim),
        ),
        compiler_params=pltpu.CompilerParams(
            dimension_semantics=("parallel",)),
    )(seed_arr, x, noise, w1, b1, w2, b2, w3, b3)

    return out[:n]


def init_params(key, latent_dim, num_pred, feat_shape):
    """nn.Linear-style init (uniform +/- 1/sqrt(fan_in)).

    Weights stored as (in_features, out_features) in bf16 (MXU operand dtype),
    biases kept f32 for the accumulator adds."""
    dims = [(latent_dim, 256), (256, 2048), (2048, num_pred * feat_shape)]
    params = []
    for fan_in, fan_out in dims:
        key, kw, kb = jax.random.split(key, 3)
        bound = 1.0 / (fan_in ** 0.5)
        w = jax.random.uniform(kw, (fan_in, fan_out), jnp.float32, -bound, bound)
        b = jax.random.uniform(kb, (1, fan_out), jnp.float32, -bound, bound)
        params.extend([w.astype(jnp.bfloat16), b])
    return params


def featgen_reference(x, noise, params):
    """Pure-JAX eval-mode (no dropout) reference matching the kernel's
    bf16-operand / f32-accumulate precision."""
    w1, b1, w2, b2, w3, b3 = params
    h = x + noise
    h = jnp.maximum(jnp.dot(h.astype(jnp.bfloat16), w1,
                            preferred_element_type=jnp.float32) + b1,
                    0.0).astype(jnp.bfloat16)
    h = jnp.maximum(jnp.dot(h, w2,
                            preferred_element_type=jnp.float32) + b2,
                    0.0).astype(jnp.bfloat16)
    return jnp.tanh(jnp.dot(h, w3, preferred_element_type=jnp.float32) + b3)


if __name__ == "__main__":
    # Small shapes consistent with the module: latent (gen_hidden) = 32,
    # num_pred = 2, feat_shape = 64 -> generator output dim = 128 (lane-dense).
    N = 8
    LATENT_DIM = 32
    NUM_PRED = 2
    FEAT_SHAPE = 64
    DROPOUT_P = 0.5
    OUT_DIM = NUM_PRED * FEAT_SHAPE

    key = jax.random.PRNGKey(0)
    k_x, k_noise, k_params, k_x2, k_noise2 = jax.random.split(key, 5)

    x = jax.random.normal(k_x, (N, LATENT_DIM), jnp.float32)
    noise = jax.random.normal(k_noise, (N, LATENT_DIM), jnp.float32)
    params = init_params(k_params, LATENT_DIM, NUM_PRED, FEAT_SHAPE)

    # 1) Training-mode run: dropout mask generated on-chip (hash PRNG stream
    #    differs from any host-side reference by construction) -- sanity checks.
    out_train = feat_generator_forward(x, noise, params,
                                       dropout_p=DROPOUT_P, training=True,
                                       seed=42)
    out_train = jax.block_until_ready(out_train)
    assert out_train.shape == (N, OUT_DIM)
    assert bool(jnp.all(jnp.isfinite(out_train)))
    assert bool(jnp.all(jnp.abs(out_train) <= 1.0 + 1e-6))

    # 2) Eval-mode run (dropout disabled -> deterministic path): check against a
    #    pure-JAX reference using identical bf16/f32 matmul precision.
    out_eval = feat_generator_forward(x, noise, params,
                                      dropout_p=DROPOUT_P, training=False)
    out_eval = jax.block_until_ready(out_eval)
    ref_eval = featgen_reference(x, noise, params)
    assert jnp.allclose(out_eval, ref_eval, atol=2e-2, rtol=2e-2)

    # 3) Multi-tile grid check (ragged N, grid > 1) in eval mode: validates the
    #    adaptive row tiling / padding / resident-weight index_maps.
    N2 = 200
    x2 = jax.random.normal(k_x2, (N2, LATENT_DIM), jnp.float32)
    noise2 = jax.random.normal(k_noise2, (N2, LATENT_DIM), jnp.float32)
    out2 = feat_generator_forward(x2, noise2, params,
                                  dropout_p=DROPOUT_P, training=False)
    out2 = jax.block_until_ready(out2)
    ref2 = featgen_reference(x2, noise2, params)
    assert out2.shape == (N2, OUT_DIM)
    assert jnp.allclose(out2, ref2, atol=2e-2, rtol=2e-2)

    print("KERNEL_OK")
</pallas_src>

<mosaic_0001>
module attributes {stable_mosaic.version = 11 : i64} {
  func.func @_featgen_kernel(%arg0: i32, %arg1: memref<1xi32, #tpu.memory_space<smem>>, %arg2: memref<8x32xf32, #tpu.memory_space<vmem>>, %arg3: memref<8x32xf32, #tpu.memory_space<vmem>>, %arg4: memref<32x256xbf16, #tpu.memory_space<vmem>>, %arg5: memref<1x256xf32, #tpu.memory_space<vmem>>, %arg6: memref<256x2048xbf16, #tpu.memory_space<vmem>>, %arg7: memref<1x2048xf32, #tpu.memory_space<vmem>>, %arg8: memref<2048x128xbf16, #tpu.memory_space<vmem>>, %arg9: memref<1x128xf32, #tpu.memory_space<vmem>>, %arg10: memref<8x128xf32, #tpu.memory_space<vmem>>) attributes {dimension_semantics = [#tpu.dimension_semantics<parallel>], iteration_bounds = array<i64: 1>, scalar_prefetch = 1 : i64, scratch_operands = 0 : i64, tpu.core_type = #tpu.core_type<tc>, window_params = [{transform_indices = @transform_0, window_bounds = array<i64: 8, 32>}, {transform_indices = @transform_1, window_bounds = array<i64: 8, 32>}, {pipeline_mode = #tpu.pipeline_mode<synchronous>, transform_indices = @transform_2, window_bounds = array<i64: 32, 256>}, {pipeline_mode = #tpu.pipeline_mode<synchronous>, transform_indices = @transform_3, window_bounds = array<i64: 1, 256>}, {pipeline_mode = #tpu.pipeline_mode<synchronous>, transform_indices = @transform_4, window_bounds = array<i64: 256, 2048>}, {pipeline_mode = #tpu.pipeline_mode<synchronous>, transform_indices = @transform_5, window_bounds = array<i64: 1, 2048>}, {pipeline_mode = #tpu.pipeline_mode<synchronous>, transform_indices = @transform_6, window_bounds = array<i64: 2048, 128>}, {pipeline_mode = #tpu.pipeline_mode<synchronous>, transform_indices = @transform_7, window_bounds = array<i64: 1, 128>}, {transform_indices = @transform_8, window_bounds = array<i64: 8, 128>}]} {
    %c0 = arith.constant 0 : index
    %c0_0 = arith.constant 0 : index
    %0 = vector.load %arg2[%c0, %c0_0] : memref<8x32xf32, #tpu.memory_space<vmem>>, vector<8x32xf32>
    %c0_1 = arith.constant 0 : index
    %c0_2 = arith.constant 0 : index
    %1 = vector.load %arg3[%c0_1, %c0_2] : memref<8x32xf32, #tpu.memory_space<vmem>>, vector<8x32xf32>
    %2 = arith.addf %0, %1 : vector<8x32xf32>
    %3 = arith.truncf %2 : vector<8x32xf32> to vector<8x32xbf16>
    %c0_3 = arith.constant 0 : index
    %c0_4 = arith.constant 0 : index
    %4 = vector.load %arg4[%c0_3, %c0_4] : memref<32x256xbf16, #tpu.memory_space<vmem>>, vector<32x256xbf16>
    %cst = arith.constant dense<0.000000e+00> : vector<8x256xf32>
    %5 = tpu.matmul %3, %4, %cst {dimension_numbers = #tpu.dot_dimension_numbers<[1], [0], [0], [1], [0, 0, 1, 1], [], []>} : vector<8x32xbf16>, vector<32x256xbf16>, vector<8x256xf32> -> vector<8x256xf32>
    %c0_5 = arith.constant 0 : index
    %c0_6 = arith.constant 0 : index
    %6 = vector.load %arg5[%c0_5, %c0_6] : memref<1x256xf32, #tpu.memory_space<vmem>>, vector<1x256xf32>
    %7 = vector.broadcast %6 : vector<1x256xf32> to vector<8x256xf32>
    %8 = arith.addf %5, %7 : vector<8x256xf32>
    %9 = arith.truncf %8 : vector<8x256xf32> to vector<8x256xbf16>
    %cst_7 = arith.constant 0.000000e+00 : bf16
    %10 = vector.broadcast %cst_7 : bf16 to vector<8x256xbf16>
    %11 = arith.maximumf %9, %10 : vector<8x256xbf16>
    %c0_8 = arith.constant 0 : index
    %c0_9 = arith.constant 0 : index
    %12 = vector.load %arg6[%c0_8, %c0_9] : memref<256x2048xbf16, #tpu.memory_space<vmem>>, vector<256x2048xbf16>
    %cst_10 = arith.constant dense<0.000000e+00> : vector<8x2048xf32>
    %13 = tpu.matmul %11, %12, %cst_10 {dimension_numbers = #tpu.dot_dimension_numbers<[1], [0], [0], [1], [0, 0, 1, 1], [], []>} : vector<8x256xbf16>, vector<256x2048xbf16>, vector<8x2048xf32> -> vector<8x2048xf32>
    %c0_11 = arith.constant 0 : index
    %c0_12 = arith.constant 0 : index
    %14 = vector.load %arg7[%c0_11, %c0_12] : memref<1x2048xf32, #tpu.memory_space<vmem>>, vector<1x2048xf32>
    %15 = vector.broadcast %14 : vector<1x2048xf32> to vector<8x2048xf32>
    %16 = arith.addf %13, %15 : vector<8x2048xf32>
    %17 = arith.truncf %16 : vector<8x2048xf32> to vector<8x2048xbf16>
    %cst_13 = arith.constant 0.000000e+00 : bf16
    %18 = vector.broadcast %cst_13 : bf16 to vector<8x2048xbf16>
    %19 = arith.maximumf %17, %18 : vector<8x2048xbf16>
    %c0_14 = arith.constant 0 : index
    %20 = memref.load %arg1[%c0_14] : memref<1xi32, #tpu.memory_space<smem>>
    %c8_i32 = arith.constant 8 : i32
    %21 = arith.muli %arg0, %c8_i32 : i32
    %22 = tpu.iota {dimensions = array<i32: 0>} : vector<8x2048xi32>
    %23 = vector.broadcast %21 : i32 to vector<8x2048xi32>
    %24 = arith.addi %22, %23 : vector<8x2048xi32>
    %25 = tpu.iota {dimensions = array<i32: 1>} : vector<8x2048xi32>
    %c-1640531535_i32 = arith.constant -1640531535 : i32
    %26 = vector.broadcast %c-1640531535_i32 : i32 to vector<8x2048xi32>
    %27 = arith.muli %24, %26 : vector<8x2048xi32>
    %28 = vector.broadcast %20 : i32 to vector<8x2048xi32>
    %29 = arith.xori %28, %27 : vector<8x2048xi32>
    %c-2048144777_i32 = arith.constant -2048144777 : i32
    %30 = vector.broadcast %c-2048144777_i32 : i32 to vector<8x2048xi32>
    %31 = arith.muli %25, %30 : vector<8x2048xi32>
    %32 = arith.xori %29, %31 : vector<8x2048xi32>
    %c16_i32 = arith.constant 16 : i32
    %33 = vector.broadcast %c16_i32 : i32 to vector<8x2048xi32>
    %34 = arith.shrui %32, %33 : vector<8x2048xi32>
    %35 = arith.xori %32, %34 : vector<8x2048xi32>
    %c-2048144789_i32 = arith.constant -2048144789 : i32
    %36 = vector.broadcast %c-2048144789_i32 : i32 to vector<8x2048xi32>
    %37 = arith.muli %35, %36 : vector<8x2048xi32>
    %c13_i32 = arith.constant 13 : i32
    %38 = vector.broadcast %c13_i32 : i32 to vector<8x2048xi32>
    %39 = arith.shrui %37, %38 : vector<8x2048xi32>
    %40 = arith.xori %37, %39 : vector<8x2048xi32>
    %c-1028477387_i32 = arith.constant -1028477387 : i32
    %41 = vector.broadcast %c-1028477387_i32 : i32 to vector<8x2048xi32>
    %42 = arith.muli %40, %41 : vector<8x2048xi32>
    %c16_i32_15 = arith.constant 16 : i32
    %43 = vector.broadcast %c16_i32_15 : i32 to vector<8x2048xi32>
    %44 = arith.shrui %42, %43 : vector<8x2048xi32>
    %45 = arith.xori %42, %44 : vector<8x2048xi32>
    %c-2147483648_i32 = arith.constant -2147483648 : i32
    %46 = vector.broadcast %c-2147483648_i32 : i32 to vector<8x2048xi32>
    %47 = arith.cmpi ult, %45, %46 : vector<8x2048xi32>
    %cst_16 = arith.constant 0.000000e+00 : f32
    %48 = arith.truncf %cst_16 : f32 to bf16
    %49 = vector.broadcast %48 : bf16 to vector<8x2048xbf16>
    %50 = arith.select %47, %19, %49 : vector<8x2048xi1>, vector<8x2048xbf16>
    %c0_17 = arith.constant 0 : index
    %c0_18 = arith.constant 0 : index
    %51 = vector.load %arg8[%c0_17, %c0_18] : memref<2048x128xbf16, #tpu.memory_space<vmem>>, vector<2048x128xbf16>
    %cst_19 = arith.constant dense<0.000000e+00> : vector<8x128xf32>
    %52 = tpu.matmul %50, %51, %cst_19 {dimension_numbers = #tpu.dot_dimension_numbers<[1], [0], [0], [1], [0, 0, 1, 1], [], []>} : vector<8x2048xbf16>, vector<2048x128xbf16>, vector<8x128xf32> -> vector<8x128xf32>
    %cst_20 = arith.constant 2.000000e+00 : f32
    %53 = vector.broadcast %cst_20 : f32 to vector<8x128xf32>
    %54 = arith.mulf %52, %53 : vector<8x128xf32>
    %c0_21 = arith.constant 0 : index
    %c0_22 = arith.constant 0 : index
    %55 = vector.load %arg9[%c0_21, %c0_22] : memref<1x128xf32, #tpu.memory_space<vmem>>, vector<1x128xf32>
    %56 = vector.broadcast %55 : vector<1x128xf32> to vector<8x128xf32>
    %57 = arith.addf %54, %56 : vector<8x128xf32>
    %58 = math.tanh %57 : vector<8x128xf32>
    %c0_23 = arith.constant 0 : index
    %c0_24 = arith.constant 0 : index
    %59 = vector.load %arg10[%c0_23, %c0_24] : memref<8x128xf32, #tpu.memory_space<vmem>>, vector<8x128xf32>
    tpu.vector_store %arg10[%c0_23, %c0_24], %58 {strides = array<i32>} : memref<8x128xf32, #tpu.memory_space<vmem>>, vector<8x128xf32>,
    return
  }
  func.func @transform_0(%arg0: i32, %arg1: memref<1xi32, #tpu.memory_space<smem>>) -> (i32, i32) {
    %c0_i32 = arith.constant 0 : i32
    %c0_i32_0 = arith.constant 0 : i32
    return %arg0, %c0_i32 : i32, i32
  }
  func.func @transform_1(%arg0: i32, %arg1: memref<1xi32, #tpu.memory_space<smem>>) -> (i32, i32) {
    %c0_i32 = arith.constant 0 : i32
    %c0_i32_0 = arith.constant 0 : i32
    return %arg0, %c0_i32 : i32, i32
  }
  func.func @transform_2(%arg0: i32, %arg1: memref<1xi32, #tpu.memory_space<smem>>) -> (i32, i32) {
    %c0_i32 = arith.constant 0 : i32
    %c0_i32_0 = arith.constant 0 : i32
    %c0_i32_1 = arith.constant 0 : i32
    return %c0_i32, %c0_i32_0 : i32, i32
  }
  func.func @transform_3(%arg0: i32, %arg1: memref<1xi32, #tpu.memory_space<smem>>) -> (i32, i32) {
    %c0_i32 = arith.constant 0 : i32
    %c0_i32_0 = arith.constant 0 : i32
    %c0_i32_1 = arith.constant 0 : i32
    return %c0_i32, %c0_i32_0 : i32, i32
  }
  func.func @transform_4(%arg0: i32, %arg1: memref<1xi32, #tpu.memory_space<smem>>) -> (i32, i32) {
    %c0_i32 = arith.constant 0 : i32
    %c0_i32_0 = arith.constant 0 : i32
    %c0_i32_1 = arith.constant 0 : i32
    return %c0_i32, %c0_i32_0 : i32, i32
  }
  func.func @transform_5(%arg0: i32, %arg1: memref<1xi32, #tpu.memory_space<smem>>) -> (i32, i32) {
    %c0_i32 = arith.constant 0 : i32
    %c0_i32_0 = arith.constant 0 : i32
    %c0_i32_1 = arith.constant 0 : i32
    return %c0_i32, %c0_i32_0 : i32, i32
  }
  func.func @transform_6(%arg0: i32, %arg1: memref<1xi32, #tpu.memory_space<smem>>) -> (i32, i32) {
    %c0_i32 = arith.constant 0 : i32
    %c0_i32_0 = arith.constant 0 : i32
    %c0_i32_1 = arith.constant 0 : i32
    return %c0_i32, %c0_i32_0 : i32, i32
  }
  func.func @transform_7(%arg0: i32, %arg1: memref<1xi32, #tpu.memory_space<smem>>) -> (i32, i32) {
    %c0_i32 = arith.constant 0 : i32
    %c0_i32_0 = arith.constant 0 : i32
    %c0_i32_1 = arith.constant 0 : i32
    return %c0_i32, %c0_i32_0 : i32, i32
  }
  func.func @transform_8(%arg0: i32, %arg1: memref<1xi32, #tpu.memory_space<smem>>) -> (i32, i32) {
    %c0_i32 = arith.constant 0 : i32
    %c0_i32_0 = arith.constant 0 : i32
    return %arg0, %c0_i32 : i32, i32
  }
}

</mosaic_0001>

<llo_original>
// kernel: tpu_custom_call.1
$region0: #{tpu_custom_call.1}
  #allocation0 [shape = 'u32[]', space=smem, size = 0x4, offset = 0x4, fixed_abs, tag = 'smem constant byte address 0x4 - core index']
  #allocation1 [shape = 'u32[144,128]{1,0:T(1,128)}', space=vmem, size = 0x12000, scoped, tag = 'internal scratch']
  #allocation2 [shape = 's32[1]{0}', space=sflag, size = 0x4, scoped, tag = 'scoped memory for tpu_custom_call.1']
  #allocation3 [shape = 's32[1]{0:T(128)S(6)}', space=smem, size = 0x200, scoped, tag = 'prefetched SMEM operand 0']
  %s0 = inlined_call_operand.<no memory space> [shape: s32[1], index: 0, kind: input, shape index: {}]
  %s1 = inlined_call_operand.hbm [shape: f32[8,32], index: 1, kind: input, shape index: {}]
  %s2 = inlined_call_operand.hbm [shape: f32[8,32], index: 2, kind: input, shape index: {}]
  %s3 = inlined_call_operand.hbm [shape: bf16[32,256], index: 3, kind: input, shape index: {}]
  %s4 = inlined_call_operand.vmem [shape: f32[1,256], index: 4, kind: input, shape index: {}]
  %s5 = inlined_call_operand.hbm [shape: bf16[256,2048], index: 5, kind: input, shape index: {}]
  %s6 = inlined_call_operand.hbm [shape: f32[1,2048], index: 6, kind: input, shape index: {}]
  %s7 = inlined_call_operand.hbm [shape: bf16[2048,128], index: 7, kind: input, shape index: {}]
  %s8 = inlined_call_operand.vmem [shape: f32[1,128], index: 8, kind: input, shape index: {}]
  %s9 = inlined_call_operand.hbm [shape: f32[8,128], index: 9, kind: output, shape index: {}]
  %s10 = sld [smem:[#allocation0]]
  $region66: #{tpu_custom_call.1} parent=0
    _
  %s12 = ssub.s32 1, %s10
  %s13 = scalar_select 0, %s12, %s10
  %14 = sst [smem:[#allocation3]] %s0
  $region1: #{tpu_custom_call.1} parent=0
    #allocation4 [shape = 'u8[4096]{0}', space=vmem, size = 0x1000, scoped, tag = 'input window, operand 1, single buffered']
    #allocation5 [shape = 's32[1]{0}', space=sflag, size = 0x4, scoped, tag = 'scoped memory for tpu_custom_call.1']
    #allocation6 [shape = 's32[1]{0}', space=sflag, size = 0x4, scoped, tag = 'scoped memory for tpu_custom_call.1']
    #allocation7 [shape = 'u8[4096]{0}', space=vmem, size = 0x1000, scoped, tag = 'input window, operand 2, single buffered']
    #allocation8 [shape = 's32[1]{0}', space=sflag, size = 0x4, scoped, tag = 'scoped memory for tpu_custom_call.1']
    #allocation9 [shape = 'u8[16384]{0}', space=vmem, size = 0x4000, scoped, tag = 'input window, operand 3, single buffered']
    #allocation10 [shape = 'u8[1048576]{0}', space=vmem, size = 0x100000, scoped, tag = 'input window, operand 5, single buffered']
    #allocation11 [shape = 's32[1]{0}', space=sflag, size = 0x4, scoped, tag = 'scoped memory for tpu_custom_call.1']
    #allocation12 [shape = 'u8[8192]{0}', space=vmem, size = 0x2000, scoped, tag = 'input window, operand 6, single buffered']
    #allocation13 [shape = 'u8[524288]{0}', space=vmem, size = 0x80000, scoped, tag = 'input window, operand 7, single buffered']
    #allocation14 [shape = 's32[1]{0}', space=sflag, size = 0x4, scoped, tag = 'scoped memory for tpu_custom_call.1']
    #allocation15 [shape = 'u8[4096]{0}', space=vmem, size = 0x1000, scoped, tag = 'output window, operand 0, single buffered']
    %15 = vsyncpa [#allocation5], 0
    %16 = vsyncpa [#allocation8], 0
    %17 = vsyncpa [#allocation11], 0
    %18 = vsyncpa [#allocation14], 0
    %19 = vsyncpa [#allocation6], 0
    // Predicated region
    $region2: #{tpu_custom_call.1} parent=1 // pred_check
      _
    $region3: #{tpu_custom_call.1} parent=1 // pred_check_branch
      %21 = sbr.rel (0) target = $region5
    $region4: #{tpu_custom_call.1} parent=1 // pred_region
      %s23 = ssub.s32 128, 128
      %24 = vsyncadd [#allocation5], %s23
      %s26 = sshll.u32 [#allocation4], 4
      %s27 = int_to_ptr.vmem [resolvable:$true] %s26
      %29 = dma.hbm_to_vmem [thread:$0]  %s1, 128, %s27, [#allocation5]
    $region5: #{tpu_custom_call.1} parent=1 // pred_fallthru
      _
    // Predicated region
    $region6: #{tpu_custom_call.1} parent=1 // pred_check
      _
    $region7: #{tpu_custom_call.1} parent=1 // pred_check_branch
      %31 = sbr.rel (0) target = $region9
    $region8: #{tpu_custom_call.1} parent=1 // pred_region
      %s33 = ssub.s32 128, 128
      %34 = vsyncadd [#allocation8], %s33
      %s36 = sshll.u32 [#allocation7], 4
      %s37 = int_to_ptr.vmem [resolvable:$true] %s36
      %39 = dma.hbm_to_vmem [thread:$0]  %s2, 128, %s37, [#allocation8]
    $region9: #{tpu_custom_call.1} parent=1 // pred_fallthru
      _
    // Predicated region
    $region10: #{tpu_custom_call.1} parent=1 // pred_check
      _
    $region11: #{tpu_custom_call.1} parent=1 // pred_check_branch
      %41 = sbr.rel (0) target = $region13
    $region12: #{tpu_custom_call.1} parent=1 // pred_region
      %s43 = ssub.s32 512, 512
      %44 = vsyncadd [#allocation8], %s43
      %s45 = sshll.u32 [#allocation9], 4
      %s46 = int_to_ptr.vmem [resolvable:$true] %s45
      %51 = dma.hbm_to_vmem [thread:$0]  %s3, 512, %s46, [#allocation8], 128, 128, 8
    $region13: #{tpu_custom_call.1} parent=1 // pred_fallthru
      _
    // Predicated region
    $region14: #{tpu_custom_call.1} parent=1 // pred_check
      _
    $region15: #{tpu_custom_call.1} parent=1 // pred_check_branch
      %53 = sbr.rel (0) target = $region17
    $region16: #{tpu_custom_call.1} parent=1 // pred_region
      _
    $region17: #{tpu_custom_call.1} parent=1 // pred_fallthru
      _
    // Predicated region
    $region18: #{tpu_custom_call.1} parent=1 // pred_check
      _
    $region19: #{tpu_custom_call.1} parent=1 // pred_check_branch
      %55 = sbr.rel (0) target = $region21
    $region20: #{tpu_custom_call.1} parent=1 // pred_region
      %s57 = ssub.s32 32768, 32768
      %58 = vsyncadd [#allocation11], %s57
      %s59 = sshll.u32 [#allocation10], 4
      %s60 = int_to_ptr.vmem [resolvable:$true] %s59
      %65 = dma.hbm_to_vmem [thread:$0]  %s5, 32768, %s60, [#allocation11], 1024, 1024, 64
    $region21: #{tpu_custom_call.1} parent=1 // pred_fallthru
      _
    // Predicated region
    $region22: #{tpu_custom_call.1} parent=1 // pred_check
      _
    $region23: #{tpu_custom_call.1} parent=1 // pred_check_branch
      %67 = sbr.rel (0) target = $region25
    $region24: #{tpu_custom_call.1} parent=1 // pred_region
      %s69 = ssub.s32 256, 256
      %70 = vsyncadd [#allocation11], %s69
      %s72 = sshll.u32 [#allocation12], 4
      %s73 = int_to_ptr.vmem [resolvable:$true] %s72
      %75 = dma.hbm_to_vmem [thread:$0]  %s6, 256, %s73, [#allocation11]
    $region25: #{tpu_custom_call.1} parent=1 // pred_fallthru
      _
    // Predicated region
    $region26: #{tpu_custom_call.1} parent=1 // pred_check
      _
    $region27: #{tpu_custom_call.1} parent=1 // pred_check_branch
      %77 = sbr.rel (0) target = $region29
    $region28: #{tpu_custom_call.1} parent=1 // pred_region
      %s79 = ssub.s32 16384, 16384
      %80 = vsyncadd [#allocation14], %s79
      %s81 = sshll.u32 [#allocation13], 4
      %s82 = int_to_ptr.vmem [resolvable:$true] %s81
      %87 = dma.hbm_to_vmem [thread:$0]  %s7, 16384, %s82, [#allocation14], 64, 64, 4
    $region29: #{tpu_custom_call.1} parent=1 // pred_fallthru
      _
    // Predicated region
    $region30: #{tpu_custom_call.1} parent=1 // pred_check
      _
    $region31: #{tpu_custom_call.1} parent=1 // pred_check_branch
      %89 = sbr.rel (0) target = $region33
    $region32: #{tpu_custom_call.1} parent=1 // pred_region
      _
    $region33: #{tpu_custom_call.1} parent=1 // pred_fallthru
      _
    // Predicated region
    $region34: #{tpu_custom_call.1} parent=1 // pred_check
      _
    $region35: #{tpu_custom_call.1} parent=1 // pred_check_branch
      %91 = sbr.rel (0) target = $region37
    $region36: #{tpu_custom_call.1} parent=1 // pred_region
      %92 = dma.done [#allocation5], 128
    $region37: #{tpu_custom_call.1} parent=1 // pred_fallthru
      _
    // Predicated region
    $region38: #{tpu_custom_call.1} parent=1 // pred_check
      _
    $region39: #{tpu_custom_call.1} parent=1 // pred_check_branch
      %94 = sbr.rel (0) target = $region41
    $region40: #{tpu_custom_call.1} parent=1 // pred_region
      %95 = dma.done [#allocation8], 128
    $region41: #{tpu_custom_call.1} parent=1 // pred_fallthru
      _
    // Predicated region
    $region42: #{tpu_custom_call.1} parent=1 // pred_check
      _
    $region43: #{tpu_custom_call.1} parent=1 // pred_check_branch
      %97 = sbr.rel (0) target = $region45
    $region44: #{tpu_custom_call.1} parent=1 // pred_region
      %98 = dma.done [#allocation8], 512
    $region45: #{tpu_custom_call.1} parent=1 // pred_fallthru
      _
    // Predicated region
    $region46: #{tpu_custom_call.1} parent=1 // pred_check
      _
    $region47: #{tpu_custom_call.1} parent=1 // pred_check_branch
      %100 = sbr.rel (0) target = $region49
    $region48: #{tpu_custom_call.1} parent=1 // pred_region
      %101 = dma.done [#allocation11], 32768
    $region49: #{tpu_custom_call.1} parent=1 // pred_fallthru
      _
    // Predicated region
    $region50: #{tpu_custom_call.1} parent=1 // pred_check
      _
    $region51: #{tpu_custom_call.1} parent=1 // pred_check_branch
      %103 = sbr.rel (0) target = $region53
    $region52: #{tpu_custom_call.1} parent=1 // pred_region
      %104 = dma.done [#allocation11], 256
    $region53: #{tpu_custom_call.1} parent=1 // pred_fallthru
      _
    // Predicated region
    $region54: #{tpu_custom_call.1} parent=1 // pred_check
      _
    $region55: #{tpu_custom_call.1} parent=1 // pred_check_branch
      %106 = sbr.rel (0) target = $region57
    $region56: #{tpu_custom_call.1} parent=1 // pred_region
      %107 = dma.done [#allocation14], 16384
    $region57: #{tpu_custom_call.1} parent=1 // pred_fallthru
      _
    %v109 = vld [vmem:[#allocation4] sm:$0xff]
    %v110 = vld [vmem:[#allocation7] sm:$0xff]
    %v111 = vadd.f32 %v109, %v110
    %v112 = vpack.c.bf16 %v111, %v111
    %v113 = vld [vmem:[#allocation9] sm:$0xff]
    %v114 = vld [vmem:[#allocation9 + $0x8] sm:$0xff]
    %v115 = vld [vmem:[#allocation9 + $0x10] sm:$0xff]
    %v116 = vld [vmem:[#allocation9 + $0x18] sm:$0xff]
    %v117 = vld [vmem:[%s4] sm:$0x3]
    %v119 = vlaneseq
    %v120 = vshrl.u32 %v119, 7
    %v121 = vsub.s32 0, %v120
    %v122 = vrot.slane %v117, %v121
    %v123 = vlaneseq
    %v124 = vshrl.u32 %v123, 7
    %v125 = vsub.s32 1, %v124
    %v126 = vrot.slane %v117, %v125
    %v133 = vunpack.c.l.b16 %v113
    %v134 = vunpack.c.h.b16 %v113
    %v135 = vunpack.c.l.b16 %v114
    %v136 = vunpack.c.h.b16 %v114
    %v137 = vunpack.c.l.b16 %v115
    %v138 = vunpack.c.h.b16 %v115
    %v139 = vunpack.c.l.b16 %v116
    %v140 = vunpack.c.h.b16 %v116
    %v141 = vpack.c.b16 %v135, %v133
    %v142 = vpack.c.b16 %v136, %v134
    %v143 = vpack.c.b16 %v139, %v137
    %v144 = vpack.c.b16 %v140, %v138
    %vm149 = vcmask 261120
    %v151 = vsel %vm149, %v112, 0
    %153 = vmatprep.subr.bf16.mxu0 0
    %154 = vmatpush1.bf16.msra.mxu0 0
    %155 = vmatprep.subr.bf16.mxu0 0
    %156 = vmatpush1.bf16.msra.mxu0 0
    %157 = vmatprep.subr.bf16.mxu0 0
    %158 = vmatpush1.bf16.msra.mxu0 0
    %159 = vmatprep.subr.bf16.mxu0 0
    %160 = vmatpush1.bf16.msra.mxu0 0
    %161 = vmatprep.subr.bf16.mxu0 0
    %162 = vmatpush1.bf16.msra.mxu0 0
    %163 = vmatprep.subr.bf16.mxu0 0
    %164 = vmatpush1.bf16.msra.mxu0 0
    %165 = vmatprep.subr.bf16.mxu0 %v144
    %166 = vmatpush1.bf16.msra.mxu0 %v143
    %167 = vmatprep.subr.bf16.mxu0 %v142
    %168 = vmatpush1.bf16.msra.mxu0 %v141
    %169 = vmatprep.subr.bf16.mxu0 0
    %170 = vmatpush2.bf16.msra.mxu0 0
    %171 = vmatprep.subr.bf16.mxu0 0
    %172 = vmatpush2.bf16.msra.mxu0 0
    %173 = vmatprep.subr.bf16.mxu0 0
    %174 = vmatpush2.bf16.msra.mxu0 0
    %175 = vmatprep.subr.bf16.mxu0 0
    %176 = vmatpush2.bf16.msra.mxu0 0
    %177 = vmatprep.subr.bf16.mxu0 0
    %178 = vmatpush2.bf16.msra.mxu0 0
    %179 = vmatprep.subr.bf16.mxu0 0
    %180 = vmatpush2.bf16.msra.mxu0 0
    %181 = vmatprep.subr.bf16.mxu0 0
    %182 = vmatpush2.bf16.msra.mxu0 0
    %183 = vmatprep.subr.bf16.mxu0 0
    %184 = vmatpush2.bf16.msra.mxu0 0
    %185 = vmatprep.mubr.bf16.mxu0 0
    %186 = vmatmul.mubr.bf16.gmra.mxu0 %v151
    %v187 = vpop.f32.mrf.mxu0
    %v188 = vadd.f32 %v122, %v187
    %v189 = vpop.f32.mrf.mxu0
    %v190 = vadd.f32 %v126, %v189
    %v191 = vpop.f32.mrf.mxu0
    %v192 = vpop.f32.mrf.mxu0
    %193 = vdwg.mxu0
    %v194 = vpack.c.bf16 %v188, %v188
    %v195 = vpack.c.bf16 %v190, %v190
    %v196 = vmax.bf16 %v194, 0
    %v197 = vmax.bf16 %v195, 0
    %v198 = vld [vmem:[#allocation10] sm:$0xff]
    %v199 = vld [vmem:[#allocation10 + $0x8] sm:$0xff]
    %v200 = vld [vmem:[#allocation10 + $0x10] sm:$0xff]
    %v201 = vld [vmem:[#allocation10 + $0x18] sm:$0xff]
    %v202 = vld [vmem:[#allocation10 + $0x20] sm:$0xff]
    %v203 = vld [vmem:[#allocation10 + $0x28] sm:$0xff]
    %v204 = vld [vmem:[#allocation10 + $0x30] sm:$0xff]
    %v205 = vld [vmem:[#allocation10 + $0x38] sm:$0xff]
    %v206 = vld [vmem:[#allocation10 + $0x40] sm:$0xff]
    %v207 = vld [vmem:[#allocation10 + $0x48] sm:$0xff]
    %v208 = vld [vmem:[#allocation10 + $0x50] sm:$0xff]
    %v209 = vld [vmem:[#allocation10 + $0x58] sm:$0xff]
    %v210 = vld [vmem:[#allocation10 + $0x60] sm:$0xff]
    %v211 = vld [vmem:[#allocation10 + $0x68] sm:$0xff]
    %v212 = vld [vmem:[#allocation10 + $0x70] sm:$0xff]
    %v213 = vld [vmem:[#allocation10 + $0x78] sm:$0xff]
    %v214 = vld [vmem:[#allocation10 + $0x80] sm:$0xff]
    %v215 = vld [vmem:[#allocation10 + $0x88] sm:$0xff]
    %v216 = vld [vmem:[#allocation10 + $0x90] sm:$0xff]
    %v217 = vld [vmem:[#allocation10 + $0x98] sm:$0xff]
    %v218 = vld [vmem:[#allocation10 + $0xa0] sm:$0xff]
    %v219 = vld [vmem:[#allocation10 + $0xa8] sm:$0xff]
    %v220 = vld [vmem:[#allocation10 + $0xb0] sm:$0xff]
    %v221 = vld [vmem:[#allocation10 + $0xb8] sm:$0xff]
    %v222 = vld [vmem:[#allocation10 + $0xc0] sm:$0xff]
    %v223 = vld [vmem:[#allocation10 + $0xc8] sm:$0xff]
    %v224 = vld [vmem:[#allocation10 + $0xd0] sm:$0xff]
    %v225 = vld [vmem:[#allocation10 + $0xd8] sm:$0xff]
    %v226 = vld [vmem:[#allocation10 + $0xe0] sm:$0xff]
    %v227 = vld [vmem:[#allocation10 + $0xe8] sm:$0xff]
    %v228 = vld [vmem:[#allocation10 + $0xf0] sm:$0xff]
    %v229 = vld [vmem:[#allocation10 + $0xf8] sm:$0xff]
    %v230 = vld [vmem:[#allocation10 + $0x100] sm:$0xff]
    %v231 = vld [vmem:[#allocation10 + $0x108] sm:$0xff]
    %v232 = vld [vmem:[#allocation10 + $0x110] sm:$0xff]
    %v233 = vld [vmem:[#allocation10 + $0x118] sm:$0xff]
    %v234 = vld [vmem:[#allocation10 + $0x120] sm:$0xff]
    %v235 = vld [vmem:[#allocation10 + $0x128] sm:$0xff]
    %v236 = vld [vmem:[#allocation10 + $0x130] sm:$0xff]
    %v237 = vld [vmem:[#allocation10 + $0x138] sm:$0xff]
    %v238 = vld [vmem:[#allocation10 + $0x140] sm:$0xff]
    %v239 = vld [vmem:[#allocation10 + $0x148] sm:$0xff]
    %v240 = vld [vmem:[#allocation10 + $0x150] sm:$0xff]
    %v241 = vld [vmem:[#allocation10 + $0x158] sm:$0xff]
    %v242 = vld [vmem:[#allocation10 + $0x160] sm:$0xff]
    %v243 = vld [vmem:[#allocation10 + $0x168] sm:$0xff]
    %v244 = vld [vmem:[#allocation10 + $0x170] sm:$0xff]
    %v245 = vld [vmem:[#allocation10 + $0x178] sm:$0xff]
    %v246 = vld [vmem:[#allocation10 + $0x180] sm:$0xff]
    %v247 = vld [vmem:[#allocation10 + $0x188] sm:$0xff]
    %v248 = vld [vmem:[#allocation10 + $0x190] sm:$0xff]
    %v249 = vld [vmem:[#allocation10 + $0x198] sm:$0xff]
    %v250 = vld [vmem:[#allocation10 + $0x1a0] sm:$0xff]
    %v251 = vld [vmem:[#allocation10 + $0x1a8] sm:$0xff]
    %v252 = vld [vmem:[#allocation10 + $0x1b0] sm:$0xff]
    %v253 = vld [vmem:[#allocation10 + $0x1b8] sm:$0xff]
    %v254 = vld [vmem:[#allocation10 + $0x1c0] sm:$0xff]
    %v255 = vld [vmem:[#allocation10 + $0x1c8] sm:$0xff]
    %v256 = vld [vmem:[#allocation10 + $0x1d0] sm:$0xff]
    %v257 = vld [vmem:[#allocation10 + $0x1d8] sm:$0xff]
    %v258 = vld [vmem:[#allocation10 + $0x1e0] sm:$0xff]
    %v259 = vld [vmem:[#allocation10 + $0x1e8] sm:$0xff]
    %v260 = vld [vmem:[#allocation10 + $0x1f0] sm:$0xff]
    %v261 = vld [vmem:[#allocation10 + $0x1f8] sm:$0xff]
    %v262 = vld [vmem:[#allocation10 + $0x200] sm:$0xff]
    %v263 = vld [vmem:[#allocation10 + $0x208] sm:$0xff]
    %v264 = vld [vmem:[#allocation10 + $0x210] sm:$0xff]
    %v265 = vld [vmem:[#allocation10 + $0x218] sm:$0xff]
    %v266 = vld [vmem:[#allocation10 + $0x220] sm:$0xff]
    %v267 = vld [vmem:[#allocation10 + $0x228] sm:$0xff]
    %v268 = vld [vmem:[#allocation10 + $0x230] sm:$0xff]
    %v269 = vld [vmem:[#allocation10 + $0x238] sm:$0xff]
    %v270 = vld [vmem:[#allocation10 + $0x240] sm:$0xff]
    %v271 = vld [vmem:[#allocation10 + $0x248] sm:$0xff]
    %v272 = vld [vmem:[#allocation10 + $0x250] sm:$0xff]
    %v273 = vld [vmem:[#allocation10 + $0x258] sm:$0xff]
    %v274 = vld [vmem:[#allocation10 + $0x260] sm:$0xff]
    %v275 = vld [vmem:[#allocation10 + $0x268] sm:$0xff]
    %v276 = vld [vmem:[#allocation10 + $0x270] sm:$0xff]
    %v277 = vld [vmem:[#allocation10 + $0x278] sm:$0xff]
    %v278 = vld [vmem:[#allocation10 + $0x280] sm:$0xff]
    %v279 = vld [vmem:[#allocation10 + $0x288] sm:$0xff]
    %v280 = vld [vmem:[#allocation10 + $0x290] sm:$0xff]
    %v281 = vld [vmem:[#allocation10 + $0x298] sm:$0xff]
    %v282 = vld [vmem:[#allocation10 + $0x2a0] sm:$0xff]
    %v283 = vld [vmem:[#allocation10 + $0x2a8] sm:$0xff]
    %v284 = vld [vmem:[#allocation10 + $0x2b0] sm:$0xff]
    %v285 = vld [vmem:[#allocation10 + $0x2b8] sm:$0xff]
    %v286 = vld [vmem:[#allocation10 + $0x2c0] sm:$0xff]
    %v287 = vld [vmem:[#allocation10 + $0x2c8] sm:$0xff]
    %v288 = vld [vmem:[#allocation10 + $0x2d0] sm:$0xff]
    %v289 = vld [vmem:[#allocation10 + $0x2d8] sm:$0xff]
    %v290 = vld [vmem:[#allocation10 + $0x2e0] sm:$0xff]
    %v291 = vld [vmem:[#allocation10 + $0x2e8] sm:$0xff]
    %v292 = vld [vmem:[#allocation10 + $0x2f0] sm:$0xff]
    %v293 = vld [vmem:[#allocation10 + $0x2f8] sm:$0xff]
    %v294 = vld [vmem:[#allocation10 + $0x300] sm:$0xff]
    %v295 = vld [vmem:[#allocation10 + $0x308] sm:$0xff]
    %v296 = vld [vmem:[#allocation10 + $0x310] sm:$0xff]
    %v297 = vld [vmem:[#allocation10 + $0x318] sm:$0xff]
    %v298 = vld [vmem:[#allocation10 + $0x320] sm:$0xff]
    %v299 = vld [vmem:[#allocation10 + $0x328] sm:$0xff]
    %v300 = vld [vmem:[#allocation10 + $0x330] sm:$0xff]
    %v301 = vld [vmem:[#allocation10 + $0x338] sm:$0xff]
    %v302 = vld [vmem:[#allocation10 + $0x340] sm:$0xff]
    %v303 = vld [vmem:[#allocation10 + $0x348] sm:$0xff]
    %v304 = vld [vmem:[#allocation10 + $0x350] sm:$0xff]
    %v305 = vld [vmem:[#allocation10 + $0x358] sm:$0xff]
    %v306 = vld [vmem:[#allocation10 + $0x360] sm:$0xff]
    %v307 = vld [vmem:[#allocation10 + $0x368] sm:$0xff]
    %v308 = vld [vmem:[#allocation10 + $0x370] sm:$0xff]
    %v309 = vld [vmem:[#allocation10 + $0x378] sm:$0xff]
    %v310 = vld [vmem:[#allocation10 + $0x380] sm:$0xff]
    %v311 = vld [vmem:[#allocation10 + $0x388] sm:$0xff]
    %v312 = vld [vmem:[#allocation10 + $0x390] sm:$0xff]
    %v313 = vld [vmem:[#allocation10 + $0x398] sm:$0xff]
    %v314 = vld [vmem:[#allocation10 + $0x3a0] sm:$0xff]
    %v315 = vld [vmem:[#allocation10 + $0x3a8] sm:$0xff]
    %v316 = vld [vmem:[#allocation10 + $0x3b0] sm:$0xff]
    %v317 = vld [vmem:[#allocation10 + $0x3b8] sm:$0xff]
    %v318 = vld [vmem:[#allocation10 + $0x3c0] sm:$0xff]
    %v319 = vld [vmem:[#allocation10 + $0x3c8] sm:$0xff]
    %v320 = vld [vmem:[#allocation10 + $0x3d0] sm:$0xff]
    %v321 = vld [vmem:[#allocation10 + $0x3d8] sm:$0xff]
    %v322 = vld [vmem:[#allocation10 + $0x3e0] sm:$0xff]
    %v323 = vld [vmem:[#allocation10 + $0x3e8] sm:$0xff]
    %v324 = vld [vmem:[#allocation10 + $0x3f0] sm:$0xff]
    %v325 = vld [vmem:[#allocation10 + $0x3f8] sm:$0xff]
    %v326 = vld [vmem:[#allocation10 + $0x400] sm:$0xff]
    %v327 = vld [vmem:[#allocation10 + $0x408] sm:$0xff]
    %v328 = vld [vmem:[#allocation10 + $0x410] sm:$0xff]
    %v329 = vld [vmem:[#allocation10 + $0x418] sm:$0xff]
    %v330 = vld [vmem:[#allocation10 + $0x420] sm:$0xff]
    %v331 = vld [vmem:[#allocation10 + $0x428] sm:$0xff]
    %v332 = vld [vmem:[#allocation10 + $0x430] sm:$0xff]
    %v333 = vld [vmem:[#allocation10 + $0x438] sm:$0xff]
    %v334 = vld [vmem:[#allocation10 + $0x440] sm:$0xff]
    %v335 = vld [vmem:[#allocation10 + $0x448] sm:$0xff]
    %v336 = vld [vmem:[#allocation10 + $0x450] sm:$0xff]
    %v337 = vld [vmem:[#allocation10 + $0x458] sm:$0xff]
    %v338 = vld [vmem:[#allocation10 + $0x460] sm:$0xff]
    %v339 = vld [vmem:[#allocation10 + $0x468] sm:$0xff]
    %v340 = vld [vmem:[#allocation10 + $0x470] sm:$0xff]
    %v341 = vld [vmem:[#allocation10 + $0x478] sm:$0xff]
    %v342 = vld [vmem:[#allocation10 + $0x480] sm:$0xff]
    %v343 = vld [vmem:[#allocation10 + $0x488] sm:$0xff]
    %v344 = vld [vmem:[#allocation10 + $0x490] sm:$0xff]
    %v345 = vld [vmem:[#allocation10 + $0x498] sm:$0xff]
    %v346 = vld [vmem:[#allocation10 + $0x4a0] sm:$0xff]
    %v347 = vld [vmem:[#allocation10 + $0x4a8] sm:$0xff]
    %v348 = vld [vmem:[#allocation10 + $0x4b0] sm:$0xff]
    %v349 = vld [vmem:[#allocation10 + $0x4b8] sm:$0xff]
    %v350 = vld [vmem:[#allocation10 + $0x4c0] sm:$0xff]
    %v351 = vld [vmem:[#allocation10 + $0x4c8] sm:$0xff]
    %v352 = vld [vmem:[#allocation10 + $0x4d0] sm:$0xff]
    %v353 = vld [vmem:[#allocation10 + $0x4d8] sm:$0xff]
    %v354 = vld [vmem:[#allocation10 + $0x4e0] sm:$0xff]
    %v355 = vld [vmem:[#allocation10 + $0x4e8] sm:$0xff]
    %v356 = vld [vmem:[#allocation10 + $0x4f0] sm:$0xff]
    %v357 = vld [vmem:[#allocation10 + $0x4f8] sm:$0xff]
    %v358 = vld [vmem:[#allocation10 + $0x500] sm:$0xff]
    %v359 = vld [vmem:[#allocation10 + $0x508] sm:$0xff]
    %v360 = vld [vmem:[#allocation10 + $0x510] sm:$0xff]
    %v361 = vld [vmem:[#allocation10 + $0x518] sm:$0xff]
    %v362 = vld [vmem:[#allocation10 + $0x520] sm:$0xff]
    %v363 = vld [vmem:[#allocation10 + $0x528] sm:$0xff]
    %v364 = vld [vmem:[#allocation10 + $0x530] sm:$0xff]
    %v365 = vld [vmem:[#allocation10 + $0x538] sm:$0xff]
    %v366 = vld [vmem:[#allocation10 + $0x540] sm:$0xff]
    %v367 = vld [vmem:[#allocation10 + $0x548] sm:$0xff]
    %v368 = vld [vmem:[#allocation10 + $0x550] sm:$0xff]
    %v369 = vld [vmem:[#allocation10 + $0x558] sm:$0xff]
    %v370 = vld [vmem:[#allocation10 + $0x560] sm:$0xff]
    %v371 = vld [vmem:[#allocation10 + $0x568] sm:$0xff]
    %v372 = vld [vmem:[#allocation10 + $0x570] sm:$0xff]
    %v373 = vld [vmem:[#allocation10 + $0x578] sm:$0xff]
    %v374 = vld [vmem:[#allocation10 + $0x580] sm:$0xff]
    %v375 = vld [vmem:[#allocation10 + $0x588] sm:$0xff]
    %v376 = vld [vmem:[#allocation10 + $0x590] sm:$0xff]
    %v377 = vld [vmem:[#allocation10 + $0x598] sm:$0xff]
    %v378 = vld [vmem:[#allocation10 + $0x5a0] sm:$0xff]
    %v379 = vld [vmem:[#allocation10 + $0x5a8] sm:$0xff]
    %v380 = vld [vmem:[#allocation10 + $0x5b0] sm:$0xff]
    %v381 = vld [vmem:[#allocation10 + $0x5b8] sm:$0xff]
    %v382 = vld [vmem:[#allocation10 + $0x5c0] sm:$0xff]
    %v383 = vld [vmem:[#allocation10 + $0x5c8] sm:$0xff]
    %v384 = vld [vmem:[#allocation10 + $0x5d0] sm:$0xff]
    %v385 = vld [vmem:[#allocation10 + $0x5d8] sm:$0xff]
    %v386 = vld [vmem:[#allocation10 + $0x5e0] sm:$0xff]
    %v387 = vld [vmem:[#allocation10 + $0x5e8] sm:$0xff]
    %v388 = vld [vmem:[#allocation10 + $0x5f0] sm:$0xff]
    %v389 = vld [vmem:[#allocation10 + $0x5f8] sm:$0xff]
    %v390 = vld [vmem:[#allocation10 + $0x600] sm:$0xff]
    %v391 = vld [vmem:[#allocation10 + $0x608] sm:$0xff]
    %v392 = vld [vmem:[#allocation10 + $0x610] sm:$0xff]
    %v393 = vld [vmem:[#allocation10 + $0x618] sm:$0xff]
    %v394 = vld [vmem:[#allocation10 + $0x620] sm:$0xff]
    %v395 = vld [vmem:[#allocation10 + $0x628] sm:$0xff]
    %v396 = vld [vmem:[#allocation10 + $0x630] sm:$0xff]
    %v397 = vld [vmem:[#allocation10 + $0x638] sm:$0xff]
    %v398 = vld [vmem:[#allocation10 + $0x640] sm:$0xff]
    %v399 = vld [vmem:[#allocation10 + $0x648] sm:$0xff]
    %v400 = vld [vmem:[#allocation10 + $0x650] sm:$0xff]
    %v401 = vld [vmem:[#allocation10 + $0x658] sm:$0xff]
    %v402 = vld [vmem:[#allocation10 + $0x660] sm:$0xff]
    %v403 = vld [vmem:[#allocation10 + $0x668] sm:$0xff]
    %v404 = vld [vmem:[#allocation10 + $0x670] sm:$0xff]
    %v405 = vld [vmem:[#allocation10 + $0x678] sm:$0xff]
    %v406 = vld [vmem:[#allocation10 + $0x680] sm:$0xff]
    %v407 = vld [vmem:[#allocation10 + $0x688] sm:$0xff]
    %v408 = vld [vmem:[#allocation10 + $0x690] sm:$0xff]
    %v409 = vld [vmem:[#allocation10 + $0x698] sm:$0xff]
    %v410 = vld [vmem:[#allocation10 + $0x6a0] sm:$0xff]
    %v411 = vld [vmem:[#allocation10 + $0x6a8] sm:$0xff]
    %v412 = vld [vmem:[#allocation10 + $0x6b0] sm:$0xff]
    %v413 = vld [vmem:[#allocation10 + $0x6b8] sm:$0xff]
    %v414 = vld [vmem:[#allocation10 + $0x6c0] sm:$0xff]
    %v415 = vld [vmem:[#allocation10 + $0x6c8] sm:$0xff]
    %v416 = vld [vmem:[#allocation10 + $0x6d0] sm:$0xff]
    %v417 = vld [vmem:[#allocation10 + $0x6d8] sm:$0xff]
    %v418 = vld [vmem:[#allocation10 + $0x6e0] sm:$0xff]
    %v419 = vld [vmem:[#allocation10 + $0x6e8] sm:$0xff]
    %v420 = vld [vmem:[#allocation10 + $0x6f0] sm:$0xff]
    %v421 = vld [vmem:[#allocation10 + $0x6f8] sm:$0xff]
    %v422 = vld [vmem:[#allocation10 + $0x700] sm:$0xff]
    %v423 = vld [vmem:[#allocation10 + $0x708] sm:$0xff]
    %v424 = vld [vmem:[#allocation10 + $0x710] sm:$0xff]
    %v425 = vld [vmem:[#allocation10 + $0x718] sm:$0xff]
    %v426 = vld [vmem:[#allocation10 + $0x720] sm:$0xff]
    %v427 = vld [vmem:[#allocation10 + $0x728] sm:$0xff]
    %v428 = vld [vmem:[#allocation10 + $0x730] sm:$0xff]
    %v429 = vld [vmem:[#allocation10 + $0x738] sm:$0xff]
    %v430 = vld [vmem:[#allocation10 + $0x740] sm:$0xff]
    %v431 = vld [vmem:[#allocation10 + $0x748] sm:$0xff]
    %v432 = vld [vmem:[#allocation10 + $0x750] sm:$0xff]
    %v433 = vld [vmem:[#allocation10 + $0x758] sm:$0xff]
    %v434 = vld [vmem:[#allocation10 + $0x760] sm:$0xff]
    %v435 = vld [vmem:[#allocation10 + $0x768] sm:$0xff]
    %v436 = vld [vmem:[#allocation10 + $0x770] sm:$0xff]
    %v437 = vld [vmem:[#allocation10 + $0x778] sm:$0xff]
    %v438 = vld [vmem:[#allocation10 + $0x780] sm:$0xff]
    %v439 = vld [vmem:[#allocation10 + $0x788] sm:$0xff]
    %v440 = vld [vmem:[#allocation10 + $0x790] sm:$0xff]
    %v441 = vld [vmem:[#allocation10 + $0x798] sm:$0xff]
    %v442 = vld [vmem:[#allocation10 + $0x7a0] sm:$0xff]
    %v443 = vld [vmem:[#allocation10 + $0x7a8] sm:$0xff]
    %v444 = vld [vmem:[#allocation10 + $0x7b0] sm:$0xff]
    %v445 = vld [vmem:[#allocation10 + $0x7b8] sm:$0xff]
    %v446 = vld [vmem:[#allocation10 + $0x7c0] sm:$0xff]
    %v447 = vld [vmem:[#allocation10 + $0x7c8] sm:$0xff]
    %v448 = vld [vmem:[#allocation10 + $0x7d0] sm:$0xff]
    %v449 = vld [vmem:[#allocation10 + $0x7d8] sm:$0xff]
    %v450 = vld [vmem:[#allocation10 + $0x7e0] sm:$0xff]
    %v451 = vld [vmem:[#allocation10 + $0x7e8] sm:$0xff]
    %v452 = vld [vmem:[#allocation10 + $0x7f0] sm:$0xff]
    %v453 = vld [vmem:[#allocation10 + $0x7f8] sm:$0xff]
    %v454 = vld [vmem:[#allocation12] sm:$0xff]
    %v455 = vld [vmem:[#allocation12 + $0x8] sm:$0xff]
    %v458 = vlaneseq
    %v459 = vshrl.u32 %v458, 7
    %v460 = vsub.s32 0, %v459
    %v461 = vrot.slane %v454, %v460
    %v462 = vlaneseq
    %v463 = vshrl.u32 %v462, 7
    %v464 = vsub.s32 1, %v463
    %v465 = vrot.slane %v454, %v464
    %v466 = vlaneseq
    %v467 = vshrl.u32 %v466, 7
    %v468 = vsub.s32 2, %v467
    %v469 = vrot.slane %v454, %v468
    %v470 = vlaneseq
    %v471 = vshrl.u32 %v470, 7
    %v472 = vsub.s32 3, %v471
    %v473 = vrot.slane %v454, %v472
    %v474 = vlaneseq
    %v475 = vshrl.u32 %v474, 7
    %v476 = vsub.s32 4, %v475
    %v477 = vrot.slane %v454, %v476
    %v478 = vlaneseq
    %v479 = vshrl.u32 %v478, 7
    %v480 = vsub.s32 5, %v479
    %v481 = vrot.slane %v454, %v480
    %v482 = vlaneseq
    %v483 = vshrl.u32 %v482, 7
    %v484 = vsub.s32 6, %v483
    %v485 = vrot.slane %v454, %v484
    %v486 = vlaneseq
    %v487 = vshrl.u32 %v486, 7
    %v488 = vsub.s32 7, %v487
    %v489 = vrot.slane %v454, %v488
    %v490 = vlaneseq
    %v491 = vshrl.u32 %v490, 7
    %v492 = vsub.s32 0, %v491
    %v493 = vrot.slane %v455, %v492
    %v494 = vlaneseq
    %v495 = vshrl.u32 %v494, 7
    %v496 = vsub.s32 1, %v495
    %v497 = vrot.slane %v455, %v496
    %v498 = vlaneseq
    %v499 = vshrl.u32 %v498, 7
    %v500 = vsub.s32 2, %v499
    %v501 = vrot.slane %v455, %v500
    %v502 = vlaneseq
    %v503 = vshrl.u32 %v502, 7
    %v504 = vsub.s32 3, %v503
    %v505 = vrot.slane %v455, %v504
    %v506 = vlaneseq
    %v507 = vshrl.u32 %v506, 7
    %v508 = vsub.s32 4, %v507
    %v509 = vrot.slane %v455, %v508
    %v510 = vlaneseq
    %v511 = vshrl.u32 %v510, 7
    %v512 = vsub.s32 5, %v511
    %v513 = vrot.slane %v455, %v512
    %v514 = vlaneseq
    %v515 = vshrl.u32 %v514, 7
    %v516 = vsub.s32 6, %v515
    %v517 = vrot.slane %v455, %v516
    %v518 = vlaneseq
    %v519 = vshrl.u32 %v518, 7
    %v520 = vsub.s32 7, %v519
    %v521 = vrot.slane %v455, %v520
    %v794 = vunpack.c.l.b16 %v198
    %v795 = vunpack.c.h.b16 %v198
    %v796 = vunpack.c.l.b16 %v199
    %v797 = vunpack.c.h.b16 %v199
    %v798 = vunpack.c.l.b16 %v200
    %v799 = vunpack.c.h.b16 %v200
    %v800 = vunpack.c.l.b16 %v201
    %v801 = vunpack.c.h.b16 %v201
    %v802 = vunpack.c.l.b16 %v202
    %v803 = vunpack.c.h.b16 %v202
    %v804 = vunpack.c.l.b16 %v203
    %v805 = vunpack.c.h.b16 %v203
    %v806 = vunpack.c.l.b16 %v204
    %v807 = vunpack.c.h.b16 %v204
    %v808 = vunpack.c.l.b16 %v205
    %v809 = vunpack.c.h.b16 %v205
    %v810 = vunpack.c.l.b16 %v206
    %v811 = vunpack.c.h.b16 %v206
    %v812 = vunpack.c.l.b16 %v207
    %v813 = vunpack.c.h.b16 %v207
    %v814 = vunpack.c.l.b16 %v208
    %v815 = vunpack.c.h.b16 %v208
    %v816 = vunpack.c.l.b16 %v209
    %v817 = vunpack.c.h.b16 %v209
    %v818 = vunpack.c.l.b16 %v210
    %v819 = vunpack.c.h.b16 %v210
    %v820 = vunpack.c.l.b16 %v211
    %v821 = vunpack.c.h.b16 %v211
    %v822 = vunpack.c.l.b16 %v212
    %v823 = vunpack.c.h.b16 %v212
    %v824 = vunpack.c.l.b16 %v213
    %v825 = vunpack.c.h.b16 %v213
    %v826 = vunpack.c.l.b16 %v214
    %v827 = vunpack.c.h.b16 %v214
    %v828 = vunpack.c.l.b16 %v215
    %v829 = vunpack.c.h.b16 %v215
    %v830 = vunpack.c.l.b16 %v216
    %v831 = vunpack.c.h.b16 %v216
    %v832 = vunpack.c.l.b16 %v217
    %v833 = vunpack.c.h.b16 %v217
    %v834 = vunpack.c.l.b16 %v218
    %v835 = vunpack.c.h.b16 %v218
    %v836 = vunpack.c.l.b16 %v219
    %v837 = vunpack.c.h.b16 %v219
    %v838 = vunpack.c.l.b16 %v220
    %v839 = vunpack.c.h.b16 %v220
    %v840 = vunpack.c.l.b16 %v221
    %v841 = vunpack.c.h.b16 %v221
    %v842 = vunpack.c.l.b16 %v222
    %v843 = vunpack.c.h.b16 %v222
    %v844 = vunpack.c.l.b16 %v223
    %v845 = vunpack.c.h.b16 %v223
    %v846 = vunpack.c.l.b16 %v224
    %v847 = vunpack.c.h.b16 %v224
    %v848 = vunpack.c.l.b16 %v225
    %v849 = vunpack.c.h.b16 %v225
    %v850 = vunpack.c.l.b16 %v226
    %v851 = vunpack.c.h.b16 %v226
    %v852 = vunpack.c.l.b16 %v227
    %v853 = vunpack.c.h.b16 %v227
    %v854 = vunpack.c.l.b16 %v228
    %v855 = vunpack.c.h.b16 %v228
    %v856 = vunpack.c.l.b16 %v229
    %v857 = vunpack.c.h.b16 %v229
    %v858 = vunpack.c.l.b16 %v230
    %v859 = vunpack.c.h.b16 %v230
    %v860 = vunpack.c.l.b16 %v231
    %v861 = vunpack.c.h.b16 %v231
    %v862 = vunpack.c.l.b16 %v232
    %v863 = vunpack.c.h.b16 %v232
    %v864 = vunpack.c.l.b16 %v233
    %v865 = vunpack.c.h.b16 %v233
    %v866 = vunpack.c.l.b16 %v234
    %v867 = vunpack.c.h.b16 %v234
    %v868 = vunpack.c.l.b16 %v235
    %v869 = vunpack.c.h.b16 %v235
    %v870 = vunpack.c.l.b16 %v236
    %v871 = vunpack.c.h.b16 %v236
    %v872 = vunpack.c.l.b16 %v237
    %v873 = vunpack.c.h.b16 %v237
    %v874 = vunpack.c.l.b16 %v238
    %v875 = vunpack.c.h.b16 %v238
    %v876 = vunpack.c.l.b16 %v239
    %v877 = vunpack.c.h.b16 %v239
    %v878 = vunpack.c.l.b16 %v240
    %v879 = vunpack.c.h.b16 %v240
    %v880 = vunpack.c.l.b16 %v241
    %v881 = vunpack.c.h.b16 %v241
    %v882 = vunpack.c.l.b16 %v242
    %v883 = vunpack.c.h.b16 %v242
    %v884 = vunpack.c.l.b16 %v243
    %v885 = vunpack.c.h.b16 %v243
    %v886 = vunpack.c.l.b16 %v244
    %v887 = vunpack.c.h.b16 %v244
    %v888 = vunpack.c.l.b16 %v245
    %v889 = vunpack.c.h.b16 %v245
    %v890 = vunpack.c.l.b16 %v246
    %v891 = vunpack.c.h.b16 %v246
    %v892 = vunpack.c.l.b16 %v247
    %v893 = vunpack.c.h.b16 %v247
    %v894 = vunpack.c.l.b16 %v248
    %v895 = vunpack.c.h.b16 %v248
    %v896 = vunpack.c.l.b16 %v249
    %v897 = vunpack.c.h.b16 %v249
    %v898 = vunpack.c.l.b16 %v250
    %v899 = vunpack.c.h.b16 %v250
    %v900 = vunpack.c.l.b16 %v251
    %v901 = vunpack.c.h.b16 %v251
    %v902 = vunpack.c.l.b16 %v252
    %v903 = vunpack.c.h.b16 %v252
    %v904 = vunpack.c.l.b16 %v253
    %v905 = vunpack.c.h.b16 %v253
    %v906 = vunpack.c.l.b16 %v254
    %v907 = vunpack.c.h.b16 %v254
    %v908 = vunpack.c.l.b16 %v255
    %v909 = vunpack.c.h.b16 %v255
    %v910 = vunpack.c.l.b16 %v256
    %v911 = vunpack.c.h.b16 %v256
    %v912 = vunpack.c.l.b16 %v257
    %v913 = vunpack.c.h.b16 %v257
    %v914 = vunpack.c.l.b16 %v258
    %v915 = vunpack.c.h.b16 %v258
    %v916 = vunpack.c.l.b16 %v259
    %v917 = vunpack.c.h.b16 %v259
    %v918 = vunpack.c.l.b16 %v260
    %v919 = vunpack.c.h.b16 %v260
    %v920 = vunpack.c.l.b16 %v261
    %v921 = vunpack.c.h.b16 %v261
    %v922 = vunpack.c.l.b16 %v262
    %v923 = vunpack.c.h.b16 %v262
    %v924 = vunpack.c.l.b16 %v263
    %v925 = vunpack.c.h.b16 %v263
    %v926 = vunpack.c.l.b16 %v264
    %v927 = vunpack.c.h.b16 %v264
    %v928 = vunpack.c.l.b16 %v265
    %v929 = vunpack.c.h.b16 %v265
    %v930 = vunpack.c.l.b16 %v266
    %v931 = vunpack.c.h.b16 %v266
    %v932 = vunpack.c.l.b16 %v267
    %v933 = vunpack.c.h.b16 %v267
    %v934 = vunpack.c.l.b16 %v268
    %v935 = vunpack.c.h.b16 %v268
    %v936 = vunpack.c.l.b16 %v269
    %v937 = vunpack.c.h.b16 %v269
    %v938 = vunpack.c.l.b16 %v270
    %v939 = vunpack.c.h.b16 %v270
    %v940 = vunpack.c.l.b16 %v271
    %v941 = vunpack.c.h.b16 %v271
    %v942 = vunpack.c.l.b16 %v272
    %v943 = vunpack.c.h.b16 %v272
    %v944 = vunpack.c.l.b16 %v273
    %v945 = vunpack.c.h.b16 %v273
    %v946 = vunpack.c.l.b16 %v274
    %v947 = vunpack.c.h.b16 %v274
    %v948 = vunpack.c.l.b16 %v275
    %v949 = vunpack.c.h.b16 %v275
    %v950 = vunpack.c.l.b16 %v276
    %v951 = vunpack.c.h.b16 %v276
    %v952 = vunpack.c.l.b16 %v277
    %v953 = vunpack.c.h.b16 %v277
    %v954 = vunpack.c.l.b16 %v278
    %v955 = vunpack.c.h.b16 %v278
    %v956 = vunpack.c.l.b16 %v279
    %v957 = vunpack.c.h.b16 %v279
    %v958 = vunpack.c.l.b16 %v280
    %v959 = vunpack.c.h.b16 %v280
    %v960 = vunpack.c.l.b16 %v281
    %v961 = vunpack.c.h.b16 %v281
    %v962 = vunpack.c.l.b16 %v282
    %v963 = vunpack.c.h.b16 %v282
    %v964 = vunpack.c.l.b16 %v283
    %v965 = vunpack.c.h.b16 %v283
    %v966 = vunpack.c.l.b16 %v284
    %v967 = vunpack.c.h.b16 %v284
    %v968 = vunpack.c.l.b16 %v285
    %v969 = vunpack.c.h.b16 %v285
    %v970 = vunpack.c.l.b16 %v286
    %v971 = vunpack.c.h.b16 %v286
    %v972 = vunpack.c.l.b16 %v287
    %v973 = vunpack.c.h.b16 %v287
    %v974 = vunpack.c.l.b16 %v288
    %v975 = vunpack.c.h.b16 %v288
    %v976 = vunpack.c.l.b16 %v289
    %v977 = vunpack.c.h.b16 %v289
    %v978 = vunpack.c.l.b16 %v290
    %v979 = vunpack.c.h.b16 %v290
    %v980 = vunpack.c.l.b16 %v291
    %v981 = vunpack.c.h.b16 %v291
    %v982 = vunpack.c.l.b16 %v292
    %v983 = vunpack.c.h.b16 %v292
    %v984 = vunpack.c.l.b16 %v293
    %v985 = vunpack.c.h.b16 %v293
    %v986 = vunpack.c.l.b16 %v294
    %v987 = vunpack.c.h.b16 %v294
    %v988 = vunpack.c.l.b16 %v295
    %v989 = vunpack.c.h.b16 %v295
    %v990 = vunpack.c.l.b16 %v296
    %v991 = vunpack.c.h.b16 %v296
    %v992 = vunpack.c.l.b16 %v297
    %v993 = vunpack.c.h.b16 %v297
    %v994 = vunpack.c.l.b16 %v298
    %v995 = vunpack.c.h.b16 %v298
    %v996 = vunpack.c.l.b16 %v299
    %v997 = vunpack.c.h.b16 %v299
    %v998 = vunpack.c.l.b16 %v300
    %v999 = vunpack.c.h.b16 %v300
    %v1000 = vunpack.c.l.b16 %v301
    %v1001 = vunpack.c.h.b16 %v301
    %v1002 = vunpack.c.l.b16 %v302
    %v1003 = vunpack.c.h.b16 %v302
    %v1004 = vunpack.c.l.b16 %v303
    %v1005 = vunpack.c.h.b16 %v303
    %v1006 = vunpack.c.l.b16 %v304
    %v1007 = vunpack.c.h.b16 %v304
    %v1008 = vunpack.c.l.b16 %v305
    %v1009 = vunpack.c.h.b16 %v305
    %v1010 = vunpack.c.l.b16 %v306
    %v1011 = vunpack.c.h.b16 %v306
    %v1012 = vunpack.c.l.b16 %v307
    %v1013 = vunpack.c.h.b16 %v307
    %v1014 = vunpack.c.l.b16 %v308
    %v1015 = vunpack.c.h.b16 %v308
    %v1016 = vunpack.c.l.b16 %v309
    %v1017 = vunpack.c.h.b16 %v309
    %v1018 = vunpack.c.l.b16 %v310
    %v1019 = vunpack.c.h.b16 %v310
    %v1020 = vunpack.c.l.b16 %v311
    %v1021 = vunpack.c.h.b16 %v311
    %v1022 = vunpack.c.l.b16 %v312
    %v1023 = vunpack.c.h.b16 %v312
    %v1024 = vunpack.c.l.b16 %v313
    %v1025 = vunpack.c.h.b16 %v313
    %v1026 = vunpack.c.l.b16 %v314
    %v1027 = vunpack.c.h.b16 %v314
    %v1028 = vunpack.c.l.b16 %v315
    %v1029 = vunpack.c.h.b16 %v315
    %v1030 = vunpack.c.l.b16 %v316
    %v1031 = vunpack.c.h.b16 %v316
    %v1032 = vunpack.c.l.b16 %v317
    %v1033 = vunpack.c.h.b16 %v317
    %v1034 = vunpack.c.l.b16 %v318
    %v1035 = vunpack.c.h.b16 %v318
    %v1036 = vunpack.c.l.b16 %v319
    %v1037 = vunpack.c.h.b16 %v319
    %v1038 = vunpack.c.l.b16 %v320
    %v1039 = vunpack.c.h.b16 %v320
    %v1040 = vunpack.c.l.b16 %v321
    %v1041 = vunpack.c.h.b16 %v321
    %v1042 = vunpack.c.l.b16 %v322
    %v1043 = vunpack.c.h.b16 %v322
    %v1044 = vunpack.c.l.b16 %v323
    %v1045 = vunpack.c.h.b16 %v323
    %v1046 = vunpack.c.l.b16 %v324
    %v1047 = vunpack.c.h.b16 %v324
    %v1048 = vunpack.c.l.b16 %v325
    %v1049 = vunpack.c.h.b16 %v325
    %v1050 = vunpack.c.l.b16 %v326
    %v1051 = vunpack.c.h.b16 %v326
    %v1052 = vunpack.c.l.b16 %v327
    %v1053 = vunpack.c.h.b16 %v327
    %v1054 = vunpack.c.l.b16 %v328
    %v1055 = vunpack.c.h.b16 %v328
    %v1056 = vunpack.c.l.b16 %v329
    %v1057 = vunpack.c.h.b16 %v329
    %v1058 = vunpack.c.l.b16 %v330
    %v1059 = vunpack.c.h.b16 %v330
    %v1060 = vunpack.c.l.b16 %v331
    %v1061 = vunpack.c.h.b16 %v331
    %v1062 = vunpack.c.l.b16 %v332
    %v1063 = vunpack.c.h.b16 %v332
    %v1064 = vunpack.c.l.b16 %v333
    %v1065 = vunpack.c.h.b16 %v333
    %v1066 = vunpack.c.l.b16 %v334
    %v1067 = vunpack.c.h.b16 %v334
    %v1068 = vunpack.c.l.b16 %v335
    %v1069 = vunpack.c.h.b16 %v335
    %v1070 = vunpack.c.l.b16 %v336
    %v1071 = vunpack.c.h.b16 %v336
    %v1072 = vunpack.c.l.b16 %v337
    %v1073 = vunpack.c.h.b16 %v337
    %v1074 = vunpack.c.l.b16 %v338
    %v1075 = vunpack.c.h.b16 %v338
    %v1076 = vunpack.c.l.b16 %v339
    %v1077 = vunpack.c.h.b16 %v339
    %v1078 = vunpack.c.l.b16 %v340
    %v1079 = vunpack.c.h.b16 %v340
    %v1080 = vunpack.c.l.b16 %v341
    %v1081 = vunpack.c.h.b16 %v341
    %v1082 = vunpack.c.l.b16 %v342
    %v1083 = vunpack.c.h.b16 %v342
    %v1084 = vunpack.c.l.b16 %v343
    %v1085 = vunpack.c.h.b16 %v343
    %v1086 = vunpack.c.l.b16 %v344
    %v1087 = vunpack.c.h.b16 %v344
    %v1088 = vunpack.c.l.b16 %v345
    %v1089 = vunpack.c.h.b16 %v345
    %v1090 = vunpack.c.l.b16 %v346
    %v1091 = vunpack.c.h.b16 %v346
    %v1092 = vunpack.c.l.b16 %v347
    %v1093 = vunpack.c.h.b16 %v347
    %v1094 = vunpack.c.l.b16 %v348
    %v1095 = vunpack.c.h.b16 %v348
    %v1096 = vunpack.c.l.b16 %v349
    %v1097 = vunpack.c.h.b16 %v349
    %v1098 = vunpack.c.l.b16 %v350
    %v1099 = vunpack.c.h.b16 %v350
    %v1100 = vunpack.c.l.b16 %v351
    %v1101 = vunpack.c.h.b16 %v351
    %v1102 = vunpack.c.l.b16 %v352
    %v1103 = vunpack.c.h.b16 %v352
    %v1104 = vunpack.c.l.b16 %v353
    %v1105 = vunpack.c.h.b16 %v353
    %v1106 = vunpack.c.l.b16 %v354
    %v1107 = vunpack.c.h.b16 %v354
    %v1108 = vunpack.c.l.b16 %v355
    %v1109 = vunpack.c.h.b16 %v355
    %v1110 = vunpack.c.l.b16 %v356
    %v1111 = vunpack.c.h.b16 %v356
    %v1112 = vunpack.c.l.b16 %v357
    %v1113 = vunpack.c.h.b16 %v357
    %v1114 = vunpack.c.l.b16 %v358
    %v1115 = vunpack.c.h.b16 %v358
    %v1116 = vunpack.c.l.b16 %v359
    %v1117 = vunpack.c.h.b16 %v359
    %v1118 = vunpack.c.l.b16 %v360
    %v1119 = vunpack.c.h.b16 %v360
    %v1120 = vunpack.c.l.b16 %v361
    %v1121 = vunpack.c.h.b16 %v361
    %v1122 = vunpack.c.l.b16 %v362
    %v1123 = vunpack.c.h.b16 %v362
    %v1124 = vunpack.c.l.b16 %v363
    %v1125 = vunpack.c.h.b16 %v363
    %v1126 = vunpack.c.l.b16 %v364
    %v1127 = vunpack.c.h.b16 %v364
    %v1128 = vunpack.c.l.b16 %v365
    %v1129 = vunpack.c.h.b16 %v365
    %v1130 = vunpack.c.l.b16 %v366
    %v1131 = vunpack.c.h.b16 %v366
    %v1132 = vunpack.c.l.b16 %v367
    %v1133 = vunpack.c.h.b16 %v367
    %v1134 = vunpack.c.l.b16 %v368
    %v1135 = vunpack.c.h.b16 %v368
    %v1136 = vunpack.c.l.b16 %v369
    %v1137 = vunpack.c.h.b16 %v369
    %v1138 = vunpack.c.l.b16 %v370
    %v1139 = vunpack.c.h.b16 %v370
    %v1140 = vunpack.c.l.b16 %v371
    %v1141 = vunpack.c.h.b16 %v371
    %v1142 = vunpack.c.l.b16 %v372
    %v1143 = vunpack.c.h.b16 %v372
    %v1144 = vunpack.c.l.b16 %v373
    %v1145 = vunpack.c.h.b16 %v373
    %v1146 = vunpack.c.l.b16 %v374
    %v1147 = vunpack.c.h.b16 %v374
    %v1148 = vunpack.c.l.b16 %v375
    %v1149 = vunpack.c.h.b16 %v375
    %v1150 = vunpack.c.l.b16 %v376
    %v1151 = vunpack.c.h.b16 %v376
    %v1152 = vunpack.c.l.b16 %v377
    %v1153 = vunpack.c.h.b16 %v377
    %v1154 = vunpack.c.l.b16 %v378
    %v1155 = vunpack.c.h.b16 %v378
    %v1156 = vunpack.c.l.b16 %v379
    %v1157 = vunpack.c.h.b16 %v379
    %v1158 = vunpack.c.l.b16 %v380
    %v1159 = vunpack.c.h.b16 %v380
    %v1160 = vunpack.c.l.b16 %v381
    %v1161 = vunpack.c.h.b16 %v381
    %v1162 = vunpack.c.l.b16 %v382
    %v1163 = vunpack.c.h.b16 %v382
    %v1164 = vunpack.c.l.b16 %v383
    %v1165 = vunpack.c.h.b16 %v383
    %v1166 = vunpack.c.l.b16 %v384
    %v1167 = vunpack.c.h.b16 %v384
    %v1168 = vunpack.c.l.b16 %v385
    %v1169 = vunpack.c.h.b16 %v385
    %v1170 = vunpack.c.l.b16 %v386
    %v1171 = vunpack.c.h.b16 %v386
    %v1172 = vunpack.c.l.b16 %v387
    %v1173 = vunpack.c.h.b16 %v387
    %v1174 = vunpack.c.l.b16 %v388
    %v1175 = vunpack.c.h.b16 %v388
    %v1176 = vunpack.c.l.b16 %v389
    %v1177 = vunpack.c.h.b16 %v389
    %v1178 = vunpack.c.l.b16 %v390
    %v1179 = vunpack.c.h.b16 %v390
    %v1180 = vunpack.c.l.b16 %v391
    %v1181 = vunpack.c.h.b16 %v391
    %v1182 = vunpack.c.l.b16 %v392
    %v1183 = vunpack.c.h.b16 %v392
    %v1184 = vunpack.c.l.b16 %v393
    %v1185 = vunpack.c.h.b16 %v393
    %v1186 = vunpack.c.l.b16 %v394
    %v1187 = vunpack.c.h.b16 %v394
    %v1188 = vunpack.c.l.b16 %v395
    %v1189 = vunpack.c.h.b16 %v395
    %v1190 = vunpack.c.l.b16 %v396
    %v1191 = vunpack.c.h.b16 %v396
    %v1192 = vunpack.c.l.b16 %v397
    %v1193 = vunpack.c.h.b16 %v397
    %v1194 = vunpack.c.l.b16 %v398
    %v1195 = vunpack.c.h.b16 %v398
    %v1196 = vunpack.c.l.b16 %v399
    %v1197 = vunpack.c.h.b16 %v399
    %v1198 = vunpack.c.l.b16 %v400
    %v1199 = vunpack.c.h.b16 %v400
    %v1200 = vunpack.c.l.b16 %v401
    %v1201 = vunpack.c.h.b16 %v401
    %v1202 = vunpack.c.l.b16 %v402
    %v1203 = vunpack.c.h.b16 %v402
    %v1204 = vunpack.c.l.b16 %v403
    %v1205 = vunpack.c.h.b16 %v403
    %v1206 = vunpack.c.l.b16 %v404
    %v1207 = vunpack.c.h.b16 %v404
    %v1208 = vunpack.c.l.b16 %v405
    %v1209 = vunpack.c.h.b16 %v405
    %v1210 = vunpack.c.l.b16 %v406
    %v1211 = vunpack.c.h.b16 %v406
    %v1212 = vunpack.c.l.b16 %v407
    %v1213 = vunpack.c.h.b16 %v407
    %v1214 = vunpack.c.l.b16 %v408
    %v1215 = vunpack.c.h.b16 %v408
    %v1216 = vunpack.c.l.b16 %v409
    %v1217 = vunpack.c.h.b16 %v409
    %v1218 = vunpack.c.l.b16 %v410
    %v1219 = vunpack.c.h.b16 %v410
    %v1220 = vunpack.c.l.b16 %v411
    %v1221 = vunpack.c.h.b16 %v411
    %v1222 = vunpack.c.l.b16 %v412
    %v1223 = vunpack.c.h.b16 %v412
    %v1224 = vunpack.c.l.b16 %v413
    %v1225 = vunpack.c.h.b16 %v413
    %v1226 = vunpack.c.l.b16 %v414
    %v1227 = vunpack.c.h.b16 %v414
    %v1228 = vunpack.c.l.b16 %v415
    %v1229 = vunpack.c.h.b16 %v415
    %v1230 = vunpack.c.l.b16 %v416
    %v1231 = vunpack.c.h.b16 %v416
    %v1232 = vunpack.c.l.b16 %v417
    %v1233 = vunpack.c.h.b16 %v417
    %v1234 = vunpack.c.l.b16 %v418
    %v1235 = vunpack.c.h.b16 %v418
    %v1236 = vunpack.c.l.b16 %v419
    %v1237 = vunpack.c.h.b16 %v419
    %v1238 = vunpack.c.l.b16 %v420
    %v1239 = vunpack.c.h.b16 %v420
    %v1240 = vunpack.c.l.b16 %v421
    %v1241 = vunpack.c.h.b16 %v421
    %v1242 = vunpack.c.l.b16 %v422
    %v1243 = vunpack.c.h.b16 %v422
    %v1244 = vunpack.c.l.b16 %v423
    %v1245 = vunpack.c.h.b16 %v423
    %v1246 = vunpack.c.l.b16 %v424
    %v1247 = vunpack.c.h.b16 %v424
    %v1248 = vunpack.c.l.b16 %v425
    %v1249 = vunpack.c.h.b16 %v425
    %v1250 = vunpack.c.l.b16 %v426
    %v1251 = vunpack.c.h.b16 %v426
    %v1252 = vunpack.c.l.b16 %v427
    %v1253 = vunpack.c.h.b16 %v427
    %v1254 = vunpack.c.l.b16 %v428
    %v1255 = vunpack.c.h.b16 %v428
    %v1256 = vunpack.c.l.b16 %v429
    %v1257 = vunpack.c.h.b16 %v429
    %v1258 = vunpack.c.l.b16 %v430
    %v1259 = vunpack.c.h.b16 %v430
    %v1260 = vunpack.c.l.b16 %v431
    %v1261 = vunpack.c.h.b16 %v431
    %v1262 = vunpack.c.l.b16 %v432
    %v1263 = vunpack.c.h.b16 %v432
    %v1264 = vunpack.c.l.b16 %v433
    %v1265 = vunpack.c.h.b16 %v433
    %v1266 = vunpack.c.l.b16 %v434
    %v1267 = vunpack.c.h.b16 %v434
    %v1268 = vunpack.c.l.b16 %v435
    %v1269 = vunpack.c.h.b16 %v435
    %v1270 = vunpack.c.l.b16 %v436
    %v1271 = vunpack.c.h.b16 %v436
    %v1272 = vunpack.c.l.b16 %v437
    %v1273 = vunpack.c.h.b16 %v437
    %v1274 = vunpack.c.l.b16 %v438
    %v1275 = vunpack.c.h.b16 %v438
    %v1276 = vunpack.c.l.b16 %v439
    %v1277 = vunpack.c.h.b16 %v439
    %v1278 = vunpack.c.l.b16 %v440
    %v1279 = vunpack.c.h.b16 %v440
    %v1280 = vunpack.c.l.b16 %v441
    %v1281 = vunpack.c.h.b16 %v441
    %v1282 = vunpack.c.l.b16 %v442
    %v1283 = vunpack.c.h.b16 %v442
    %v1284 = vunpack.c.l.b16 %v443
    %v1285 = vunpack.c.h.b16 %v443
    %v1286 = vunpack.c.l.b16 %v444
    %v1287 = vunpack.c.h.b16 %v444
    %v1288 = vunpack.c.l.b16 %v445
    %v1289 = vunpack.c.h.b16 %v445
    %v1290 = vunpack.c.l.b16 %v446
    %v1291 = vunpack.c.h.b16 %v446
    %v1292 = vunpack.c.l.b16 %v447
    %v1293 = vunpack.c.h.b16 %v447
    %v1294 = vunpack.c.l.b16 %v448
    %v1295 = vunpack.c.h.b16 %v448
    %v1296 = vunpack.c.l.b16 %v449
    %v1297 = vunpack.c.h.b16 %v449
    %v1298 = vunpack.c.l.b16 %v450
    %v1299 = vunpack.c.h.b16 %v450
    %v1300 = vunpack.c.l.b16 %v451
    %v1301 = vunpack.c.h.b16 %v451
    %v1302 = vunpack.c.l.b16 %v452
    %v1303 = vunpack.c.h.b16 %v452
    %v1304 = vunpack.c.l.b16 %v453
    %v1305 = vunpack.c.h.b16 %v453
    %v1306 = vpack.c.b16 %v810, %v794
    %v1307 = vpack.c.b16 %v811, %v795
    %v1308 = vpack.c.b16 %v812, %v796
    %v1309 = vpack.c.b16 %v813, %v797
    %v1310 = vpack.c.b16 %v814, %v798
    %v1311 = vpack.c.b16 %v815, %v799
    %v1312 = vpack.c.b16 %v816, %v800
    %v1313 = vpack.c.b16 %v817, %v801
    %v1314 = vpack.c.b16 %v818, %v802
    %v1315 = vpack.c.b16 %v819, %v803
    %v1316 = vpack.c.b16 %v820, %v804
    %v1317 = vpack.c.b16 %v821, %v805
    %v1318 = vpack.c.b16 %v822, %v806
    %v1319 = vpack.c.b16 %v823, %v807
    %v1320 = vpack.c.b16 %v824, %v808
    %v1321 = vpack.c.b16 %v825, %v809
    %v1322 = vpack.c.b16 %v842, %v826
    %v1323 = vpack.c.b16 %v843, %v827
    %v1324 = vpack.c.b16 %v844, %v828
    %v1325 = vpack.c.b16 %v845, %v829
    %v1326 = vpack.c.b16 %v846, %v830
    %v1327 = vpack.c.b16 %v847, %v831
    %v1328 = vpack.c.b16 %v848, %v832
    %v1329 = vpack.c.b16 %v849, %v833
    %v1330 = vpack.c.b16 %v850, %v834
    %v1331 = vpack.c.b16 %v851, %v835
    %v1332 = vpack.c.b16 %v852, %v836
    %v1333 = vpack.c.b16 %v853, %v837
    %v1334 = vpack.c.b16 %v854, %v838
    %v1335 = vpack.c.b16 %v855, %v839
    %v1336 = vpack.c.b16 %v856, %v840
    %v1337 = vpack.c.b16 %v857, %v841
    %v1338 = vpack.c.b16 %v874, %v858
    %v1339 = vpack.c.b16 %v875, %v859
    %v1340 = vpack.c.b16 %v876, %v860
    %v1341 = vpack.c.b16 %v877, %v861
    %v1342 = vpack.c.b16 %v878, %v862
    %v1343 = vpack.c.b16 %v879, %v863
    %v1344 = vpack.c.b16 %v880, %v864
    %v1345 = vpack.c.b16 %v881, %v865
    %v1346 = vpack.c.b16 %v882, %v866
    %v1347 = vpack.c.b16 %v883, %v867
    %v1348 = vpack.c.b16 %v884, %v868
    %v1349 = vpack.c.b16 %v885, %v869
    %v1350 = vpack.c.b16 %v886, %v870
    %v1351 = vpack.c.b16 %v887, %v871
    %v1352 = vpack.c.b16 %v888, %v872
    %v1353 = vpack.c.b16 %v889, %v873
    %v1354 = vpack.c.b16 %v906, %v890
    %v1355 = vpack.c.b16 %v907, %v891
    %v1356 = vpack.c.b16 %v908, %v892
    %v1357 = vpack.c.b16 %v909, %v893
    %v1358 = vpack.c.b16 %v910, %v894
    %v1359 = vpack.c.b16 %v911, %v895
    %v1360 = vpack.c.b16 %v912, %v896
    %v1361 = vpack.c.b16 %v913, %v897
    %v1362 = vpack.c.b16 %v914, %v898
    %v1363 = vpack.c.b16 %v915, %v899
    %v1364 = vpack.c.b16 %v916, %v900
    %v1365 = vpack.c.b16 %v917, %v901
    %v1366 = vpack.c.b16 %v918, %v902
    %v1367 = vpack.c.b16 %v919, %v903
    %v1368 = vpack.c.b16 %v920, %v904
    %v1369 = vpack.c.b16 %v921, %v905
    %v1370 = vpack.c.b16 %v938, %v922
    %v1371 = vpack.c.b16 %v939, %v923
    %v1372 = vpack.c.b16 %v940, %v924
    %v1373 = vpack.c.b16 %v941, %v925
    %v1374 = vpack.c.b16 %v942, %v926
    %v1375 = vpack.c.b16 %v943, %v927
    %v1376 = vpack.c.b16 %v944, %v928
    %v1377 = vpack.c.b16 %v945, %v929
    %v1378 = vpack.c.b16 %v946, %v930
    %v1379 = vpack.c.b16 %v947, %v931
    %v1380 = vpack.c.b16 %v948, %v932
    %v1381 = vpack.c.b16 %v949, %v933
    %v1382 = vpack.c.b16 %v950, %v934
    %v1383 = vpack.c.b16 %v951, %v935
    %v1384 = vpack.c.b16 %v952, %v936
    %v1385 = vpack.c.b16 %v953, %v937
    %v1386 = vpack.c.b16 %v970, %v954
    %v1387 = vpack.c.b16 %v971, %v955
    %v1388 = vpack.c.b16 %v972, %v956
    %v1389 = vpack.c.b16 %v973, %v957
    %v1390 = vpack.c.b16 %v974, %v958
    %v1391 = vpack.c.b16 %v975, %v959
    %v1392 = vpack.c.b16 %v976, %v960
    %v1393 = vpack.c.b16 %v977, %v961
    %v1394 = vpack.c.b16 %v978, %v962
    %v1395 = vpack.c.b16 %v979, %v963
    %v1396 = vpack.c.b16 %v980, %v964
    %v1397 = vpack.c.b16 %v981, %v965
    %v1398 = vpack.c.b16 %v982, %v966
    %v1399 = vpack.c.b16 %v983, %v967
    %v1400 = vpack.c.b16 %v984, %v968
    %v1401 = vpack.c.b16 %v985, %v969
    %v1402 = vpack.c.b16 %v1002, %v986
    %v1403 = vpack.c.b16 %v1003, %v987
    %v1404 = vpack.c.b16 %v1004, %v988
    %v1405 = vpack.c.b16 %v1005, %v989
    %v1406 = vpack.c.b16 %v1006, %v990
    %v1407 = vpack.c.b16 %v1007, %v991
    %v1408 = vpack.c.b16 %v1008, %v992
    %v1409 = vpack.c.b16 %v1009, %v993
    %v1410 = vpack.c.b16 %v1010, %v994
    %v1411 = vpack.c.b16 %v1011, %v995
    %v1412 = vpack.c.b16 %v1012, %v996
    %v1413 = vpack.c.b16 %v1013, %v997
    %v1414 = vpack.c.b16 %v1014, %v998
    %v1415 = vpack.c.b16 %v1015, %v999
    %v1416 = vpack.c.b16 %v1016, %v1000
    %v1417 = vpack.c.b16 %v1017, %v1001
    %v1418 = vpack.c.b16 %v1034, %v1018
    %v1419 = vpack.c.b16 %v1035, %v1019
    %v1420 = vpack.c.b16 %v1036, %v1020
    %v1421 = vpack.c.b16 %v1037, %v1021
    %v1422 = vpack.c.b16 %v1038, %v1022
    %v1423 = vpack.c.b16 %v1039, %v1023
    %v1424 = vpack.c.b16 %v1040, %v1024
    %v1425 = vpack.c.b16 %v1041, %v1025
    %v1426 = vpack.c.b16 %v1042, %v1026
    %v1427 = vpack.c.b16 %v1043, %v1027
    %v1428 = vpack.c.b16 %v1044, %v1028
    %v1429 = vpack.c.b16 %v1045, %v1029
    %v1430 = vpack.c.b16 %v1046, %v1030
    %v1431 = vpack.c.b16 %v1047, %v1031
    %v1432 = vpack.c.b16 %v1048, %v1032
    %v1433 = vpack.c.b16 %v1049, %v1033
    %v1434 = vpack.c.b16 %v1066, %v1050
    %v1435 = vpack.c.b16 %v1067, %v1051
    %v1436 = vpack.c.b16 %v1068, %v1052
    %v1437 = vpack.c.b16 %v1069, %v1053
    %v1438 = vpack.c.b16 %v1070, %v1054
    %v1439 = vpack.c.b16 %v1071, %v1055
    %v1440 = vpack.c.b16 %v1072, %v1056
    %v1441 = vpack.c.b16 %v1073, %v1057
    %v1442 = vpack.c.b16 %v1074, %v1058
    %v1443 = vpack.c.b16 %v1075, %v1059
    %v1444 = vpack.c.b16 %v1076, %v1060
    %v1445 = vpack.c.b16 %v1077, %v1061
    %v1446 = vpack.c.b16 %v1078, %v1062
    %v1447 = vpack.c.b16 %v1079, %v1063
    %v1448 = vpack.c.b16 %v1080, %v1064
    %v1449 = vpack.c.b16 %v1081, %v1065
    %v1450 = vpack.c.b16 %v1098, %v1082
    %v1451 = vpack.c.b16 %v1099, %v1083
    %v1452 = vpack.c.b16 %v1100, %v1084
    %v1453 = vpack.c.b16 %v1101, %v1085
    %v1454 = vpack.c.b16 %v1102, %v1086
    %v1455 = vpack.c.b16 %v1103, %v1087
    %v1456 = vpack.c.b16 %v1104, %v1088
    %v1457 = vpack.c.b16 %v1105, %v1089
    %v1458 = vpack.c.b16 %v1106, %v1090
    %v1459 = vpack.c.b16 %v1107, %v1091
    %v1460 = vpack.c.b16 %v1108, %v1092
    %v1461 = vpack.c.b16 %v1109, %v1093
    %v1462 = vpack.c.b16 %v1110, %v1094
    %v1463 = vpack.c.b16 %v1111, %v1095
    %v1464 = vpack.c.b16 %v1112, %v1096
    %v1465 = vpack.c.b16 %v1113, %v1097
    %v1466 = vpack.c.b16 %v1130, %v1114
    %v1467 = vpack.c.b16 %v1131, %v1115
    %v1468 = vpack.c.b16 %v1132, %v1116
    %v1469 = vpack.c.b16 %v1133, %v1117
    %v1470 = vpack.c.b16 %v1134, %v1118
    %v1471 = vpack.c.b16 %v1135, %v1119
    %v1472 = vpack.c.b16 %v1136, %v1120
    %v1473 = vpack.c.b16 %v1137, %v1121
    %v1474 = vpack.c.b16 %v1138, %v1122
    %v1475 = vpack.c.b16 %v1139, %v1123
    %v1476 = vpack.c.b16 %v1140, %v1124
    %v1477 = vpack.c.b16 %v1141, %v1125
    %v1478 = vpack.c.b16 %v1142, %v1126
    %v1479 = vpack.c.b16 %v1143, %v1127
    %v1480 = vpack.c.b16 %v1144, %v1128
    %v1481 = vpack.c.b16 %v1145, %v1129
    %v1482 = vpack.c.b16 %v1162, %v1146
    %v1483 = vpack.c.b16 %v1163, %v1147
    %v1484 = vpack.c.b16 %v1164, %v1148
    %v1485 = vpack.c.b16 %v1165, %v1149
    %v1486 = vpack.c.b16 %v1166, %v1150
    %v1487 = vpack.c.b16 %v1167, %v1151
    %v1488 = vpack.c.b16 %v1168, %v1152
    %v1489 = vpack.c.b16 %v1169, %v1153
    %v1490 = vpack.c.b16 %v1170, %v1154
    %v1491 = vpack.c.b16 %v1171, %v1155
    %v1492 = vpack.c.b16 %v1172, %v1156
    %v1493 = vpack.c.b16 %v1173, %v1157
    %v1494 = vpack.c.b16 %v1174, %v1158
    %v1495 = vpack.c.b16 %v1175, %v1159
    %v1496 = vpack.c.b16 %v1176, %v1160
    %v1497 = vpack.c.b16 %v1177, %v1161
    %v1498 = vpack.c.b16 %v1194, %v1178
    %v1499 = vpack.c.b16 %v1195, %v1179
    %v1500 = vpack.c.b16 %v1196, %v1180
    %v1501 = vpack.c.b16 %v1197, %v1181
    %v1502 = vpack.c.b16 %v1198, %v1182
    %v1503 = vpack.c.b16 %v1199, %v1183
    %v1504 = vpack.c.b16 %v1200, %v1184
    %v1505 = vpack.c.b16 %v1201, %v1185
    %v1506 = vpack.c.b16 %v1202, %v1186
    %v1507 = vpack.c.b16 %v1203, %v1187
    %v1508 = vpack.c.b16 %v1204, %v1188
    %v1509 = vpack.c.b16 %v1205, %v1189
    %v1510 = vpack.c.b16 %v1206, %v1190
    %v1511 = vpack.c.b16 %v1207, %v1191
    %v1512 = vpack.c.b16 %v1208, %v1192
    %v1513 = vpack.c.b16 %v1209, %v1193
    %v1514 = vpack.c.b16 %v1226, %v1210
    %v1515 = vpack.c.b16 %v1227, %v1211
    %v1516 = vpack.c.b16 %v1228, %v1212
    %v1517 = vpack.c.b16 %v1229, %v1213
    %v1518 = vpack.c.b16 %v1230, %v1214
    %v1519 = vpack.c.b16 %v1231, %v1215
    %v1520 = vpack.c.b16 %v1232, %v1216
    %v1521 = vpack.c.b16 %v1233, %v1217
    %v1522 = vpack.c.b16 %v1234, %v1218
    %v1523 = vpack.c.b16 %v1235, %v1219
    %v1524 = vpack.c.b16 %v1236, %v1220
    %v1525 = vpack.c.b16 %v1237, %v1221
    %v1526 = vpack.c.b16 %v1238, %v1222
    %v1527 = vpack.c.b16 %v1239, %v1223
    %v1528 = vpack.c.b16 %v1240, %v1224
    %v1529 = vpack.c.b16 %v1241, %v1225
    %v1530 = vpack.c.b16 %v1258, %v1242
    %v1531 = vpack.c.b16 %v1259, %v1243
    %v1532 = vpack.c.b16 %v1260, %v1244
    %v1533 = vpack.c.b16 %v1261, %v1245
    %v1534 = vpack.c.b16 %v1262, %v1246
    %v1535 = vpack.c.b16 %v1263, %v1247
    %v1536 = vpack.c.b16 %v1264, %v1248
    %v1537 = vpack.c.b16 %v1265, %v1249
    %v1538 = vpack.c.b16 %v1266, %v1250
    %v1539 = vpack.c.b16 %v1267, %v1251
    %v1540 = vpack.c.b16 %v1268, %v1252
    %v1541 = vpack.c.b16 %v1269, %v1253
    %v1542 = vpack.c.b16 %v1270, %v1254
    %v1543 = vpack.c.b16 %v1271, %v1255
    %v1544 = vpack.c.b16 %v1272, %v1256
    %v1545 = vpack.c.b16 %v1273, %v1257
    %v1546 = vpack.c.b16 %v1290, %v1274
    %v1547 = vpack.c.b16 %v1291, %v1275
    %v1548 = vpack.c.b16 %v1292, %v1276
    %v1549 = vpack.c.b16 %v1293, %v1277
    %v1550 = vpack.c.b16 %v1294, %v1278
    %v1551 = vpack.c.b16 %v1295, %v1279
    %v1552 = vpack.c.b16 %v1296, %v1280
    %v1553 = vpack.c.b16 %v1297, %v1281
    %v1554 = vpack.c.b16 %v1298, %v1282
    %v1555 = vpack.c.b16 %v1299, %v1283
    %v1556 = vpack.c.b16 %v1300, %v1284
    %v1557 = vpack.c.b16 %v1301, %v1285
    %v1558 = vpack.c.b16 %v1302, %v1286
    %v1559 = vpack.c.b16 %v1303, %v1287
    %v1560 = vpack.c.b16 %v1304, %v1288
    %v1561 = vpack.c.b16 %v1305, %v1289
    %1818 = vmatprep.subr.bf16.mxu0 %v1419
    %1819 = vmatpush1.bf16.msra.mxu0 %v1418
    %1820 = vmatprep.subr.bf16.mxu0 %v1403
    %1821 = vmatpush1.bf16.msra.mxu0 %v1402
    %1822 = vmatprep.subr.bf16.mxu0 %v1387
    %1823 = vmatpush1.bf16.msra.mxu0 %v1386
    %1824 = vmatprep.subr.bf16.mxu0 %v1371
    %1825 = vmatpush1.bf16.msra.mxu0 %v1370
    %1826 = vmatprep.subr.bf16.mxu0 %v1355
    %1827 = vmatpush1.bf16.msra.mxu0 %v1354
    %1828 = vmatprep.subr.bf16.mxu0 %v1339
    %1829 = vmatpush1.bf16.msra.mxu0 %v1338
    %1830 = vmatprep.subr.bf16.mxu0 %v1323
    %1831 = vmatpush1.bf16.msra.mxu0 %v1322
    %1832 = vmatprep.subr.bf16.mxu0 %v1307
    %1833 = vmatpush1.bf16.msra.mxu0 %v1306
    %1834 = vmatprep.subr.bf16.mxu0 %v1547
    %1835 = vmatpush2.bf16.msra.mxu0 %v1546
    %1836 = vmatprep.subr.bf16.mxu0 %v1531
    %1837 = vmatpush2.bf16.msra.mxu0 %v1530
    %1838 = vmatprep.subr.bf16.mxu0 %v1515
    %1839 = vmatpush2.bf16.msra.mxu0 %v1514
    %1840 = vmatprep.subr.bf16.mxu0 %v1499
    %1841 = vmatpush2.bf16.msra.mxu0 %v1498
    %1842 = vmatprep.subr.bf16.mxu0 %v1483
    %1843 = vmatpush2.bf16.msra.mxu0 %v1482
    %1844 = vmatprep.subr.bf16.mxu0 %v1467
    %1845 = vmatpush2.bf16.msra.mxu0 %v1466
    %1846 = vmatprep.subr.bf16.mxu0 %v1451
    %1847 = vmatpush2.bf16.msra.mxu0 %v1450
    %1848 = vmatprep.subr.bf16.mxu0 %v1435
    %1849 = vmatpush2.bf16.msra.mxu0 %v1434
    %1850 = vmatprep.mubr.bf16.mxu0 %v197
    %1851 = vmatmul.mubr.bf16.gmra.mxu0 %v196
    %v1852 = vpop.f32.mrf.mxu0
    %v1853 = vadd.f32 %v461, %v1852
    %v1854 = vpop.f32.mrf.mxu0
    %v1855 = vadd.f32 %v465, %v1854
    %v1856 = vpop.f32.mrf.mxu0
    %v1857 = vpop.f32.mrf.mxu0
    %1858 = vdwg.mxu0
    %1859 = vmatprep.subr.bf16.mxu0 %v1421
    %1860 = vmatpush1.bf16.msra.mxu0 %v1420
    %1861 = vmatprep.subr.bf16.mxu0 %v1405
    %1862 = vmatpush1.bf16.msra.mxu0 %v1404
    %1863 = vmatprep.subr.bf16.mxu0 %v1389
    %1864 = vmatpush1.bf16.msra.mxu0 %v1388
    %1865 = vmatprep.subr.bf16.mxu0 %v1373
    %1866 = vmatpush1.bf16.msra.mxu0 %v1372
    %1867 = vmatprep.subr.bf16.mxu0 %v1357
    %1868 = vmatpush1.bf16.msra.mxu0 %v1356
    %1869 = vmatprep.subr.bf16.mxu0 %v1341
    %1870 = vmatpush1.bf16.msra.mxu0 %v1340
    %1871 = vmatprep.subr.bf16.mxu0 %v1325
    %1872 = vmatpush1.bf16.msra.mxu0 %v1324
    %1873 = vmatprep.subr.bf16.mxu0 %v1309
    %1874 = vmatpush1.bf16.msra.mxu0 %v1308
    %1875 = vmatprep.subr.bf16.mxu0 %v1549
    %1876 = vmatpush2.bf16.msra.mxu0 %v1548
    %1877 = vmatprep.subr.bf16.mxu0 %v1533
    %1878 = vmatpush2.bf16.msra.mxu0 %v1532
    %1879 = vmatprep.subr.bf16.mxu0 %v1517
    %1880 = vmatpush2.bf16.msra.mxu0 %v1516
    %1881 = vmatprep.subr.bf16.mxu0 %v1501
    %1882 = vmatpush2.bf16.msra.mxu0 %v1500
    %1883 = vmatprep.subr.bf16.mxu0 %v1485
    %1884 = vmatpush2.bf16.msra.mxu0 %v1484
    %1885 = vmatprep.subr.bf16.mxu0 %v1469
    %1886 = vmatpush2.bf16.msra.mxu0 %v1468
    %1887 = vmatprep.subr.bf16.mxu0 %v1453
    %1888 = vmatpush2.bf16.msra.mxu0 %v1452
    %1889 = vmatprep.subr.bf16.mxu0 %v1437
    %1890 = vmatpush2.bf16.msra.mxu0 %v1436
    %1891 = vmatprep.mubr.bf16.mxu0 %v197
    %1892 = vmatmul.mubr.bf16.gmra.mxu0 %v196
    %v1893 = vpop.f32.mrf.mxu0
    %v1894 = vadd.f32 %v469, %v1893
    %v1895 = vpop.f32.mrf.mxu0
    %v1896 = vadd.f32 %v473, %v1895
    %v1897 = vpop.f32.mrf.mxu0
    %v1898 = vpop.f32.mrf.mxu0
    %1899 = vdwg.mxu0
    %1900 = vmatprep.subr.bf16.mxu0 %v1423
    %1901 = vmatpush1.bf16.msra.mxu0 %v1422
    %1902 = vmatprep.subr.bf16.mxu0 %v1407
    %1903 = vmatpush1.bf16.msra.mxu0 %v1406
    %1904 = vmatprep.subr.bf16.mxu0 %v1391
    %1905 = vmatpush1.bf16.msra.mxu0 %v1390
    %1906 = vmatprep.subr.bf16.mxu0 %v1375
    %1907 = vmatpush1.bf16.msra.mxu0 %v1374
    %1908 = vmatprep.subr.bf16.mxu0 %v1359
    %1909 = vmatpush1.bf16.msra.mxu0 %v1358
    %1910 = vmatprep.subr.bf16.mxu0 %v1343
    %1911 = vmatpush1.bf16.msra.mxu0 %v1342
    %1912 = vmatprep.subr.bf16.mxu0 %v1327
    %1913 = vmatpush1.bf16.msra.mxu0 %v1326
    %1914 = vmatprep.subr.bf16.mxu0 %v1311
    %1915 = vmatpush1.bf16.msra.mxu0 %v1310
    %1916 = vmatprep.subr.bf16.mxu0 %v1551
    %1917 = vmatpush2.bf16.msra.mxu0 %v1550
    %1918 = vmatprep.subr.bf16.mxu0 %v1535
    %1919 = vmatpush2.bf16.msra.mxu0 %v1534
    %1920 = vmatprep.subr.bf16.mxu0 %v1519
    %1921 = vmatpush2.bf16.msra.mxu0 %v1518
    %1922 = vmatprep.subr.bf16.mxu0 %v1503
    %1923 = vmatpush2.bf16.msra.mxu0 %v1502
    %1924 = vmatprep.subr.bf16.mxu0 %v1487
    %1925 = vmatpush2.bf16.msra.mxu0 %v1486
    %1926 = vmatprep.subr.bf16.mxu0 %v1471
    %1927 = vmatpush2.bf16.msra.mxu0 %v1470
    %1928 = vmatprep.subr.bf16.mxu0 %v1455
    %1929 = vmatpush2.bf16.msra.mxu0 %v1454
    %1930 = vmatprep.subr.bf16.mxu0 %v1439
    %1931 = vmatpush2.bf16.msra.mxu0 %v1438
    %1932 = vmatprep.mubr.bf16.mxu0 %v197
    %1933 = vmatmul.mubr.bf16.gmra.mxu0 %v196
    %v1934 = vpop.f32.mrf.mxu0
    %v1935 = vadd.f32 %v477, %v1934
    %v1936 = vpop.f32.mrf.mxu0
    %v1937 = vadd.f32 %v481, %v1936
    %v1938 = vpop.f32.mrf.mxu0
    %v1939 = vpop.f32.mrf.mxu0
    %1940 = vdwg.mxu0
    %1941 = vmatprep.subr.bf16.mxu0 %v1425
    %1942 = vmatpush1.bf16.msra.mxu0 %v1424
    %1943 = vmatprep.subr.bf16.mxu0 %v1409
    %1944 = vmatpush1.bf16.msra.mxu0 %v1408
    %1945 = vmatprep.subr.bf16.mxu0 %v1393
    %1946 = vmatpush1.bf16.msra.mxu0 %v1392
    %1947 = vmatprep.subr.bf16.mxu0 %v1377
    %1948 = vmatpush1.bf16.msra.mxu0 %v1376
    %1949 = vmatprep.subr.bf16.mxu0 %v1361
    %1950 = vmatpush1.bf16.msra.mxu0 %v1360
    %1951 = vmatprep.subr.bf16.mxu0 %v1345
    %1952 = vmatpush1.bf16.msra.mxu0 %v1344
    %1953 = vmatprep.subr.bf16.mxu0 %v1329
    %1954 = vmatpush1.bf16.msra.mxu0 %v1328
    %1955 = vmatprep.subr.bf16.mxu0 %v1313
    %1956 = vmatpush1.bf16.msra.mxu0 %v1312
    %1957 = vmatprep.subr.bf16.mxu0 %v1553
    %1958 = vmatpush2.bf16.msra.mxu0 %v1552
    %1959 = vmatprep.subr.bf16.mxu0 %v1537
    %1960 = vmatpush2.bf16.msra.mxu0 %v1536
    %1961 = vmatprep.subr.bf16.mxu0 %v1521
    %1962 = vmatpush2.bf16.msra.mxu0 %v1520
    %1963 = vmatprep.subr.bf16.mxu0 %v1505
    %1964 = vmatpush2.bf16.msra.mxu0 %v1504
    %1965 = vmatprep.subr.bf16.mxu0 %v1489
    %1966 = vmatpush2.bf16.msra.mxu0 %v1488
    %1967 = vmatprep.subr.bf16.mxu0 %v1473
    %1968 = vmatpush2.bf16.msra.mxu0 %v1472
    %1969 = vmatprep.subr.bf16.mxu0 %v1457
    %1970 = vmatpush2.bf16.msra.mxu0 %v1456
    %1971 = vmatprep.subr.bf16.mxu0 %v1441
    %1972 = vmatpush2.bf16.msra.mxu0 %v1440
    %1973 = vmatprep.mubr.bf16.mxu0 %v197
    %1974 = vmatmul.mubr.bf16.gmra.mxu0 %v196
    %v1975 = vpop.f32.mrf.mxu0
    %v1976 = vadd.f32 %v485, %v1975
    %v1977 = vpop.f32.mrf.mxu0
    %v1978 = vadd.f32 %v489, %v1977
    %v1979 = vpop.f32.mrf.mxu0
    %v1980 = vpop.f32.mrf.mxu0
    %1981 = vdwg.mxu0
    %1982 = vmatprep.subr.bf16.mxu0 %v1427
    %1983 = vmatpush1.bf16.msra.mxu0 %v1426
    %1984 = vmatprep.subr.bf16.mxu0 %v1411
    %1985 = vmatpush1.bf16.msra.mxu0 %v1410
    %1986 = vmatprep.subr.bf16.mxu0 %v1395
    %1987 = vmatpush1.bf16.msra.mxu0 %v1394
    %1988 = vmatprep.subr.bf16.mxu0 %v1379
    %1989 = vmatpush1.bf16.msra.mxu0 %v1378
    %1990 = vmatprep.subr.bf16.mxu0 %v1363
    %1991 = vmatpush1.bf16.msra.mxu0 %v1362
    %1992 = vmatprep.subr.bf16.mxu0 %v1347
    %1993 = vmatpush1.bf16.msra.mxu0 %v1346
    %1994 = vmatprep.subr.bf16.mxu0 %v1331
    %1995 = vmatpush1.bf16.msra.mxu0 %v1330
    %1996 = vmatprep.subr.bf16.mxu0 %v1315
    %1997 = vmatpush1.bf16.msra.mxu0 %v1314
    %1998 = vmatprep.subr.bf16.mxu0 %v1555
    %1999 = vmatpush2.bf16.msra.mxu0 %v1554
    %2000 = vmatprep.subr.bf16.mxu0 %v1539
    %2001 = vmatpush2.bf16.msra.mxu0 %v1538
    %2002 = vmatprep.subr.bf16.mxu0 %v1523
    %2003 = vmatpush2.bf16.msra.mxu0 %v1522
    %2004 = vmatprep.subr.bf16.mxu0 %v1507
    %2005 = vmatpush2.bf16.msra.mxu0 %v1506
    %2006 = vmatprep.subr.bf16.mxu0 %v1491
    %2007 = vmatpush2.bf16.msra.mxu0 %v1490
    %2008 = vmatprep.subr.bf16.mxu0 %v1475
    %2009 = vmatpush2.bf16.msra.mxu0 %v1474
    %2010 = vmatprep.subr.bf16.mxu0 %v1459
    %2011 = vmatpush2.bf16.msra.mxu0 %v1458
    %2012 = vmatprep.subr.bf16.mxu0 %v1443
    %2013 = vmatpush2.bf16.msra.mxu0 %v1442
    %2014 = vmatprep.mubr.bf16.mxu0 %v197
    %2015 = vmatmul.mubr.bf16.gmra.mxu0 %v196
    %v2016 = vpop.f32.mrf.mxu0
    %v2017 = vadd.f32 %v493, %v2016
    %v2018 = vpop.f32.mrf.mxu0
    %v2019 = vadd.f32 %v497, %v2018
    %v2020 = vpop.f32.mrf.mxu0
    %v2021 = vpop.f32.mrf.mxu0
    %2022 = vdwg.mxu0
    %2023 = vmatprep.subr.bf16.mxu0 %v1429
    %2024 = vmatpush1.bf16.msra.mxu0 %v1428
    %2025 = vmatprep.subr.bf16.mxu0 %v1413
    %2026 = vmatpush1.bf16.msra.mxu0 %v1412
    %2027 = vmatprep.subr.bf16.mxu0 %v1397
    %2028 = vmatpush1.bf16.msra.mxu0 %v1396
    %2029 = vmatprep.subr.bf16.mxu0 %v1381
    %2030 = vmatpush1.bf16.msra.mxu0 %v1380
    %2031 = vmatprep.subr.bf16.mxu0 %v1365
    %2032 = vmatpush1.bf16.msra.mxu0 %v1364
    %2033 = vmatprep.subr.bf16.mxu0 %v1349
    %2034 = vmatpush1.bf16.msra.mxu0 %v1348
    %2035 = vmatprep.subr.bf16.mxu0 %v1333
    %2036 = vmatpush1.bf16.msra.mxu0 %v1332
    %2037 = vmatprep.subr.bf16.mxu0 %v1317
    %2038 = vmatpush1.bf16.msra.mxu0 %v1316
    %2039 = vmatprep.subr.bf16.mxu0 %v1557
    %2040 = vmatpush2.bf16.msra.mxu0 %v1556
    %2041 = vmatprep.subr.bf16.mxu0 %v1541
    %2042 = vmatpush2.bf16.msra.mxu0 %v1540
    %2043 = vmatprep.subr.bf16.mxu0 %v1525
    %2044 = vmatpush2.bf16.msra.mxu0 %v1524
    %2045 = vmatprep.subr.bf16.mxu0 %v1509
    %2046 = vmatpush2.bf16.msra.mxu0 %v1508
    %2047 = vmatprep.subr.bf16.mxu0 %v1493
    %2048 = vmatpush2.bf16.msra.mxu0 %v1492
    %2049 = vmatprep.subr.bf16.mxu0 %v1477
    %2050 = vmatpush2.bf16.msra.mxu0 %v1476
    %2051 = vmatprep.subr.bf16.mxu0 %v1461
    %2052 = vmatpush2.bf16.msra.mxu0 %v1460
    %2053 = vmatprep.subr.bf16.mxu0 %v1445
    %2054 = vmatpush2.bf16.msra.mxu0 %v1444
    %2055 = vmatprep.mubr.bf16.mxu0 %v197
    %2056 = vmatmul.mubr.bf16.gmra.mxu0 %v196
    %v2057 = vpop.f32.mrf.mxu0
    %v2058 = vadd.f32 %v501, %v2057
    %v2059 = vpop.f32.mrf.mxu0
    %v2060 = vadd.f32 %v505, %v2059
    %v2061 = vpop.f32.mrf.mxu0
    %v2062 = vpop.f32.mrf.mxu0
    %2063 = vdwg.mxu0
    %2064 = vmatprep.subr.bf16.mxu0 %v1431
    %2065 = vmatpush1.bf16.msra.mxu0 %v1430
    %2066 = vmatprep.subr.bf16.mxu0 %v1415
    %2067 = vmatpush1.bf16.msra.mxu0 %v1414
    %2068 = vmatprep.subr.bf16.mxu0 %v1399
    %2069 = vmatpush1.bf16.msra.mxu0 %v1398
    %2070 = vmatprep.subr.bf16.mxu0 %v1383
    %2071 = vmatpush1.bf16.msra.mxu0 %v1382
    %2072 = vmatprep.subr.bf16.mxu0 %v1367
    %2073 = vmatpush1.bf16.msra.mxu0 %v1366
    %2074 = vmatprep.subr.bf16.mxu0 %v1351
    %2075 = vmatpush1.bf16.msra.mxu0 %v1350
    %2076 = vmatprep.subr.bf16.mxu0 %v1335
    %2077 = vmatpush1.bf16.msra.mxu0 %v1334
    %2078 = vmatprep.subr.bf16.mxu0 %v1319
    %2079 = vmatpush1.bf16.msra.mxu0 %v1318
    %2080 = vmatprep.subr.bf16.mxu0 %v1559
    %2081 = vmatpush2.bf16.msra.mxu0 %v1558
    %2082 = vmatprep.subr.bf16.mxu0 %v1543
    %2083 = vmatpush2.bf16.msra.mxu0 %v1542
    %2084 = vmatprep.subr.bf16.mxu0 %v1527
    %2085 = vmatpush2.bf16.msra.mxu0 %v1526
    %2086 = vmatprep.subr.bf16.mxu0 %v1511
    %2087 = vmatpush2.bf16.msra.mxu0 %v1510
    %2088 = vmatprep.subr.bf16.mxu0 %v1495
    %2089 = vmatpush2.bf16.msra.mxu0 %v1494
    %2090 = vmatprep.subr.bf16.mxu0 %v1479
    %2091 = vmatpush2.bf16.msra.mxu0 %v1478
    %2092 = vmatprep.subr.bf16.mxu0 %v1463
    %2093 = vmatpush2.bf16.msra.mxu0 %v1462
    %2094 = vmatprep.subr.bf16.mxu0 %v1447
    %2095 = vmatpush2.bf16.msra.mxu0 %v1446
    %2096 = vmatprep.mubr.bf16.mxu0 %v197
    %2097 = vmatmul.mubr.bf16.gmra.mxu0 %v196
    %v2098 = vpop.f32.mrf.mxu0
    %v2099 = vadd.f32 %v509, %v2098
    %v2100 = vpop.f32.mrf.mxu0
    %v2101 = vadd.f32 %v513, %v2100
    %v2102 = vpop.f32.mrf.mxu0
    %v2103 = vpop.f32.mrf.mxu0
    %2104 = vdwg.mxu0
    %2105 = vmatprep.subr.bf16.mxu0 %v1433
    %2106 = vmatpush1.bf16.msra.mxu0 %v1432
    %2107 = vmatprep.subr.bf16.mxu0 %v1417
    %2108 = vmatpush1.bf16.msra.mxu0 %v1416
    %2109 = vmatprep.subr.bf16.mxu0 %v1401
    %2110 = vmatpush1.bf16.msra.mxu0 %v1400
    %2111 = vmatprep.subr.bf16.mxu0 %v1385
    %2112 = vmatpush1.bf16.msra.mxu0 %v1384
    %2113 = vmatprep.subr.bf16.mxu0 %v1369
    %2114 = vmatpush1.bf16.msra.mxu0 %v1368
    %2115 = vmatprep.subr.bf16.mxu0 %v1353
    %2116 = vmatpush1.bf16.msra.mxu0 %v1352
    %2117 = vmatprep.subr.bf16.mxu0 %v1337
    %2118 = vmatpush1.bf16.msra.mxu0 %v1336
    %2119 = vmatprep.subr.bf16.mxu0 %v1321
    %2120 = vmatpush1.bf16.msra.mxu0 %v1320
    %2121 = vmatprep.subr.bf16.mxu0 %v1561
    %2122 = vmatpush2.bf16.msra.mxu0 %v1560
    %2123 = vmatprep.subr.bf16.mxu0 %v1545
    %2124 = vmatpush2.bf16.msra.mxu0 %v1544
    %2125 = vmatprep.subr.bf16.mxu0 %v1529
    %2126 = vmatpush2.bf16.msra.mxu0 %v1528
    %2127 = vmatprep.subr.bf16.mxu0 %v1513
    %2128 = vmatpush2.bf16.msra.mxu0 %v1512
    %2129 = vmatprep.subr.bf16.mxu0 %v1497
    %2130 = vmatpush2.bf16.msra.mxu0 %v1496
    %2131 = vmatprep.subr.bf16.mxu0 %v1481
    %2132 = vmatpush2.bf16.msra.mxu0 %v1480
    %2133 = vmatprep.subr.bf16.mxu0 %v1465
    %2134 = vmatpush2.bf16.msra.mxu0 %v1464
    %2135 = vmatprep.subr.bf16.mxu0 %v1449
    %2136 = vmatpush2.bf16.msra.mxu0 %v1448
    %2137 = vmatprep.mubr.bf16.mxu0 %v197
    %2138 = vmatmul.mubr.bf16.gmra.mxu0 %v196
    %v2139 = vpop.f32.mrf.mxu0
    %v2140 = vadd.f32 %v517, %v2139
    %v2141 = vpop.f32.mrf.mxu0
    %v2142 = vadd.f32 %v521, %v2141
    %v2143 = vpop.f32.mrf.mxu0
    %v2144 = vpop.f32.mrf.mxu0
    %2145 = vdwg.mxu0
    %v2146 = vpack.c.bf16 %v1853, %v1853
    %v2147 = vpack.c.bf16 %v1855, %v1855
    %v2148 = vpack.c.bf16 %v1894, %v1894
    %v2149 = vpack.c.bf16 %v1896, %v1896
    %v2150 = vpack.c.bf16 %v1935, %v1935
    %v2151 = vpack.c.bf16 %v1937, %v1937
    %v2152 = vpack.c.bf16 %v1976, %v1976
    %v2153 = vpack.c.bf16 %v1978, %v1978
    %v2154 = vpack.c.bf16 %v2017, %v2017
    %v2155 = vpack.c.bf16 %v2019, %v2019
    %v2156 = vpack.c.bf16 %v2058, %v2058
    %v2157 = vpack.c.bf16 %v2060, %v2060
    %v2158 = vpack.c.bf16 %v2099, %v2099
    %v2159 = vpack.c.bf16 %v2101, %v2101
    %v2160 = vpack.c.bf16 %v2140, %v2140
    %v2161 = vpack.c.bf16 %v2142, %v2142
    %v2162 = vmax.bf16 %v2146, 0
    %v2163 = vmax.bf16 %v2147, 0
    %v2164 = vmax.bf16 %v2148, 0
    %v2165 = vmax.bf16 %v2149, 0
    %v2166 = vmax.bf16 %v2150, 0
    %v2167 = vmax.bf16 %v2151, 0
    %v2168 = vmax.bf16 %v2152, 0
    %v2169 = vmax.bf16 %v2153, 0
    %v2170 = vmax.bf16 %v2154, 0
    %v2171 = vmax.bf16 %v2155, 0
    %v2172 = vmax.bf16 %v2156, 0
    %v2173 = vmax.bf16 %v2157, 0
    %v2174 = vmax.bf16 %v2158, 0
    %v2175 = vmax.bf16 %v2159, 0
    %v2176 = vmax.bf16 %v2160, 0
    %v2177 = vmax.bf16 %v2161, 0
    %s2178 = sld [smem:[#allocation3]]
    %s2179 = smul.u32 0, 8
    %v2180 = vlaneseq
    %v2181 = vshrl.u32 %v2180, 7
    %v2182 = vstv %s2179
    %v2183 = vadd.s32 %v2181, %v2182
    %v2184 = vlaneseq
    %v2185 = vand.u32 %v2184, 127
    %v2186 = vadd.s32 %v2185, 128
    %v2187 = vadd.s32 %v2185, 256
    %v2188 = vadd.s32 %v2185, 384
    %v2189 = vadd.s32 %v2185, 512
    %v2190 = vadd.s32 %v2185, 640
    %v2191 = vadd.s32 %v2185, 768
    %v2192 = vadd.s32 %v2185, 896
    %v2193 = vadd.s32 %v2185, 1024
    %v2194 = vadd.s32 %v2185, 1152
    %v2195 = vadd.s32 %v2185, 1280
    %v2196 = vadd.s32 %v2185, 1408
    %v2197 = vadd.s32 %v2185, 1536
    %v2198 = vadd.s32 %v2185, 1664
    %v2199 = vadd.s32 %v2185, 1792
    %v2200 = vadd.s32 %v2185, 1920
    %v2201 = vmul.u32 %v2183, 2654435761
    %v2202 = vstv %s2178
    %v2203 = vxor.u32 %v2202, %v2201
    %v2204 = vmul.u32 %v2185, 2246822519
    %v2205 = vmul.u32 %v2186, 2246822519
    %v2206 = vmul.u32 %v2187, 2246822519
    %v2207 = vmul.u32 %v2188, 2246822519
    %v2208 = vmul.u32 %v2189, 2246822519
    %v2209 = vmul.u32 %v2190, 2246822519
    %v2210 = vmul.u32 %v2191, 2246822519
    %v2211 = vmul.u32 %v2192, 2246822519
    %v2212 = vmul.u32 %v2193, 2246822519
    %v2213 = vmul.u32 %v2194, 2246822519
    %v2214 = vmul.u32 %v2195, 2246822519
    %v2215 = vmul.u32 %v2196, 2246822519
    %v2216 = vmul.u32 %v2197, 2246822519
    %v2217 = vmul.u32 %v2198, 2246822519
    %v2218 = vmul.u32 %v2199, 2246822519
    %v2219 = vmul.u32 %v2200, 2246822519
    %v2220 = vxor.u32 %v2203, %v2204
    %v2221 = vxor.u32 %v2203, %v2205
    %v2222 = vxor.u32 %v2203, %v2206
    %v2223 = vxor.u32 %v2203, %v2207
    %v2224 = vxor.u32 %v2203, %v2208
    %v2225 = vxor.u32 %v2203, %v2209
    %v2226 = vxor.u32 %v2203, %v2210
    %v2227 = vxor.u32 %v2203, %v2211
    %v2228 = vxor.u32 %v2203, %v2212
    %v2229 = vxor.u32 %v2203, %v2213
    %v2230 = vxor.u32 %v2203, %v2214
    %v2231 = vxor.u32 %v2203, %v2215
    %v2232 = vxor.u32 %v2203, %v2216
    %v2233 = vxor.u32 %v2203, %v2217
    %v2234 = vxor.u32 %v2203, %v2218
    %v2235 = vxor.u32 %v2203, %v2219
    %v2236 = vshrl.u32 %v2220, 16
    %v2237 = vshrl.u32 %v2221, 16
    %v2238 = vshrl.u32 %v2222, 16
    %v2239 = vshrl.u32 %v2223, 16
    %v2240 = vshrl.u32 %v2224, 16
    %v2241 = vshrl.u32 %v2225, 16
    %v2242 = vshrl.u32 %v2226, 16
    %v2243 = vshrl.u32 %v2227, 16
    %v2244 = vshrl.u32 %v2228, 16
    %v2245 = vshrl.u32 %v2229, 16
    %v2246 = vshrl.u32 %v2230, 16
    %v2247 = vshrl.u32 %v2231, 16
    %v2248 = vshrl.u32 %v2232, 16
    %v2249 = vshrl.u32 %v2233, 16
    %v2250 = vshrl.u32 %v2234, 16
    %v2251 = vshrl.u32 %v2235, 16
    %v2252 = vxor.u32 %v2220, %v2236
    %v2253 = vxor.u32 %v2221, %v2237
    %v2254 = vxor.u32 %v2222, %v2238
    %v2255 = vxor.u32 %v2223, %v2239
    %v2256 = vxor.u32 %v2224, %v2240
    %v2257 = vxor.u32 %v2225, %v2241
    %v2258 = vxor.u32 %v2226, %v2242
    %v2259 = vxor.u32 %v2227, %v2243
    %v2260 = vxor.u32 %v2228, %v2244
    %v2261 = vxor.u32 %v2229, %v2245
    %v2262 = vxor.u32 %v2230, %v2246
    %v2263 = vxor.u32 %v2231, %v2247
    %v2264 = vxor.u32 %v2232, %v2248
    %v2265 = vxor.u32 %v2233, %v2249
    %v2266 = vxor.u32 %v2234, %v2250
    %v2267 = vxor.u32 %v2235, %v2251
    %v2268 = vmul.u32 %v2252, 2246822507
    %v2269 = vmul.u32 %v2253, 2246822507
    %v2270 = vmul.u32 %v2254, 2246822507
    %v2271 = vmul.u32 %v2255, 2246822507
    %v2272 = vmul.u32 %v2256, 2246822507
    %v2273 = vmul.u32 %v2257, 2246822507
    %v2274 = vmul.u32 %v2258, 2246822507
    %v2275 = vmul.u32 %v2259, 2246822507
    %v2276 = vmul.u32 %v2260, 2246822507
    %v2277 = vmul.u32 %v2261, 2246822507
    %v2278 = vmul.u32 %v2262, 2246822507
    %v2279 = vmul.u32 %v2263, 2246822507
    %v2280 = vmul.u32 %v2264, 2246822507
    %v2281 = vmul.u32 %v2265, 2246822507
    %v2282 = vmul.u32 %v2266, 2246822507
    %v2283 = vmul.u32 %v2267, 2246822507
    %v2284 = vshrl.u32 %v2268, 13
    %v2285 = vshrl.u32 %v2269, 13
    %v2286 = vshrl.u32 %v2270, 13
    %v2287 = vshrl.u32 %v2271, 13
    %v2288 = vshrl.u32 %v2272, 13
    %v2289 = vshrl.u32 %v2273, 13
    %v2290 = vshrl.u32 %v2274, 13
    %v2291 = vshrl.u32 %v2275, 13
    %v2292 = vshrl.u32 %v2276, 13
    %v2293 = vshrl.u32 %v2277, 13
    %v2294 = vshrl.u32 %v2278, 13
    %v2295 = vshrl.u32 %v2279, 13
    %v2296 = vshrl.u32 %v2280, 13
    %v2297 = vshrl.u32 %v2281, 13
    %v2298 = vshrl.u32 %v2282, 13
    %v2299 = vshrl.u32 %v2283, 13
    %v2300 = vxor.u32 %v2268, %v2284
    %v2301 = vxor.u32 %v2269, %v2285
    %v2302 = vxor.u32 %v2270, %v2286
    %v2303 = vxor.u32 %v2271, %v2287
    %v2304 = vxor.u32 %v2272, %v2288
    %v2305 = vxor.u32 %v2273, %v2289
    %v2306 = vxor.u32 %v2274, %v2290
    %v2307 = vxor.u32 %v2275, %v2291
    %v2308 = vxor.u32 %v2276, %v2292
    %v2309 = vxor.u32 %v2277, %v2293
    %v2310 = vxor.u32 %v2278, %v2294
    %v2311 = vxor.u32 %v2279, %v2295
    %v2312 = vxor.u32 %v2280, %v2296
    %v2313 = vxor.u32 %v2281, %v2297
    %v2314 = vxor.u32 %v2282, %v2298
    %v2315 = vxor.u32 %v2283, %v2299
    %v2316 = vmul.u32 %v2300, 3266489909
    %v2317 = vmul.u32 %v2301, 3266489909
    %v2318 = vmul.u32 %v2302, 3266489909
    %v2319 = vmul.u32 %v2303, 3266489909
    %v2320 = vmul.u32 %v2304, 3266489909
    %v2321 = vmul.u32 %v2305, 3266489909
    %v2322 = vmul.u32 %v2306, 3266489909
    %v2323 = vmul.u32 %v2307, 3266489909
    %v2324 = vmul.u32 %v2308, 3266489909
    %v2325 = vmul.u32 %v2309, 3266489909
    %v2326 = vmul.u32 %v2310, 3266489909
    %v2327 = vmul.u32 %v2311, 3266489909
    %v2328 = vmul.u32 %v2312, 3266489909
    %v2329 = vmul.u32 %v2313, 3266489909
    %v2330 = vmul.u32 %v2314, 3266489909
    %v2331 = vmul.u32 %v2315, 3266489909
    %v2332 = vshrl.u32 %v2316, 16
    %v2333 = vshrl.u32 %v2317, 16
    %v2334 = vshrl.u32 %v2318, 16
    %v2335 = vshrl.u32 %v2319, 16
    %v2336 = vshrl.u32 %v2320, 16
    %v2337 = vshrl.u32 %v2321, 16
    %v2338 = vshrl.u32 %v2322, 16
    %v2339 = vshrl.u32 %v2323, 16
    %v2340 = vshrl.u32 %v2324, 16
    %v2341 = vshrl.u32 %v2325, 16
    %v2342 = vshrl.u32 %v2326, 16
    %v2343 = vshrl.u32 %v2327, 16
    %v2344 = vshrl.u32 %v2328, 16
    %v2345 = vshrl.u32 %v2329, 16
    %v2346 = vshrl.u32 %v2330, 16
    %v2347 = vshrl.u32 %v2331, 16
    %v2348 = vxor.u32 %v2316, %v2332
    %v2349 = vxor.u32 %v2317, %v2333
    %v2350 = vxor.u32 %v2318, %v2334
    %v2351 = vxor.u32 %v2319, %v2335
    %v2352 = vxor.u32 %v2320, %v2336
    %v2353 = vxor.u32 %v2321, %v2337
    %v2354 = vxor.u32 %v2322, %v2338
    %v2355 = vxor.u32 %v2323, %v2339
    %v2356 = vxor.u32 %v2324, %v2340
    %v2357 = vxor.u32 %v2325, %v2341
    %v2358 = vxor.u32 %v2326, %v2342
    %v2359 = vxor.u32 %v2327, %v2343
    %v2360 = vxor.u32 %v2328, %v2344
    %v2361 = vxor.u32 %v2329, %v2345
    %v2362 = vxor.u32 %v2330, %v2346
    %v2363 = vxor.u32 %v2331, %v2347
    %vm2364 = vcmp.lt.u32.totalorder %v2348, 2147483648
    %vm2365 = vcmp.lt.u32.totalorder %v2349, 2147483648
    %vm2366 = vcmp.lt.u32.totalorder %v2350, 2147483648
    %vm2367 = vcmp.lt.u32.totalorder %v2351, 2147483648
    %vm2368 = vcmp.lt.u32.totalorder %v2352, 2147483648
    %vm2369 = vcmp.lt.u32.totalorder %v2353, 2147483648
    %vm2370 = vcmp.lt.u32.totalorder %v2354, 2147483648
    %vm2371 = vcmp.lt.u32.totalorder %v2355, 2147483648
    %vm2372 = vcmp.lt.u32.totalorder %v2356, 2147483648
    %vm2373 = vcmp.lt.u32.totalorder %v2357, 2147483648
    %vm2374 = vcmp.lt.u32.totalorder %v2358, 2147483648
    %vm2375 = vcmp.lt.u32.totalorder %v2359, 2147483648
    %vm2376 = vcmp.lt.u32.totalorder %v2360, 2147483648
    %vm2377 = vcmp.lt.u32.totalorder %v2361, 2147483648
    %vm2378 = vcmp.lt.u32.totalorder %v2362, 2147483648
    %vm2379 = vcmp.lt.u32.totalorder %v2363, 2147483648
    %vm2380 = vmpackc.low %vm2364, %vm2364
    %vm2381 = vmpackc.low %vm2365, %vm2365
    %vm2382 = vmpackc.low %vm2366, %vm2366
    %vm2383 = vmpackc.low %vm2367, %vm2367
    %vm2384 = vmpackc.low %vm2368, %vm2368
    %vm2385 = vmpackc.low %vm2369, %vm2369
    %vm2386 = vmpackc.low %vm2370, %vm2370
    %vm2387 = vmpackc.low %vm2371, %vm2371
    %vm2388 = vmpackc.low %vm2372, %vm2372
    %vm2389 = vmpackc.low %vm2373, %vm2373
    %vm2390 = vmpackc.low %vm2374, %vm2374
    %vm2391 = vmpackc.low %vm2375, %vm2375
    %vm2392 = vmpackc.low %vm2376, %vm2376
    %vm2393 = vmpackc.low %vm2377, %vm2377
    %vm2394 = vmpackc.low %vm2378, %vm2378
    %vm2395 = vmpackc.low %vm2379, %vm2379
    %v2396 = vsel %vm2380, %v2162, 0
    %v2397 = vsel %vm2381, %v2163, 0
    %v2398 = vsel %vm2382, %v2164, 0
    %v2399 = vsel %vm2383, %v2165, 0
    %v2400 = vsel %vm2384, %v2166, 0
    %v2401 = vsel %vm2385, %v2167, 0
    %v2402 = vsel %vm2386, %v2168, 0
    %v2403 = vsel %vm2387, %v2169, 0
    %v2404 = vsel %vm2388, %v2170, 0
    %v2405 = vsel %vm2389, %v2171, 0
    %v2406 = vsel %vm2390, %v2172, 0
    %v2407 = vsel %vm2391, %v2173, 0
    %v2408 = vsel %vm2392, %v2174, 0
    %v2409 = vsel %vm2393, %v2175, 0
    %v2410 = vsel %vm2394, %v2176, 0
    %v2411 = vsel %vm2395, %v2177, 0
    %v2412 = vld [vmem:[#allocation13] sm:$0xf]
    %v2413 = vld [vmem:[#allocation13 + $0x4] sm:$0xf]
    %v2414 = vld [vmem:[#allocation13 + $0x8] sm:$0xf]
    %v2415 = vld [vmem:[#allocation13 + $0xc] sm:$0xf]
    %v2416 = vld [vmem:[#allocation13 + $0x10] sm:$0xf]
    %v2417 = vld [vmem:[#allocation13 + $0x14] sm:$0xf]
    %v2418 = vld [vmem:[#allocation13 + $0x18] sm:$0xf]
    %v2419 = vld [vmem:[#allocation13 + $0x1c] sm:$0xf]
    %v2420 = vld [vmem:[#allocation13 + $0x20] sm:$0xf]
    %v2421 = vld [vmem:[#allocation13 + $0x24] sm:$0xf]
    %v2422 = vld [vmem:[#allocation13 + $0x28] sm:$0xf]
    %v2423 = vld [vmem:[#allocation13 + $0x2c] sm:$0xf]
    %v2424 = vld [vmem:[#allocation13 + $0x30] sm:$0xf]
    %v2425 = vld [vmem:[#allocation13 + $0x34] sm:$0xf]
    %v2426 = vld [vmem:[#allocation13 + $0x38] sm:$0xf]
    %v2427 = vld [vmem:[#allocation13 + $0x3c] sm:$0xf]
    %v2428 = vld [vmem:[#allocation13 + $0x40] sm:$0xf]
    %v2429 = vld [vmem:[#allocation13 + $0x44] sm:$0xf]
    %v2430 = vld [vmem:[#allocation13 + $0x48] sm:$0xf]
    %v2431 = vld [vmem:[#allocation13 + $0x4c] sm:$0xf]
    %v2432 = vld [vmem:[#allocation13 + $0x50] sm:$0xf]
    %v2433 = vld [vmem:[#allocation13 + $0x54] sm:$0xf]
    %v2434 = vld [vmem:[#allocation13 + $0x58] sm:$0xf]
    %v2435 = vld [vmem:[#allocation13 + $0x5c] sm:$0xf]
    %v2436 = vld [vmem:[#allocation13 + $0x60] sm:$0xf]
    %v2437 = vld [vmem:[#allocation13 + $0x64] sm:$0xf]
    %v2438 = vld [vmem:[#allocation13 + $0x68] sm:$0xf]
    %v2439 = vld [vmem:[#allocation13 + $0x6c] sm:$0xf]
    %v2440 = vld [vmem:[#allocation13 + $0x70] sm:$0xf]
    %v2441 = vld [vmem:[#allocation13 + $0x74] sm:$0xf]
    %v2442 = vld [vmem:[#allocation13 + $0x78] sm:$0xf]
    %v2443 = vld [vmem:[#allocation13 + $0x7c] sm:$0xf]
    %v2444 = vld [vmem:[#allocation13 + $0x80] sm:$0xf]
    %v2445 = vld [vmem:[#allocation13 + $0x84] sm:$0xf]
    %v2446 = vld [vmem:[#allocation13 + $0x88] sm:$0xf]
    %v2447 = vld [vmem:[#allocation13 + $0x8c] sm:$0xf]
    %v2448 = vld [vmem:[#allocation13 + $0x90] sm:$0xf]
    %v2449 = vld [vmem:[#allocation13 + $0x94] sm:$0xf]
    %v2450 = vld [vmem:[#allocation13 + $0x98] sm:$0xf]
    %v2451 = vld [vmem:[#allocation13 + $0x9c] sm:$0xf]
    %v2452 = vld [vmem:[#allocation13 + $0xa0] sm:$0xf]
    %v2453 = vld [vmem:[#allocation13 + $0xa4] sm:$0xf]
    %v2454 = vld [vmem:[#allocation13 + $0xa8] sm:$0xf]
    %v2455 = vld [vmem:[#allocation13 + $0xac] sm:$0xf]
    %v2456 = vld [vmem:[#allocation13 + $0xb0] sm:$0xf]
    %v2457 = vld [vmem:[#allocation13 + $0xb4] sm:$0xf]
    %v2458 = vld [vmem:[#allocation13 + $0xb8] sm:$0xf]
    %v2459 = vld [vmem:[#allocation13 + $0xbc] sm:$0xf]
    %v2460 = vld [vmem:[#allocation13 + $0xc0] sm:$0xf]
    %v2461 = vld [vmem:[#allocation13 + $0xc4] sm:$0xf]
    %v2462 = vld [vmem:[#allocation13 + $0xc8] sm:$0xf]
    %v2463 = vld [vmem:[#allocation13 + $0xcc] sm:$0xf]
    %v2464 = vld [vmem:[#allocation13 + $0xd0] sm:$0xf]
    %v2465 = vld [vmem:[#allocation13 + $0xd4] sm:$0xf]
    %v2466 = vld [vmem:[#allocation13 + $0xd8] sm:$0xf]
    %v2467 = vld [vmem:[#allocation13 + $0xdc] sm:$0xf]
    %v2468 = vld [vmem:[#allocation13 + $0xe0] sm:$0xf]
    %v2469 = vld [vmem:[#allocation13 + $0xe4] sm:$0xf]
    %v2470 = vld [vmem:[#allocation13 + $0xe8] sm:$0xf]
    %v2471 = vld [vmem:[#allocation13 + $0xec] sm:$0xf]
    %v2472 = vld [vmem:[#allocation13 + $0xf0] sm:$0xf]
    %v2473 = vld [vmem:[#allocation13 + $0xf4] sm:$0xf]
    %v2474 = vld [vmem:[#allocation13 + $0xf8] sm:$0xf]
    %v2475 = vld [vmem:[#allocation13 + $0xfc] sm:$0xf]
    %v2476 = vld [vmem:[#allocation13 + $0x100] sm:$0xf]
    %v2477 = vld [vmem:[#allocation13 + $0x104] sm:$0xf]
    %v2478 = vld [vmem:[#allocation13 + $0x108] sm:$0xf]
    %v2479 = vld [vmem:[#allocation13 + $0x10c] sm:$0xf]
    %v2480 = vld [vmem:[#allocation13 + $0x110] sm:$0xf]
    %v2481 = vld [vmem:[#allocation13 + $0x114] sm:$0xf]
    %v2482 = vld [vmem:[#allocation13 + $0x118] sm:$0xf]
    %v2483 = vld [vmem:[#allocation13 + $0x11c] sm:$0xf]
    %v2484 = vld [vmem:[#allocation13 + $0x120] sm:$0xf]
    %v2485 = vld [vmem:[#allocation13 + $0x124] sm:$0xf]
    %v2486 = vld [vmem:[#allocation13 + $0x128] sm:$0xf]
    %v2487 = vld [vmem:[#allocation13 + $0x12c] sm:$0xf]
    %v2488 = vld [vmem:[#allocation13 + $0x130] sm:$0xf]
    %v2489 = vld [vmem:[#allocation13 + $0x134] sm:$0xf]
    %v2490 = vld [vmem:[#allocation13 + $0x138] sm:$0xf]
    %v2491 = vld [vmem:[#allocation13 + $0x13c] sm:$0xf]
    %v2492 = vld [vmem:[#allocation13 + $0x140] sm:$0xf]
    %v2493 = vld [vmem:[#allocation13 + $0x144] sm:$0xf]
    %v2494 = vld [vmem:[#allocation13 + $0x148] sm:$0xf]
    %v2495 = vld [vmem:[#allocation13 + $0x14c] sm:$0xf]
    %v2496 = vld [vmem:[#allocation13 + $0x150] sm:$0xf]
    %v2497 = vld [vmem:[#allocation13 + $0x154] sm:$0xf]
    %v2498 = vld [vmem:[#allocation13 + $0x158] sm:$0xf]
    %v2499 = vld [vmem:[#allocation13 + $0x15c] sm:$0xf]
    %v2500 = vld [vmem:[#allocation13 + $0x160] sm:$0xf]
    %v2501 = vld [vmem:[#allocation13 + $0x164] sm:$0xf]
    %v2502 = vld [vmem:[#allocation13 + $0x168] sm:$0xf]
    %v2503 = vld [vmem:[#allocation13 + $0x16c] sm:$0xf]
    %v2504 = vld [vmem:[#allocation13 + $0x170] sm:$0xf]
    %v2505 = vld [vmem:[#allocation13 + $0x174] sm:$0xf]
    %v2506 = vld [vmem:[#allocation13 + $0x178] sm:$0xf]
    %v2507 = vld [vmem:[#allocation13 + $0x17c] sm:$0xf]
    %v2508 = vld [vmem:[#allocation13 + $0x180] sm:$0xf]
    %v2509 = vld [vmem:[#allocation13 + $0x184] sm:$0xf]
    %v2510 = vld [vmem:[#allocation13 + $0x188] sm:$0xf]
    %v2511 = vld [vmem:[#allocation13 + $0x18c] sm:$0xf]
    %v2512 = vld [vmem:[#allocation13 + $0x190] sm:$0xf]
    %v2513 = vld [vmem:[#allocation13 + $0x194] sm:$0xf]
    %v2514 = vld [vmem:[#allocation13 + $0x198] sm:$0xf]
    %v2515 = vld [vmem:[#allocation13 + $0x19c] sm:$0xf]
    %v2516 = vld [vmem:[#allocation13 + $0x1a0] sm:$0xf]
    %v2517 = vld [vmem:[#allocation13 + $0x1a4] sm:$0xf]
    %v2518 = vld [vmem:[#allocation13 + $0x1a8] sm:$0xf]
    %v2519 = vld [vmem:[#allocation13 + $0x1ac] sm:$0xf]
    %v2520 = vld [vmem:[#allocation13 + $0x1b0] sm:$0xf]
    %v2521 = vld [vmem:[#allocation13 + $0x1b4] sm:$0xf]
    %v2522 = vld [vmem:[#allocation13 + $0x1b8] sm:$0xf]
    %v2523 = vld [vmem:[#allocation13 + $0x1bc] sm:$0xf]
    %v2524 = vld [vmem:[#allocation13 + $0x1c0] sm:$0xf]
    %v2525 = vld [vmem:[#allocation13 + $0x1c4] sm:$0xf]
    %v2526 = vld [vmem:[#allocation13 + $0x1c8] sm:$0xf]
    %v2527 = vld [vmem:[#allocation13 + $0x1cc] sm:$0xf]
    %v2528 = vld [vmem:[#allocation13 + $0x1d0] sm:$0xf]
    %v2529 = vld [vmem:[#allocation13 + $0x1d4] sm:$0xf]
    %v2530 = vld [vmem:[#allocation13 + $0x1d8] sm:$0xf]
    %v2531 = vld [vmem:[#allocation13 + $0x1dc] sm:$0xf]
    %v2532 = vld [vmem:[#allocation13 + $0x1e0] sm:$0xf]
    %v2533 = vld [vmem:[#allocation13 + $0x1e4] sm:$0xf]
    %v2534 = vld [vmem:[#allocation13 + $0x1e8] sm:$0xf]
    %v2535 = vld [vmem:[#allocation13 + $0x1ec] sm:$0xf]
    %v2536 = vld [vmem:[#allocation13 + $0x1f0] sm:$0xf]
    %v2537 = vld [vmem:[#allocation13 + $0x1f4] sm:$0xf]
    %v2538 = vld [vmem:[#allocation13 + $0x1f8] sm:$0xf]
    %v2539 = vld [vmem:[#allocation13 + $0x1fc] sm:$0xf]
    %v2540 = vld [vmem:[#allocation13 + $0x200] sm:$0xf]
    %v2541 = vld [vmem:[#allocation13 + $0x204] sm:$0xf]
    %v2542 = vld [vmem:[#allocation13 + $0x208] sm:$0xf]
    %v2543 = vld [vmem:[#allocation13 + $0x20c] sm:$0xf]
    %v2544 = vld [vmem:[#allocation13 + $0x210] sm:$0xf]
    %v2545 = vld [vmem:[#allocation13 + $0x214] sm:$0xf]
    %v2546 = vld [vmem:[#allocation13 + $0x218] sm:$0xf]
    %v2547 = vld [vmem:[#allocation13 + $0x21c] sm:$0xf]
    %v2548 = vld [vmem:[#allocation13 + $0x220] sm:$0xf]
    %v2549 = vld [vmem:[#allocation13 + $0x224] sm:$0xf]
    %v2550 = vld [vmem:[#allocation13 + $0x228] sm:$0xf]
    %v2551 = vld [vmem:[#allocation13 + $0x22c] sm:$0xf]
    %v2552 = vld [vmem:[#allocation13 + $0x230] sm:$0xf]
    %v2553 = vld [vmem:[#allocation13 + $0x234] sm:$0xf]
    %v2554 = vld [vmem:[#allocation13 + $0x238] sm:$0xf]
    %v2555 = vld [vmem:[#allocation13 + $0x23c] sm:$0xf]
    %v2556 = vld [vmem:[#allocation13 + $0x240] sm:$0xf]
    %v2557 = vld [vmem:[#allocation13 + $0x244] sm:$0xf]
    %v2558 = vld [vmem:[#allocation13 + $0x248] sm:$0xf]
    %v2559 = vld [vmem:[#allocation13 + $0x24c] sm:$0xf]
    %v2560 = vld [vmem:[#allocation13 + $0x250] sm:$0xf]
    %v2561 = vld [vmem:[#allocation13 + $0x254] sm:$0xf]
    %v2562 = vld [vmem:[#allocation13 + $0x258] sm:$0xf]
    %v2563 = vld [vmem:[#allocation13 + $0x25c] sm:$0xf]
    %v2564 = vld [vmem:[#allocation13 + $0x260] sm:$0xf]
    %v2565 = vld [vmem:[#allocation13 + $0x264] sm:$0xf]
    %v2566 = vld [vmem:[#allocation13 + $0x268] sm:$0xf]
    %v2567 = vld [vmem:[#allocation13 + $0x26c] sm:$0xf]
    %v2568 = vld [vmem:[#allocation13 + $0x270] sm:$0xf]
    %v2569 = vld [vmem:[#allocation13 + $0x274] sm:$0xf]
    %v2570 = vld [vmem:[#allocation13 + $0x278] sm:$0xf]
    %v2571 = vld [vmem:[#allocation13 + $0x27c] sm:$0xf]
    %v2572 = vld [vmem:[#allocation13 + $0x280] sm:$0xf]
    %v2573 = vld [vmem:[#allocation13 + $0x284] sm:$0xf]
    %v2574 = vld [vmem:[#allocation13 + $0x288] sm:$0xf]
    %v2575 = vld [vmem:[#allocation13 + $0x28c] sm:$0xf]
    %v2576 = vld [vmem:[#allocation13 + $0x290] sm:$0xf]
    %v2577 = vld [vmem:[#allocation13 + $0x294] sm:$0xf]
    %v2578 = vld [vmem:[#allocation13 + $0x298] sm:$0xf]
    %v2579 = vld [vmem:[#allocation13 + $0x29c] sm:$0xf]
    %v2580 = vld [vmem:[#allocation13 + $0x2a0] sm:$0xf]
    %v2581 = vld [vmem:[#allocation13 + $0x2a4] sm:$0xf]
    %v2582 = vld [vmem:[#allocation13 + $0x2a8] sm:$0xf]
    %v2583 = vld [vmem:[#allocation13 + $0x2ac] sm:$0xf]
    %v2584 = vld [vmem:[#allocation13 + $0x2b0] sm:$0xf]
    %v2585 = vld [vmem:[#allocation13 + $0x2b4] sm:$0xf]
    %v2586 = vld [vmem:[#allocation13 + $0x2b8] sm:$0xf]
    %v2587 = vld [vmem:[#allocation13 + $0x2bc] sm:$0xf]
    %v2588 = vld [vmem:[#allocation13 + $0x2c0] sm:$0xf]
    %v2589 = vld [vmem:[#allocation13 + $0x2c4] sm:$0xf]
    %v2590 = vld [vmem:[#allocation13 + $0x2c8] sm:$0xf]
    %v2591 = vld [vmem:[#allocation13 + $0x2cc] sm:$0xf]
    %v2592 = vld [vmem:[#allocation13 + $0x2d0] sm:$0xf]
    %v2593 = vld [vmem:[#allocation13 + $0x2d4] sm:$0xf]
    %v2594 = vld [vmem:[#allocation13 + $0x2d8] sm:$0xf]
    %v2595 = vld [vmem:[#allocation13 + $0x2dc] sm:$0xf]
    %v2596 = vld [vmem:[#allocation13 + $0x2e0] sm:$0xf]
    %v2597 = vld [vmem:[#allocation13 + $0x2e4] sm:$0xf]
    %v2598 = vld [vmem:[#allocation13 + $0x2e8] sm:$0xf]
    %v2599 = vld [vmem:[#allocation13 + $0x2ec] sm:$0xf]
    %v2600 = vld [vmem:[#allocation13 + $0x2f0] sm:$0xf]
    %v2601 = vld [vmem:[#allocation13 + $0x2f4] sm:$0xf]
    %v2602 = vld [vmem:[#allocation13 + $0x2f8] sm:$0xf]
    %v2603 = vld [vmem:[#allocation13 + $0x2fc] sm:$0xf]
    %v2604 = vld [vmem:[#allocation13 + $0x300] sm:$0xf]
    %v2605 = vld [vmem:[#allocation13 + $0x304] sm:$0xf]
    %v2606 = vld [vmem:[#allocation13 + $0x308] sm:$0xf]
    %v2607 = vld [vmem:[#allocation13 + $0x30c] sm:$0xf]
    %v2608 = vld [vmem:[#allocation13 + $0x310] sm:$0xf]
    %v2609 = vld [vmem:[#allocation13 + $0x314] sm:$0xf]
    %v2610 = vld [vmem:[#allocation13 + $0x318] sm:$0xf]
    %v2611 = vld [vmem:[#allocation13 + $0x31c] sm:$0xf]
    %v2612 = vld [vmem:[#allocation13 + $0x320] sm:$0xf]
    %v2613 = vld [vmem:[#allocation13 + $0x324] sm:$0xf]
    %v2614 = vld [vmem:[#allocation13 + $0x328] sm:$0xf]
    %v2615 = vld [vmem:[#allocation13 + $0x32c] sm:$0xf]
    %v2616 = vld [vmem:[#allocation13 + $0x330] sm:$0xf]
    %v2617 = vld [vmem:[#allocation13 + $0x334] sm:$0xf]
    %v2618 = vld [vmem:[#allocation13 + $0x338] sm:$0xf]
    %v2619 = vld [vmem:[#allocation13 + $0x33c] sm:$0xf]
    %v2620 = vld [vmem:[#allocation13 + $0x340] sm:$0xf]
    %v2621 = vld [vmem:[#allocation13 + $0x344] sm:$0xf]
    %v2622 = vld [vmem:[#allocation13 + $0x348] sm:$0xf]
    %v2623 = vld [vmem:[#allocation13 + $0x34c] sm:$0xf]
    %v2624 = vld [vmem:[#allocation13 + $0x350] sm:$0xf]
    %v2625 = vld [vmem:[#allocation13 + $0x354] sm:$0xf]
    %v2626 = vld [vmem:[#allocation13 + $0x358] sm:$0xf]
    %v2627 = vld [vmem:[#allocation13 + $0x35c] sm:$0xf]
    %v2628 = vld [vmem:[#allocation13 + $0x360] sm:$0xf]
    %v2629 = vld [vmem:[#allocation13 + $0x364] sm:$0xf]
    %v2630 = vld [vmem:[#allocation13 + $0x368] sm:$0xf]
    %v2631 = vld [vmem:[#allocation13 + $0x36c] sm:$0xf]
    %v2632 = vld [vmem:[#allocation13 + $0x370] sm:$0xf]
    %v2633 = vld [vmem:[#allocation13 + $0x374] sm:$0xf]
    %v2634 = vld [vmem:[#allocation13 + $0x378] sm:$0xf]
    %v2635 = vld [vmem:[#allocation13 + $0x37c] sm:$0xf]
    %v2636 = vld [vmem:[#allocation13 + $0x380] sm:$0xf]
    %v2637 = vld [vmem:[#allocation13 + $0x384] sm:$0xf]
    %v2638 = vld [vmem:[#allocation13 + $0x388] sm:$0xf]
    %v2639 = vld [vmem:[#allocation13 + $0x38c] sm:$0xf]
    %v2640 = vld [vmem:[#allocation13 + $0x390] sm:$0xf]
    %v2641 = vld [vmem:[#allocation13 + $0x394] sm:$0xf]
    %v2642 = vld [vmem:[#allocation13 + $0x398] sm:$0xf]
    %v2643 = vld [vmem:[#allocation13 + $0x39c] sm:$0xf]
    %v2644 = vld [vmem:[#allocation13 + $0x3a0] sm:$0xf]
    %v2645 = vld [vmem:[#allocation13 + $0x3a4] sm:$0xf]
    %v2646 = vld [vmem:[#allocation13 + $0x3a8] sm:$0xf]
    %v2647 = vld [vmem:[#allocation13 + $0x3ac] sm:$0xf]
    %v2648 = vld [vmem:[#allocation13 + $0x3b0] sm:$0xf]
    %v2649 = vld [vmem:[#allocation13 + $0x3b4] sm:$0xf]
    %v2650 = vld [vmem:[#allocation13 + $0x3b8] sm:$0xf]
    %v2651 = vld [vmem:[#allocation13 + $0x3bc] sm:$0xf]
    %v2652 = vld [vmem:[#allocation13 + $0x3c0] sm:$0xf]
    %v2653 = vld [vmem:[#allocation13 + $0x3c4] sm:$0xf]
    %v2654 = vld [vmem:[#allocation13 + $0x3c8] sm:$0xf]
    %v2655 = vld [vmem:[#allocation13 + $0x3cc] sm:$0xf]
    %v2656 = vld [vmem:[#allocation13 + $0x3d0] sm:$0xf]
    %v2657 = vld [vmem:[#allocation13 + $0x3d4] sm:$0xf]
    %v2658 = vld [vmem:[#allocation13 + $0x3d8] sm:$0xf]
    %v2659 = vld [vmem:[#allocation13 + $0x3dc] sm:$0xf]
    %v2660 = vld [vmem:[#allocation13 + $0x3e0] sm:$0xf]
    %v2661 = vld [vmem:[#allocation13 + $0x3e4] sm:$0xf]
    %v2662 = vld [vmem:[#allocation13 + $0x3e8] sm:$0xf]
    %v2663 = vld [vmem:[#allocation13 + $0x3ec] sm:$0xf]
    %v2664 = vld [vmem:[#allocation13 + $0x3f0] sm:$0xf]
    %v2665 = vld [vmem:[#allocation13 + $0x3f4] sm:$0xf]
    %v2666 = vld [vmem:[#allocation13 + $0x3f8] sm:$0xf]
    %v2667 = vld [vmem:[#allocation13 + $0x3fc] sm:$0xf]
    %v2924 = vunpack.c.l.b16 %v2412
    %v2925 = vunpack.c.l.b16 %v2413
    %v2926 = vunpack.c.l.b16 %v2414
    %v2927 = vunpack.c.l.b16 %v2415
    %v2928 = vunpack.c.l.b16 %v2416
    %v2929 = vunpack.c.l.b16 %v2417
    %v2930 = vunpack.c.l.b16 %v2418
    %v2931 = vunpack.c.l.b16 %v2419
    %v2932 = vunpack.c.l.b16 %v2420
    %v2933 = vunpack.c.l.b16 %v2421
    %v2934 = vunpack.c.l.b16 %v2422
    %v2935 = vunpack.c.l.b16 %v2423
    %v2936 = vunpack.c.l.b16 %v2424
    %v2937 = vunpack.c.l.b16 %v2425
    %v2938 = vunpack.c.l.b16 %v2426
    %v2939 = vunpack.c.l.b16 %v2427
    %v2940 = vunpack.c.l.b16 %v2428
    %v2941 = vunpack.c.l.b16 %v2429
    %v2942 = vunpack.c.l.b16 %v2430
    %v2943 = vunpack.c.l.b16 %v2431
    %v2944 = vunpack.c.l.b16 %v2432
    %v2945 = vunpack.c.l.b16 %v2433
    %v2946 = vunpack.c.l.b16 %v2434
    %v2947 = vunpack.c.l.b16 %v2435
    %v2948 = vunpack.c.l.b16 %v2436
    %v2949 = vunpack.c.l.b16 %v2437
    %v2950 = vunpack.c.l.b16 %v2438
    %v2951 = vunpack.c.l.b16 %v2439
    %v2952 = vunpack.c.l.b16 %v2440
    %v2953 = vunpack.c.l.b16 %v2441
    %v2954 = vunpack.c.l.b16 %v2442
    %v2955 = vunpack.c.l.b16 %v2443
    %v2956 = vunpack.c.l.b16 %v2444
    %v2957 = vunpack.c.l.b16 %v2445
    %v2958 = vunpack.c.l.b16 %v2446
    %v2959 = vunpack.c.l.b16 %v2447
    %v2960 = vunpack.c.l.b16 %v2448
    %v2961 = vunpack.c.l.b16 %v2449
    %v2962 = vunpack.c.l.b16 %v2450
    %v2963 = vunpack.c.l.b16 %v2451
    %v2964 = vunpack.c.l.b16 %v2452
    %v2965 = vunpack.c.l.b16 %v2453
    %v2966 = vunpack.c.l.b16 %v2454
    %v2967 = vunpack.c.l.b16 %v2455
    %v2968 = vunpack.c.l.b16 %v2456
    %v2969 = vunpack.c.l.b16 %v2457
    %v2970 = vunpack.c.l.b16 %v2458
    %v2971 = vunpack.c.l.b16 %v2459
    %v2972 = vunpack.c.l.b16 %v2460
    %v2973 = vunpack.c.l.b16 %v2461
    %v2974 = vunpack.c.l.b16 %v2462
    %v2975 = vunpack.c.l.b16 %v2463
    %v2976 = vunpack.c.l.b16 %v2464
    %v2977 = vunpack.c.l.b16 %v2465
    %v2978 = vunpack.c.l.b16 %v2466
    %v2979 = vunpack.c.l.b16 %v2467
    %v2980 = vunpack.c.l.b16 %v2468
    %v2981 = vunpack.c.l.b16 %v2469
    %v2982 = vunpack.c.l.b16 %v2470
    %v2983 = vunpack.c.l.b16 %v2471
    %v2984 = vunpack.c.l.b16 %v2472
    %v2985 = vunpack.c.l.b16 %v2473
    %v2986 = vunpack.c.l.b16 %v2474
    %v2987 = vunpack.c.l.b16 %v2475
    %v2988 = vunpack.c.l.b16 %v2476
    %v2989 = vunpack.c.l.b16 %v2477
    %v2990 = vunpack.c.l.b16 %v2478
    %v2991 = vunpack.c.l.b16 %v2479
    %v2992 = vunpack.c.l.b16 %v2480
    %v2993 = vunpack.c.l.b16 %v2481
    %v2994 = vunpack.c.l.b16 %v2482
    %v2995 = vunpack.c.l.b16 %v2483
    %v2996 = vunpack.c.l.b16 %v2484
    %v2997 = vunpack.c.l.b16 %v2485
    %v2998 = vunpack.c.l.b16 %v2486
    %v2999 = vunpack.c.l.b16 %v2487
    %v3000 = vunpack.c.l.b16 %v2488
    %v3001 = vunpack.c.l.b16 %v2489
    %v3002 = vunpack.c.l.b16 %v2490
    %v3003 = vunpack.c.l.b16 %v2491
    %v3004 = vunpack.c.l.b16 %v2492
    %v3005 = vunpack.c.l.b16 %v2493
    %v3006 = vunpack.c.l.b16 %v2494
    %v3007 = vunpack.c.l.b16 %v2495
    %v3008 = vunpack.c.l.b16 %v2496
    %v3009 = vunpack.c.l.b16 %v2497
    %v3010 = vunpack.c.l.b16 %v2498
    %v3011 = vunpack.c.l.b16 %v2499
    %v3012 = vunpack.c.l.b16 %v2500
    %v3013 = vunpack.c.l.b16 %v2501
    %v3014 = vunpack.c.l.b16 %v2502
    %v3015 = vunpack.c.l.b16 %v2503
    %v3016 = vunpack.c.l.b16 %v2504
    %v3017 = vunpack.c.l.b16 %v2505
    %v3018 = vunpack.c.l.b16 %v2506
    %v3019 = vunpack.c.l.b16 %v2507
    %v3020 = vunpack.c.l.b16 %v2508
    %v3021 = vunpack.c.l.b16 %v2509
    %v3022 = vunpack.c.l.b16 %v2510
    %v3023 = vunpack.c.l.b16 %v2511
    %v3024 = vunpack.c.l.b16 %v2512
    %v3025 = vunpack.c.l.b16 %v2513
    %v3026 = vunpack.c.l.b16 %v2514
    %v3027 = vunpack.c.l.b16 %v2515
    %v3028 = vunpack.c.l.b16 %v2516
    %v3029 = vunpack.c.l.b16 %v2517
    %v3030 = vunpack.c.l.b16 %v2518
    %v3031 = vunpack.c.l.b16 %v2519
    %v3032 = vunpack.c.l.b16 %v2520
    %v3033 = vunpack.c.l.b16 %v2521
    %v3034 = vunpack.c.l.b16 %v2522
    %v3035 = vunpack.c.l.b16 %v2523
    %v3036 = vunpack.c.l.b16 %v2524
    %v3037 = vunpack.c.l.b16 %v2525
    %v3038 = vunpack.c.l.b16 %v2526
    %v3039 = vunpack.c.l.b16 %v2527
    %v3040 = vunpack.c.l.b16 %v2528
    %v3041 = vunpack.c.l.b16 %v2529
    %v3042 = vunpack.c.l.b16 %v2530
    %v3043 = vunpack.c.l.b16 %v2531
    %v3044 = vunpack.c.l.b16 %v2532
    %v3045 = vunpack.c.l.b16 %v2533
    %v3046 = vunpack.c.l.b16 %v2534
    %v3047 = vunpack.c.l.b16 %v2535
    %v3048 = vunpack.c.l.b16 %v2536
    %v3049 = vunpack.c.l.b16 %v2537
    %v3050 = vunpack.c.l.b16 %v2538
    %v3051 = vunpack.c.l.b16 %v2539
    %v3052 = vunpack.c.l.b16 %v2540
    %v3053 = vunpack.c.l.b16 %v2541
    %v3054 = vunpack.c.l.b16 %v2542
    %v3055 = vunpack.c.l.b16 %v2543
    %v3056 = vunpack.c.l.b16 %v2544
    %v3057 = vunpack.c.l.b16 %v2545
    %v3058 = vunpack.c.l.b16 %v2546
    %v3059 = vunpack.c.l.b16 %v2547
    %v3060 = vunpack.c.l.b16 %v2548
    %v3061 = vunpack.c.l.b16 %v2549
    %v3062 = vunpack.c.l.b16 %v2550
    %v3063 = vunpack.c.l.b16 %v2551
    %v3064 = vunpack.c.l.b16 %v2552
    %v3065 = vunpack.c.l.b16 %v2553
    %v3066 = vunpack.c.l.b16 %v2554
    %v3067 = vunpack.c.l.b16 %v2555
    %v3068 = vunpack.c.l.b16 %v2556
    %v3069 = vunpack.c.l.b16 %v2557
    %v3070 = vunpack.c.l.b16 %v2558
    %v3071 = vunpack.c.l.b16 %v2559
    %v3072 = vunpack.c.l.b16 %v2560
    %v3073 = vunpack.c.l.b16 %v2561
    %v3074 = vunpack.c.l.b16 %v2562
    %v3075 = vunpack.c.l.b16 %v2563
    %v3076 = vunpack.c.l.b16 %v2564
    %v3077 = vunpack.c.l.b16 %v2565
    %v3078 = vunpack.c.l.b16 %v2566
    %v3079 = vunpack.c.l.b16 %v2567
    %v3080 = vunpack.c.l.b16 %v2568
    %v3081 = vunpack.c.l.b16 %v2569
    %v3082 = vunpack.c.l.b16 %v2570
    %v3083 = vunpack.c.l.b16 %v2571
    %v3084 = vunpack.c.l.b16 %v2572
    %v3085 = vunpack.c.l.b16 %v2573
    %v3086 = vunpack.c.l.b16 %v2574
    %v3087 = vunpack.c.l.b16 %v2575
    %v3088 = vunpack.c.l.b16 %v2576
    %v3089 = vunpack.c.l.b16 %v2577
    %v3090 = vunpack.c.l.b16 %v2578
    %v3091 = vunpack.c.l.b16 %v2579
    %v3092 = vunpack.c.l.b16 %v2580
    %v3093 = vunpack.c.l.b16 %v2581
    %v3094 = vunpack.c.l.b16 %v2582
    %v3095 = vunpack.c.l.b16 %v2583
    %v3096 = vunpack.c.l.b16 %v2584
    %v3097 = vunpack.c.l.b16 %v2585
    %v3098 = vunpack.c.l.b16 %v2586
    %v3099 = vunpack.c.l.b16 %v2587
    %v3100 = vunpack.c.l.b16 %v2588
    %v3101 = vunpack.c.l.b16 %v2589
    %v3102 = vunpack.c.l.b16 %v2590
    %v3103 = vunpack.c.l.b16 %v2591
    %v3104 = vunpack.c.l.b16 %v2592
    %v3105 = vunpack.c.l.b16 %v2593
    %v3106 = vunpack.c.l.b16 %v2594
    %v3107 = vunpack.c.l.b16 %v2595
    %v3108 = vunpack.c.l.b16 %v2596
    %v3109 = vunpack.c.l.b16 %v2597
    %v3110 = vunpack.c.l.b16 %v2598
    %v3111 = vunpack.c.l.b16 %v2599
    %v3112 = vunpack.c.l.b16 %v2600
    %v3113 = vunpack.c.l.b16 %v2601
    %v3114 = vunpack.c.l.b16 %v2602
    %v3115 = vunpack.c.l.b16 %v2603
    %v3116 = vunpack.c.l.b16 %v2604
    %v3117 = vunpack.c.l.b16 %v2605
    %v3118 = vunpack.c.l.b16 %v2606
    %v3119 = vunpack.c.l.b16 %v2607
    %v3120 = vunpack.c.l.b16 %v2608
    %v3121 = vunpack.c.l.b16 %v2609
    %v3122 = vunpack.c.l.b16 %v2610
    %v3123 = vunpack.c.l.b16 %v2611
    %v3124 = vunpack.c.l.b16 %v2612
    %v3125 = vunpack.c.l.b16 %v2613
    %v3126 = vunpack.c.l.b16 %v2614
    %v3127 = vunpack.c.l.b16 %v2615
    %v3128 = vunpack.c.l.b16 %v2616
    %v3129 = vunpack.c.l.b16 %v2617
    %v3130 = vunpack.c.l.b16 %v2618
    %v3131 = vunpack.c.l.b16 %v2619
    %v3132 = vunpack.c.l.b16 %v2620
    %v3133 = vunpack.c.l.b16 %v2621
    %v3134 = vunpack.c.l.b16 %v2622
    %v3135 = vunpack.c.l.b16 %v2623
    %v3136 = vunpack.c.l.b16 %v2624
    %v3137 = vunpack.c.l.b16 %v2625
    %v3138 = vunpack.c.l.b16 %v2626
    %v3139 = vunpack.c.l.b16 %v2627
    %v3140 = vunpack.c.l.b16 %v2628
    %v3141 = vunpack.c.l.b16 %v2629
    %v3142 = vunpack.c.l.b16 %v2630
    %v3143 = vunpack.c.l.b16 %v2631
    %v3144 = vunpack.c.l.b16 %v2632
    %v3145 = vunpack.c.l.b16 %v2633
    %v3146 = vunpack.c.l.b16 %v2634
    %v3147 = vunpack.c.l.b16 %v2635
    %v3148 = vunpack.c.l.b16 %v2636
    %v3149 = vunpack.c.l.b16 %v2637
    %v3150 = vunpack.c.l.b16 %v2638
    %v3151 = vunpack.c.l.b16 %v2639
    %v3152 = vunpack.c.l.b16 %v2640
    %v3153 = vunpack.c.l.b16 %v2641
    %v3154 = vunpack.c.l.b16 %v2642
    %v3155 = vunpack.c.l.b16 %v2643
    %v3156 = vunpack.c.l.b16 %v2644
    %v3157 = vunpack.c.l.b16 %v2645
    %v3158 = vunpack.c.l.b16 %v2646
    %v3159 = vunpack.c.l.b16 %v2647
    %v3160 = vunpack.c.l.b16 %v2648
    %v3161 = vunpack.c.l.b16 %v2649
    %v3162 = vunpack.c.l.b16 %v2650
    %v3163 = vunpack.c.l.b16 %v2651
    %v3164 = vunpack.c.l.b16 %v2652
    %v3165 = vunpack.c.l.b16 %v2653
    %v3166 = vunpack.c.l.b16 %v2654
    %v3167 = vunpack.c.l.b16 %v2655
    %v3168 = vunpack.c.l.b16 %v2656
    %v3169 = vunpack.c.l.b16 %v2657
    %v3170 = vunpack.c.l.b16 %v2658
    %v3171 = vunpack.c.l.b16 %v2659
    %v3172 = vunpack.c.l.b16 %v2660
    %v3173 = vunpack.c.l.b16 %v2661
    %v3174 = vunpack.c.l.b16 %v2662
    %v3175 = vunpack.c.l.b16 %v2663
    %v3176 = vunpack.c.l.b16 %v2664
    %v3177 = vunpack.c.l.b16 %v2665
    %v3178 = vunpack.c.l.b16 %v2666
    %v3179 = vunpack.c.l.b16 %v2667
    %v3180 = vpack.c.b16 %v2925, %v2924
    %v3181 = vpack.c.b16 %v2927, %v2926
    %v3182 = vpack.c.b16 %v2929, %v2928
    %v3183 = vpack.c.b16 %v2931, %v2930
    %v3184 = vpack.c.b16 %v2933, %v2932
    %v3185 = vpack.c.b16 %v2935, %v2934
    %v3186 = vpack.c.b16 %v2937, %v2936
    %v3187 = vpack.c.b16 %v2939, %v2938
    %v3188 = vpack.c.b16 %v2941, %v2940
    %v3189 = vpack.c.b16 %v2943, %v2942
    %v3190 = vpack.c.b16 %v2945, %v2944
    %v3191 = vpack.c.b16 %v2947, %v2946
    %v3192 = vpack.c.b16 %v2949, %v2948
    %v3193 = vpack.c.b16 %v2951, %v2950
    %v3194 = vpack.c.b16 %v2953, %v2952
    %v3195 = vpack.c.b16 %v2955, %v2954
    %v3196 = vpack.c.b16 %v2957, %v2956
    %v3197 = vpack.c.b16 %v2959, %v2958
    %v3198 = vpack.c.b16 %v2961, %v2960
    %v3199 = vpack.c.b16 %v2963, %v2962
    %v3200 = vpack.c.b16 %v2965, %v2964
    %v3201 = vpack.c.b16 %v2967, %v2966
    %v3202 = vpack.c.b16 %v2969, %v2968
    %v3203 = vpack.c.b16 %v2971, %v2970
    %v3204 = vpack.c.b16 %v2973, %v2972
    %v3205 = vpack.c.b16 %v2975, %v2974
    %v3206 = vpack.c.b16 %v2977, %v2976
    %v3207 = vpack.c.b16 %v2979, %v2978
    %v3208 = vpack.c.b16 %v2981, %v2980
    %v3209 = vpack.c.b16 %v2983, %v2982
    %v3210 = vpack.c.b16 %v2985, %v2984
    %v3211 = vpack.c.b16 %v2987, %v2986
    %v3212 = vpack.c.b16 %v2989, %v2988
    %v3213 = vpack.c.b16 %v2991, %v2990
    %v3214 = vpack.c.b16 %v2993, %v2992
    %v3215 = vpack.c.b16 %v2995, %v2994
    %v3216 = vpack.c.b16 %v2997, %v2996
    %v3217 = vpack.c.b16 %v2999, %v2998
    %v3218 = vpack.c.b16 %v3001, %v3000
    %v3219 = vpack.c.b16 %v3003, %v3002
    %v3220 = vpack.c.b16 %v3005, %v3004
    %v3221 = vpack.c.b16 %v3007, %v3006
    %v3222 = vpack.c.b16 %v3009, %v3008
    %v3223 = vpack.c.b16 %v3011, %v3010
    %v3224 = vpack.c.b16 %v3013, %v3012
    %v3225 = vpack.c.b16 %v3015, %v3014
    %v3226 = vpack.c.b16 %v3017, %v3016
    %v3227 = vpack.c.b16 %v3019, %v3018
    %v3228 = vpack.c.b16 %v3021, %v3020
    %v3229 = vpack.c.b16 %v3023, %v3022
    %v3230 = vpack.c.b16 %v3025, %v3024
    %v3231 = vpack.c.b16 %v3027, %v3026
    %v3232 = vpack.c.b16 %v3029, %v3028
    %v3233 = vpack.c.b16 %v3031, %v3030
    %v3234 = vpack.c.b16 %v3033, %v3032
    %v3235 = vpack.c.b16 %v3035, %v3034
    %v3236 = vpack.c.b16 %v3037, %v3036
    %v3237 = vpack.c.b16 %v3039, %v3038
    %v3238 = vpack.c.b16 %v3041, %v3040
    %v3239 = vpack.c.b16 %v3043, %v3042
    %v3240 = vpack.c.b16 %v3045, %v3044
    %v3241 = vpack.c.b16 %v3047, %v3046
    %v3242 = vpack.c.b16 %v3049, %v3048
    %v3243 = vpack.c.b16 %v3051, %v3050
    %v3244 = vpack.c.b16 %v3053, %v3052
    %v3245 = vpack.c.b16 %v3055, %v3054
    %v3246 = vpack.c.b16 %v3057, %v3056
    %v3247 = vpack.c.b16 %v3059, %v3058
    %v3248 = vpack.c.b16 %v3061, %v3060
    %v3249 = vpack.c.b16 %v3063, %v3062
    %v3250 = vpack.c.b16 %v3065, %v3064
    %v3251 = vpack.c.b16 %v3067, %v3066
    %v3252 = vpack.c.b16 %v3069, %v3068
    %v3253 = vpack.c.b16 %v3071, %v3070
    %v3254 = vpack.c.b16 %v3073, %v3072
    %v3255 = vpack.c.b16 %v3075, %v3074
    %v3256 = vpack.c.b16 %v3077, %v3076
    %v3257 = vpack.c.b16 %v3079, %v3078
    %v3258 = vpack.c.b16 %v3081, %v3080
    %v3259 = vpack.c.b16 %v3083, %v3082
    %v3260 = vpack.c.b16 %v3085, %v3084
    %v3261 = vpack.c.b16 %v3087, %v3086
    %v3262 = vpack.c.b16 %v3089, %v3088
    %v3263 = vpack.c.b16 %v3091, %v3090
    %v3264 = vpack.c.b16 %v3093, %v3092
    %v3265 = vpack.c.b16 %v3095, %v3094
    %v3266 = vpack.c.b16 %v3097, %v3096
    %v3267 = vpack.c.b16 %v3099, %v3098
    %v3268 = vpack.c.b16 %v3101, %v3100
    %v3269 = vpack.c.b16 %v3103, %v3102
    %v3270 = vpack.c.b16 %v3105, %v3104
    %v3271 = vpack.c.b16 %v3107, %v3106
    %v3272 = vpack.c.b16 %v3109, %v3108
    %v3273 = vpack.c.b16 %v3111, %v3110
    %v3274 = vpack.c.b16 %v3113, %v3112
    %v3275 = vpack.c.b16 %v3115, %v3114
    %v3276 = vpack.c.b16 %v3117, %v3116
    %v3277 = vpack.c.b16 %v3119, %v3118
    %v3278 = vpack.c.b16 %v3121, %v3120
    %v3279 = vpack.c.b16 %v3123, %v3122
    %v3280 = vpack.c.b16 %v3125, %v3124
    %v3281 = vpack.c.b16 %v3127, %v3126
    %v3282 = vpack.c.b16 %v3129, %v3128
    %v3283 = vpack.c.b16 %v3131, %v3130
    %v3284 = vpack.c.b16 %v3133, %v3132
    %v3285 = vpack.c.b16 %v3135, %v3134
    %v3286 = vpack.c.b16 %v3137, %v3136
    %v3287 = vpack.c.b16 %v3139, %v3138
    %v3288 = vpack.c.b16 %v3141, %v3140
    %v3289 = vpack.c.b16 %v3143, %v3142
    %v3290 = vpack.c.b16 %v3145, %v3144
    %v3291 = vpack.c.b16 %v3147, %v3146
    %v3292 = vpack.c.b16 %v3149, %v3148
    %v3293 = vpack.c.b16 %v3151, %v3150
    %v3294 = vpack.c.b16 %v3153, %v3152
    %v3295 = vpack.c.b16 %v3155, %v3154
    %v3296 = vpack.c.b16 %v3157, %v3156
    %v3297 = vpack.c.b16 %v3159, %v3158
    %v3298 = vpack.c.b16 %v3161, %v3160
    %v3299 = vpack.c.b16 %v3163, %v3162
    %v3300 = vpack.c.b16 %v3165, %v3164
    %v3301 = vpack.c.b16 %v3167, %v3166
    %v3302 = vpack.c.b16 %v3169, %v3168
    %v3303 = vpack.c.b16 %v3171, %v3170
    %v3304 = vpack.c.b16 %v3173, %v3172
    %v3305 = vpack.c.b16 %v3175, %v3174
    %v3306 = vpack.c.b16 %v3177, %v3176
    %v3307 = vpack.c.b16 %v3179, %v3178
    %3436 = vmatprep.subr.bf16.mxu0 0
    %3437 = vmatpush1.bf16.msra.mxu0 %v3187
    %3438 = vmatprep.subr.bf16.mxu0 0
    %3439 = vmatpush1.bf16.msra.mxu0 %v3186
    %3440 = vmatprep.subr.bf16.mxu0 0
    %3441 = vmatpush1.bf16.msra.mxu0 %v3185
    %3442 = vmatprep.subr.bf16.mxu0 0
    %3443 = vmatpush1.bf16.msra.mxu0 %v3184
    %3444 = vmatprep.subr.bf16.mxu0 0
    %3445 = vmatpush1.bf16.msra.mxu0 %v3183
    %3446 = vmatprep.subr.bf16.mxu0 0
    %3447 = vmatpush1.bf16.msra.mxu0 %v3182
    %3448 = vmatprep.subr.bf16.mxu0 0
    %3449 = vmatpush1.bf16.msra.mxu0 %v3181
    %3450 = vmatprep.subr.bf16.mxu0 0
    %3451 = vmatpush1.bf16.msra.mxu0 %v3180
    %3452 = vmatprep.subr.bf16.mxu0 0
    %3453 = vmatpush2.bf16.msra.mxu0 %v3195
    %3454 = vmatprep.subr.bf16.mxu0 0
    %3455 = vmatpush2.bf16.msra.mxu0 %v3194
    %3456 = vmatprep.subr.bf16.mxu0 0
    %3457 = vmatpush2.bf16.msra.mxu0 %v3193
    %3458 = vmatprep.subr.bf16.mxu0 0
    %3459 = vmatpush2.bf16.msra.mxu0 %v3192
    %3460 = vmatprep.subr.bf16.mxu0 0
    %3461 = vmatpush2.bf16.msra.mxu0 %v3191
    %3462 = vmatprep.subr.bf16.mxu0 0
    %3463 = vmatpush2.bf16.msra.mxu0 %v3190
    %3464 = vmatprep.subr.bf16.mxu0 0
    %3465 = vmatpush2.bf16.msra.mxu0 %v3189
    %3466 = vmatprep.subr.bf16.mxu0 0
    %3467 = vmatpush2.bf16.msra.mxu0 %v3188
    %3468 = vmatprep.mubr.bf16.mxu0 %v2397
    %3469 = vmatmul.mubr.bf16.gmra.mxu0 %v2396
    %v3470 = vpop.f32.mrf.mxu0
    %v3471 = vadd.f32 0.0, %v3470
    %v3472 = vpop.f32.mrf.mxu0
    %v3473 = vpop.f32.mrf.mxu0
    %v3474 = vpop.f32.mrf.mxu0
    %3475 = vdwg.mxu0
    %3476 = vmatprep.subr.bf16.mxu0 0
    %3477 = vmatpush1.bf16.msra.mxu0 %v3203
    %3478 = vmatprep.subr.bf16.mxu0 0
    %3479 = vmatpush1.bf16.msra.mxu0 %v3202
    %3480 = vmatprep.subr.bf16.mxu0 0
    %3481 = vmatpush1.bf16.msra.mxu0 %v3201
    %3482 = vmatprep.subr.bf16.mxu0 0
    %3483 = vmatpush1.bf16.msra.mxu0 %v3200
    %3484 = vmatprep.subr.bf16.mxu0 0
    %3485 = vmatpush1.bf16.msra.mxu0 %v3199
    %3486 = vmatprep.subr.bf16.mxu0 0
    %3487 = vmatpush1.bf16.msra.mxu0 %v3198
    %3488 = vmatprep.subr.bf16.mxu0 0
    %3489 = vmatpush1.bf16.msra.mxu0 %v3197
    %3490 = vmatprep.subr.bf16.mxu0 0
    %3491 = vmatpush1.bf16.msra.mxu0 %v3196
    %3492 = vmatprep.subr.bf16.mxu0 0
    %3493 = vmatpush2.bf16.msra.mxu0 %v3211
    %3494 = vmatprep.subr.bf16.mxu0 0
    %3495 = vmatpush2.bf16.msra.mxu0 %v3210
    %3496 = vmatprep.subr.bf16.mxu0 0
    %3497 = vmatpush2.bf16.msra.mxu0 %v3209
    %3498 = vmatprep.subr.bf16.mxu0 0
    %3499 = vmatpush2.bf16.msra.mxu0 %v3208
    %3500 = vmatprep.subr.bf16.mxu0 0
    %3501 = vmatpush2.bf16.msra.mxu0 %v3207
    %3502 = vmatprep.subr.bf16.mxu0 0
    %3503 = vmatpush2.bf16.msra.mxu0 %v3206
    %3504 = vmatprep.subr.bf16.mxu0 0
    %3505 = vmatpush2.bf16.msra.mxu0 %v3205
    %3506 = vmatprep.subr.bf16.mxu0 0
    %3507 = vmatpush2.bf16.msra.mxu0 %v3204
    %3508 = vmatprep.mubr.bf16.mxu0 %v2399
    %3509 = vmatmul.mubr.bf16.gmra.mxu0 %v2398
    %v3510 = vpop.f32.mrf.mxu0
    %v3511 = vadd.f32 %v3471, %v3510
    %v3512 = vpop.f32.mrf.mxu0
    %v3513 = vpop.f32.mrf.mxu0
    %v3514 = vpop.f32.mrf.mxu0
    %3515 = vdwg.mxu0
    %3516 = vmatprep.subr.bf16.mxu0 0
    %3517 = vmatpush1.bf16.msra.mxu0 %v3219
    %3518 = vmatprep.subr.bf16.mxu0 0
    %3519 = vmatpush1.bf16.msra.mxu0 %v3218
    %3520 = vmatprep.subr.bf16.mxu0 0
    %3521 = vmatpush1.bf16.msra.mxu0 %v3217
    %3522 = vmatprep.subr.bf16.mxu0 0
    %3523 = vmatpush1.bf16.msra.mxu0 %v3216
    %3524 = vmatprep.subr.bf16.mxu0 0
    %3525 = vmatpush1.bf16.msra.mxu0 %v3215
    %3526 = vmatprep.subr.bf16.mxu0 0
    %3527 = vmatpush1.bf16.msra.mxu0 %v3214
    %3528 = vmatprep.subr.bf16.mxu0 0
    %3529 = vmatpush1.bf16.msra.mxu0 %v3213
    %3530 = vmatprep.subr.bf16.mxu0 0
    %3531 = vmatpush1.bf16.msra.mxu0 %v3212
    %3532 = vmatprep.subr.bf16.mxu0 0
    %3533 = vmatpush2.bf16.msra.mxu0 %v3227
    %3534 = vmatprep.subr.bf16.mxu0 0
    %3535 = vmatpush2.bf16.msra.mxu0 %v3226
    %3536 = vmatprep.subr.bf16.mxu0 0
    %3537 = vmatpush2.bf16.msra.mxu0 %v3225
    %3538 = vmatprep.subr.bf16.mxu0 0
    %3539 = vmatpush2.bf16.msra.mxu0 %v3224
    %3540 = vmatprep.subr.bf16.mxu0 0
    %3541 = vmatpush2.bf16.msra.mxu0 %v3223
    %3542 = vmatprep.subr.bf16.mxu0 0
    %3543 = vmatpush2.bf16.msra.mxu0 %v3222
    %3544 = vmatprep.subr.bf16.mxu0 0
    %3545 = vmatpush2.bf16.msra.mxu0 %v3221
    %3546 = vmatprep.subr.bf16.mxu0 0
    %3547 = vmatpush2.bf16.msra.mxu0 %v3220
    %3548 = vmatprep.mubr.bf16.mxu0 %v2401
    %3549 = vmatmul.mubr.bf16.gmra.mxu0 %v2400
    %v3550 = vpop.f32.mrf.mxu0
    %v3551 = vadd.f32 %v3511, %v3550
    %v3552 = vpop.f32.mrf.mxu0
    %v3553 = vpop.f32.mrf.mxu0
    %v3554 = vpop.f32.mrf.mxu0
    %3555 = vdwg.mxu0
    %3556 = vmatprep.subr.bf16.mxu0 0
    %3557 = vmatpush1.bf16.msra.mxu0 %v3235
    %3558 = vmatprep.subr.bf16.mxu0 0
    %3559 = vmatpush1.bf16.msra.mxu0 %v3234
    %3560 = vmatprep.subr.bf16.mxu0 0
    %3561 = vmatpush1.bf16.msra.mxu0 %v3233
    %3562 = vmatprep.subr.bf16.mxu0 0
    %3563 = vmatpush1.bf16.msra.mxu0 %v3232
    %3564 = vmatprep.subr.bf16.mxu0 0
    %3565 = vmatpush1.bf16.msra.mxu0 %v3231
    %3566 = vmatprep.subr.bf16.mxu0 0
    %3567 = vmatpush1.bf16.msra.mxu0 %v3230
    %3568 = vmatprep.subr.bf16.mxu0 0
    %3569 = vmatpush1.bf16.msra.mxu0 %v3229
    %3570 = vmatprep.subr.bf16.mxu0 0
    %3571 = vmatpush1.bf16.msra.mxu0 %v3228
    %3572 = vmatprep.subr.bf16.mxu0 0
    %3573 = vmatpush2.bf16.msra.mxu0 %v3243
    %3574 = vmatprep.subr.bf16.mxu0 0
    %3575 = vmatpush2.bf16.msra.mxu0 %v3242
    %3576 = vmatprep.subr.bf16.mxu0 0
    %3577 = vmatpush2.bf16.msra.mxu0 %v3241
    %3578 = vmatprep.subr.bf16.mxu0 0
    %3579 = vmatpush2.bf16.msra.mxu0 %v3240
    %3580 = vmatprep.subr.bf16.mxu0 0
    %3581 = vmatpush2.bf16.msra.mxu0 %v3239
    %3582 = vmatprep.subr.bf16.mxu0 0
    %3583 = vmatpush2.bf16.msra.mxu0 %v3238
    %3584 = vmatprep.subr.bf16.mxu0 0
    %3585 = vmatpush2.bf16.msra.mxu0 %v3237
    %3586 = vmatprep.subr.bf16.mxu0 0
    %3587 = vmatpush2.bf16.msra.mxu0 %v3236
    %3588 = vmatprep.mubr.bf16.mxu0 %v2403
    %3589 = vmatmul.mubr.bf16.gmra.mxu0 %v2402
    %v3590 = vpop.f32.mrf.mxu0
    %v3591 = vadd.f32 %v3551, %v3590
    %v3592 = vpop.f32.mrf.mxu0
    %v3593 = vpop.f32.mrf.mxu0
    %v3594 = vpop.f32.mrf.mxu0
    %3595 = vdwg.mxu0
    %3596 = vmatprep.subr.bf16.mxu0 0
    %3597 = vmatpush1.bf16.msra.mxu0 %v3251
    %3598 = vmatprep.subr.bf16.mxu0 0
    %3599 = vmatpush1.bf16.msra.mxu0 %v3250
    %3600 = vmatprep.subr.bf16.mxu0 0
    %3601 = vmatpush1.bf16.msra.mxu0 %v3249
    %3602 = vmatprep.subr.bf16.mxu0 0
    %3603 = vmatpush1.bf16.msra.mxu0 %v3248
    %3604 = vmatprep.subr.bf16.mxu0 0
    %3605 = vmatpush1.bf16.msra.mxu0 %v3247
    %3606 = vmatprep.subr.bf16.mxu0 0
    %3607 = vmatpush1.bf16.msra.mxu0 %v3246
    %3608 = vmatprep.subr.bf16.mxu0 0
    %3609 = vmatpush1.bf16.msra.mxu0 %v3245
    %3610 = vmatprep.subr.bf16.mxu0 0
    %3611 = vmatpush1.bf16.msra.mxu0 %v3244
    %3612 = vmatprep.subr.bf16.mxu0 0
    %3613 = vmatpush2.bf16.msra.mxu0 %v3259
    %3614 = vmatprep.subr.bf16.mxu0 0
    %3615 = vmatpush2.bf16.msra.mxu0 %v3258
    %3616 = vmatprep.subr.bf16.mxu0 0
    %3617 = vmatpush2.bf16.msra.mxu0 %v3257
    %3618 = vmatprep.subr.bf16.mxu0 0
    %3619 = vmatpush2.bf16.msra.mxu0 %v3256
    %3620 = vmatprep.subr.bf16.mxu0 0
    %3621 = vmatpush2.bf16.msra.mxu0 %v3255
    %3622 = vmatprep.subr.bf16.mxu0 0
    %3623 = vmatpush2.bf16.msra.mxu0 %v3254
    %3624 = vmatprep.subr.bf16.mxu0 0
    %3625 = vmatpush2.bf16.msra.mxu0 %v3253
    %3626 = vmatprep.subr.bf16.mxu0 0
    %3627 = vmatpush2.bf16.msra.mxu0 %v3252
    %3628 = vmatprep.mubr.bf16.mxu0 %v2405
    %3629 = vmatmul.mubr.bf16.gmra.mxu0 %v2404
    %v3630 = vpop.f32.mrf.mxu0
    %v3631 = vadd.f32 %v3591, %v3630
    %v3632 = vpop.f32.mrf.mxu0
    %v3633 = vpop.f32.mrf.mxu0
    %v3634 = vpop.f32.mrf.mxu0
    %3635 = vdwg.mxu0
    %3636 = vmatprep.subr.bf16.mxu0 0
    %3637 = vmatpush1.bf16.msra.mxu0 %v3267
    %3638 = vmatprep.subr.bf16.mxu0 0
    %3639 = vmatpush1.bf16.msra.mxu0 %v3266
    %3640 = vmatprep.subr.bf16.mxu0 0
    %3641 = vmatpush1.bf16.msra.mxu0 %v3265
    %3642 = vmatprep.subr.bf16.mxu0 0
    %3643 = vmatpush1.bf16.msra.mxu0 %v3264
    %3644 = vmatprep.subr.bf16.mxu0 0
    %3645 = vmatpush1.bf16.msra.mxu0 %v3263
    %3646 = vmatprep.subr.bf16.mxu0 0
    %3647 = vmatpush1.bf16.msra.mxu0 %v3262
    %3648 = vmatprep.subr.bf16.mxu0 0
    %3649 = vmatpush1.bf16.msra.mxu0 %v3261
    %3650 = vmatprep.subr.bf16.mxu0 0
    %3651 = vmatpush1.bf16.msra.mxu0 %v3260
    %3652 = vmatprep.subr.bf16.mxu0 0
    %3653 = vmatpush2.bf16.msra.mxu0 %v3275
    %3654 = vmatprep.subr.bf16.mxu0 0
    %3655 = vmatpush2.bf16.msra.mxu0 %v3274
    %3656 = vmatprep.subr.bf16.mxu0 0
    %3657 = vmatpush2.bf16.msra.mxu0 %v3273
    %3658 = vmatprep.subr.bf16.mxu0 0
    %3659 = vmatpush2.bf16.msra.mxu0 %v3272
    %3660 = vmatprep.subr.bf16.mxu0 0
    %3661 = vmatpush2.bf16.msra.mxu0 %v3271
    %3662 = vmatprep.subr.bf16.mxu0 0
    %3663 = vmatpush2.bf16.msra.mxu0 %v3270
    %3664 = vmatprep.subr.bf16.mxu0 0
    %3665 = vmatpush2.bf16.msra.mxu0 %v3269
    %3666 = vmatprep.subr.bf16.mxu0 0
    %3667 = vmatpush2.bf16.msra.mxu0 %v3268
    %3668 = vmatprep.mubr.bf16.mxu0 %v2407
    %3669 = vmatmul.mubr.bf16.gmra.mxu0 %v2406
    %v3670 = vpop.f32.mrf.mxu0
    %v3671 = vadd.f32 %v3631, %v3670
    %v3672 = vpop.f32.mrf.mxu0
    %v3673 = vpop.f32.mrf.mxu0
    %v3674 = vpop.f32.mrf.mxu0
    %3675 = vdwg.mxu0
    %3676 = vmatprep.subr.bf16.mxu0 0
    %3677 = vmatpush1.bf16.msra.mxu0 %v3283
    %3678 = vmatprep.subr.bf16.mxu0 0
    %3679 = vmatpush1.bf16.msra.mxu0 %v3282
    %3680 = vmatprep.subr.bf16.mxu0 0
    %3681 = vmatpush1.bf16.msra.mxu0 %v3281
    %3682 = vmatprep.subr.bf16.mxu0 0
    %3683 = vmatpush1.bf16.msra.mxu0 %v3280
    %3684 = vmatprep.subr.bf16.mxu0 0
    %3685 = vmatpush1.bf16.msra.mxu0 %v3279
    %3686 = vmatprep.subr.bf16.mxu0 0
    %3687 = vmatpush1.bf16.msra.mxu0 %v3278
    %3688 = vmatprep.subr.bf16.mxu0 0
    %3689 = vmatpush1.bf16.msra.mxu0 %v3277
    %3690 = vmatprep.subr.bf16.mxu0 0
    %3691 = vmatpush1.bf16.msra.mxu0 %v3276
    %3692 = vmatprep.subr.bf16.mxu0 0
    %3693 = vmatpush2.bf16.msra.mxu0 %v3291
    %3694 = vmatprep.subr.bf16.mxu0 0
    %3695 = vmatpush2.bf16.msra.mxu0 %v3290
    %3696 = vmatprep.subr.bf16.mxu0 0
    %3697 = vmatpush2.bf16.msra.mxu0 %v3289
    %3698 = vmatprep.subr.bf16.mxu0 0
    %3699 = vmatpush2.bf16.msra.mxu0 %v3288
    %3700 = vmatprep.subr.bf16.mxu0 0
    %3701 = vmatpush2.bf16.msra.mxu0 %v3287
    %3702 = vmatprep.subr.bf16.mxu0 0
    %3703 = vmatpush2.bf16.msra.mxu0 %v3286
    %3704 = vmatprep.subr.bf16.mxu0 0
    %3705 = vmatpush2.bf16.msra.mxu0 %v3285
    %3706 = vmatprep.subr.bf16.mxu0 0
    %3707 = vmatpush2.bf16.msra.mxu0 %v3284
    %3708 = vmatprep.mubr.bf16.mxu0 %v2409
    %3709 = vmatmul.mubr.bf16.gmra.mxu0 %v2408
    %v3710 = vpop.f32.mrf.mxu0
    %v3711 = vadd.f32 %v3671, %v3710
    %v3712 = vpop.f32.mrf.mxu0
    %v3713 = vpop.f32.mrf.mxu0
    %v3714 = vpop.f32.mrf.mxu0
    %3715 = vdwg.mxu0
    %3716 = vmatprep.subr.bf16.mxu0 0
    %3717 = vmatpush1.bf16.msra.mxu0 %v3299
    %3718 = vmatprep.subr.bf16.mxu0 0
    %3719 = vmatpush1.bf16.msra.mxu0 %v3298
    %3720 = vmatprep.subr.bf16.mxu0 0
    %3721 = vmatpush1.bf16.msra.mxu0 %v3297
    %3722 = vmatprep.subr.bf16.mxu0 0
    %3723 = vmatpush1.bf16.msra.mxu0 %v3296
    %3724 = vmatprep.subr.bf16.mxu0 0
    %3725 = vmatpush1.bf16.msra.mxu0 %v3295
    %3726 = vmatprep.subr.bf16.mxu0 0
    %3727 = vmatpush1.bf16.msra.mxu0 %v3294
    %3728 = vmatprep.subr.bf16.mxu0 0
    %3729 = vmatpush1.bf16.msra.mxu0 %v3293
    %3730 = vmatprep.subr.bf16.mxu0 0
    %3731 = vmatpush1.bf16.msra.mxu0 %v3292
    %3732 = vmatprep.subr.bf16.mxu0 0
    %3733 = vmatpush2.bf16.msra.mxu0 %v3307
    %3734 = vmatprep.subr.bf16.mxu0 0
    %3735 = vmatpush2.bf16.msra.mxu0 %v3306
    %3736 = vmatprep.subr.bf16.mxu0 0
    %3737 = vmatpush2.bf16.msra.mxu0 %v3305
    %3738 = vmatprep.subr.bf16.mxu0 0
    %3739 = vmatpush2.bf16.msra.mxu0 %v3304
    %3740 = vmatprep.subr.bf16.mxu0 0
    %3741 = vmatpush2.bf16.msra.mxu0 %v3303
    %3742 = vmatprep.subr.bf16.mxu0 0
    %3743 = vmatpush2.bf16.msra.mxu0 %v3302
    %3744 = vmatprep.subr.bf16.mxu0 0
    %3745 = vmatpush2.bf16.msra.mxu0 %v3301
    %3746 = vmatprep.subr.bf16.mxu0 0
    %3747 = vmatpush2.bf16.msra.mxu0 %v3300
    %3748 = vmatprep.mubr.bf16.mxu0 %v2411
    %3749 = vmatmul.mubr.bf16.gmra.mxu0 %v2410
    %v3750 = vpop.f32.mrf.mxu0
    %v3751 = vadd.f32 %v3711, %v3750
    %v3752 = vpop.f32.mrf.mxu0
    %v3753 = vpop.f32.mrf.mxu0
    %v3754 = vpop.f32.mrf.mxu0
    %3755 = vdwg.mxu0
    %v3756 = vmul.f32 %v3751, 2.0
    %v3757 = vld [vmem:[%s8] sm:$0x1]
    %v3759 = vlaneseq
    %v3760 = vshrl.u32 %v3759, 7
    %v3761 = vsub.s32 0, %v3760
    %v3762 = vrot.slane %v3757, %v3761
    %v3764 = vadd.f32 %v3756, %v3762
    %v3765 = vtanh.pop %v3764
    %3766 = vst [vmem:[#allocation15] sm:$0xff] %v3765
    // Predicated region
    $region58: #{tpu_custom_call.1} parent=1 // pred_check
      _
    $region59: #{tpu_custom_call.1} parent=1 // pred_check_branch
      %3768 = sbr.rel (0) target = $region61
    $region60: #{tpu_custom_call.1} parent=1 // pred_region
      %s3770 = ssub.s32 128, 128
      %3771 = vsyncadd [#allocation6], %s3770
      %s3773 = sshll.u32 [#allocation15], 4
      %s3774 = int_to_ptr.vmem [resolvable:$true] %s3773
      %3776 = dma.vmem_to_hbm [thread:$0]  %s3774, 128, %s9, [#allocation6]
    $region61: #{tpu_custom_call.1} parent=1 // pred_fallthru
      _
    // Predicated region
    $region62: #{tpu_custom_call.1} parent=1 // pred_check
      _
    $region63: #{tpu_custom_call.1} parent=1 // pred_check_branch
      %3778 = sbr.rel (0) target = $region65
    $region64: #{tpu_custom_call.1} parent=1 // pred_region
      %3779 = dma.done [#allocation6], 128
    $region65: #{tpu_custom_call.1} parent=1 // pred_fallthru
      _
    %3780 = vsyncpa [#allocation5], 1
    %3781 = vsyncpa [#allocation8], 1
    %3782 = vsyncpa [#allocation11], 1
    %3783 = vsyncpa [#allocation14], 1
    %3784 = vsyncpa [#allocation6], 1

</llo_original>
